<compile_context>
chip_gen: v5e
topology: v5e:2x2
jax: 0.10.0
libtpu: 0.0.40
codegen_flags: <defaults>
</compile_context>

<pallas_src>
import functools

import jax
import jax.numpy as jnp
from jax import lax
from jax.experimental import pallas as pl
from jax.experimental.pallas import tpu as pltpu

PAD_IDX, SOS_IDX, EOS_IDX, UNK_IDX = 0, 1, 2, 3
NEG = -10000.0
HP = 128          # hidden size padded to one 128-lane group (per-gate aligned)


# ---------------------------------------------------------------------------
# Hoisted input projection: one row-tiled (M, E) @ (E, N) + b matmul
# ---------------------------------------------------------------------------
def _matmul_bias_kernel(x_ref, w_ref, b_ref, o_ref):
    o_ref[...] = (jnp.dot(x_ref[...], w_ref[...],
                          preferred_element_type=jnp.float32) + b_ref[...])


def matmul_bias(x2d, w, b, bm=256):
    """x2d (M,E) bf16 @ w (E,N) bf16 + b (1,N) f32 -> (M,N) f32."""
    M, E = x2d.shape
    N = w.shape[1]
    bm = min(bm, M)
    return pl.pallas_call(
        _matmul_bias_kernel,
        out_shape=jax.ShapeDtypeStruct((M, N), jnp.float32),
        grid_spec=pltpu.PrefetchScalarGridSpec(
            num_scalar_prefetch=0,
            grid=(pl.cdiv(M, bm),),
            in_specs=[pl.BlockSpec((bm, E), lambda i: (i, 0)),
                      pl.BlockSpec((E, N), lambda i: (0, 0)),
                      pl.BlockSpec((1, N), lambda i: (0, 0))],
            out_specs=pl.BlockSpec((bm, N), lambda i: (i, 0))),
        compiler_params=pltpu.CompilerParams(dimension_semantics=("parallel",)),
    )(x2d, w, b)


# ---------------------------------------------------------------------------
# LSTM recurrence with fused output projection (+ optional length mask).
# Grid over T-chunks; h/c carried across chunks in VMEM scratch.
# ---------------------------------------------------------------------------
def _lstm_rec_kernel(gx_ref, whh_ref, wout_ref, bout_ref, len_ref,
                     out_ref, h_scr, c_scr, *, apply_mask):
    # gx_ref : (TC, B, 4*HP) f32  pre-activations (x @ Wih + b) for this chunk
    # whh_ref: (HP, 4*HP) bf16, wout_ref: (HP, K) bf16, bout_ref: (1, K) f32
    # len_ref: (B, 1) int32, out_ref: (TC, B, K) f32
    chunk = pl.program_id(0)
    TC = gx_ref.shape[0]

    @pl.when(chunk == 0)
    def _():
        h_scr[...] = jnp.zeros_like(h_scr)
        c_scr[...] = jnp.zeros_like(c_scr)

    whh = whh_ref[...]
    wout = wout_ref[...]
    bout = bout_ref[...]
    lens = len_ref[...]

    def step(t, carry):
        h, c = carry
        gates = gx_ref[t] + jnp.dot(h.astype(jnp.bfloat16), whh,
                                    preferred_element_type=jnp.float32)
        # gate order i, f, g, o; each gate block is a full lane-aligned 128-wide slice
        i = jax.nn.sigmoid(gates[:, 0 * HP:1 * HP])
        f = jax.nn.sigmoid(gates[:, 1 * HP:2 * HP])
        g = jnp.tanh(gates[:, 2 * HP:3 * HP])
        o = jax.nn.sigmoid(gates[:, 3 * HP:4 * HP])
        c = f * c + i * g
        h = o * jnp.tanh(c)
        out_t = jnp.dot(h.astype(jnp.bfloat16), wout,
                        preferred_element_type=jnp.float32) + bout
        if apply_mask:
            t_global = chunk * TC + t
            out_t = jnp.where(t_global < lens, out_t, 0.0)
        out_ref[t] = out_t
        return h, c

    h, c = lax.fori_loop(0, TC, step, (h_scr[...], c_scr[...]), unroll=True)
    h_scr[...] = h
    c_scr[...] = c


def lstm_project(gx_tbg, whh_p, wout_p, bout, len_b1, num_tags, apply_mask,
                 tc=32):
    T, B, G = gx_tbg.shape
    TC = min(tc, T)
    kern = functools.partial(_lstm_rec_kernel, apply_mask=apply_mask)
    return pl.pallas_call(
        kern,
        out_shape=jax.ShapeDtypeStruct((T, B, num_tags), jnp.float32),
        grid_spec=pltpu.PrefetchScalarGridSpec(
            num_scalar_prefetch=0,
            grid=(pl.cdiv(T, TC),),
            in_specs=[pl.BlockSpec((TC, B, G), lambda c: (c, 0, 0)),
                      pl.BlockSpec(whh_p.shape, lambda c: (0, 0)),
                      pl.BlockSpec(wout_p.shape, lambda c: (0, 0)),
                      pl.BlockSpec(bout.shape, lambda c: (0, 0)),
                      pl.BlockSpec(len_b1.shape, lambda c: (0, 0))],
            out_specs=pl.BlockSpec((TC, B, num_tags), lambda c: (c, 0, 0)),
            scratch_shapes=[pltpu.VMEM((B, HP), jnp.float32),
                            pltpu.VMEM((B, HP), jnp.float32)]),
        compiler_params=pltpu.CompilerParams(dimension_semantics=("arbitrary",)),
    )(gx_tbg, whh_p, wout_p, bout, len_b1)


# ---------------------------------------------------------------------------
# CRF partition function (crf.forward): chunked over T, running score in scratch
# ---------------------------------------------------------------------------
def _crf_fwd_kernel(h_ref, trans_ref, len_ref, z_ref, score_scr):
    # h_ref: (TC, B, K) emissions chunk, trans: (K, K), len: (B, 1) i32, z: (B, 1)
    chunk = pl.program_id(0)
    TC, B, K = h_ref.shape

    @pl.when(chunk == 0)
    def _():
        col = lax.broadcasted_iota(jnp.int32, (B, K), 1)
        score_scr[...] = jnp.where(col == SOS_IDX, 0.0, NEG)

    trans = trans_ref[...]
    lens = len_ref[...]

    def step(t, score):
        emit = h_ref[t]                                              # (B, K)
        # score_t[b, i, j] = score[b, j] + emit[b, i] + trans[i, j]
        st = score[:, None, :] + emit[:, :, None] + trans[None, :, :]
        m = jnp.max(st, axis=-1)
        lse = m + jnp.log(jnp.sum(jnp.exp(st - m[:, :, None]), axis=-1))
        t_global = chunk * TC + t
        return jnp.where(t_global < lens, lse, score)

    score = lax.fori_loop(0, TC, step, score_scr[...], unroll=True)
    score_scr[...] = score

    @pl.when(chunk == pl.num_programs(0) - 1)
    def _():
        final = score + trans[EOS_IDX:EOS_IDX + 1, :]
        mf = jnp.max(final, axis=-1, keepdims=True)
        z_ref[...] = mf + jnp.log(jnp.sum(jnp.exp(final - mf), axis=-1,
                                          keepdims=True))


def crf_partition(h_tbk, trans, len_b1, tc=32):
    T, B, K = h_tbk.shape
    TC = min(tc, T)
    return pl.pallas_call(
        _crf_fwd_kernel,
        out_shape=jax.ShapeDtypeStruct((B, 1), jnp.float32),
        grid_spec=pltpu.PrefetchScalarGridSpec(
            num_scalar_prefetch=0,
            grid=(pl.cdiv(T, TC),),
            in_specs=[pl.BlockSpec((TC, B, K), lambda c: (c, 0, 0)),
                      pl.BlockSpec((K, K), lambda c: (0, 0)),
                      pl.BlockSpec((B, 1), lambda c: (0, 0))],
            out_specs=pl.BlockSpec((B, 1), lambda c: (0, 0)),
            scratch_shapes=[pltpu.VMEM((B, K), jnp.float32)]),
        compiler_params=pltpu.CompilerParams(dimension_semantics=("arbitrary",)),
    )(h_tbk, trans, len_b1)


# ---------------------------------------------------------------------------
# CRF gold-path score (crf.score): fully vectorized over T (no recurrence)
# ---------------------------------------------------------------------------
def _crf_score_kernel(h_ref, y_ref, len_ref, tflat_ref, teos_ref, out_ref):
    # h: (T,B,K) f32, y: (T+1,B,1) i32 (y[0]=SOS), len: (B,1) i32,
    # tflat: (1, K*K) f32 (row-major trans), teos: (1, K) f32 (= trans[EOS]).
    T, B, K = h_ref.shape
    y = y_ref[...]
    lens = len_ref[...]
    y_next = y[1:]                                                    # (T,B,1)
    y_prev = y[:-1]                                                   # (T,B,1)

    col_k = lax.broadcasted_iota(jnp.int32, (T, B, K), 2)
    oh_next = (col_k == y_next).astype(jnp.float32)                   # (T,B,K)
    emit = jnp.sum(h_ref[...] * oh_next, axis=-1, keepdims=True)      # (T,B,1)

    KK = K * K
    col_kk = lax.broadcasted_iota(jnp.int32, (T, B, KK), 2)
    pair = y_next * K + y_prev                                        # flat (next,prev)
    oh_pair = (col_kk == pair).astype(jnp.float32)                    # (T,B,KK)
    tr = jnp.sum(oh_pair * tflat_ref[...], axis=-1, keepdims=True)    # (T,B,1)

    t_iota = lax.broadcasted_iota(jnp.int32, (T, B, 1), 0)
    mask = (t_iota < lens[None, :, :]).astype(jnp.float32)
    score = jnp.sum((emit + tr) * mask, axis=0)                       # (B,1)

    # + trans[EOS, last_tag]  with last_tag = y[len[b], b]
    col_k1 = lax.broadcasted_iota(jnp.int32, (T + 1, B, K), 2)
    oh_y = (col_k1 == y).astype(jnp.float32)                          # (T+1,B,K)
    eos_t = jnp.sum(oh_y * teos_ref[...], axis=-1, keepdims=True)     # (T+1,B,1)
    t1_iota = lax.broadcasted_iota(jnp.int32, (T + 1, B, 1), 0)
    sel = (t1_iota == lens[None, :, :]).astype(jnp.float32)
    out_ref[...] = score + jnp.sum(eos_t * sel, axis=0)


def crf_score(h_tbk, y_t1b1, len_b1, trans):
    # TODO(synk): chunk over T for very long sequences (v7x 64 MiB VMEM); the
    # gold-path score has no recurrence so it tiles trivially.
    T, B, K = h_tbk.shape
    tflat = trans.reshape(1, K * K)
    teos = trans[EOS_IDX:EOS_IDX + 1, :]
    vmem = pl.BlockSpec(memory_space=pltpu.MemorySpace.VMEM)
    return pl.pallas_call(
        _crf_score_kernel,
        out_shape=jax.ShapeDtypeStruct((B, 1), jnp.float32),
        in_specs=[vmem] * 5,
        out_specs=vmem,
    )(h_tbk, y_t1b1, len_b1, tflat, teos)


# ---------------------------------------------------------------------------
# Parameter init (deterministic, synthetic) + kernel-ready packing
# ---------------------------------------------------------------------------
def init_trans(key, K):
    t = jax.random.normal(key, (K, K), jnp.float32)
    t = t.at[SOS_IDX, :].set(NEG)
    t = t.at[:, EOS_IDX].set(NEG)
    t = t.at[:, PAD_IDX].set(NEG)
    t = t.at[PAD_IDX, :].set(NEG)
    t = t.at[PAD_IDX, EOS_IDX].set(0.0)
    t = t.at[PAD_IDX, PAD_IDX].set(0.0)
    return t


def init_params(key, wti_size, E, H, K_iob, K_ner):
    ks = jax.random.split(key, 14)
    s = 0.1
    p = {}
    p["word_emb"] = jax.random.normal(ks[0], (wti_size, E), jnp.float32) * s
    p["word_emb"] = p["word_emb"].at[PAD_IDX].set(0.0)
    # rnn_iob : LSTM(E -> H), out Linear(H -> K_iob)       (gate order i,f,g,o)
    p["iob_wih"] = jax.random.normal(ks[1], (E, 4 * H), jnp.float32) * s
    p["iob_whh"] = jax.random.normal(ks[2], (H, 4 * H), jnp.float32) * s
    p["iob_b"] = jax.random.normal(ks[3], (1, 4 * H), jnp.float32) * s
    p["iob_wout"] = jax.random.normal(ks[4], (H, K_iob), jnp.float32) * s
    p["iob_bout"] = jax.random.normal(ks[5], (1, K_iob), jnp.float32) * s
    p["trans_iob"] = init_trans(ks[6], K_iob)
    # rnn_ner : LSTM(K_iob -> H), out Linear(H -> K_ner)
    p["ner_wih"] = jax.random.normal(ks[7], (K_iob, 4 * H), jnp.float32) * s
    p["ner_whh"] = jax.random.normal(ks[8], (H, 4 * H), jnp.float32) * s
    p["ner_b"] = jax.random.normal(ks[9], (1, 4 * H), jnp.float32) * s
    p["ner_wout"] = jax.random.normal(ks[10], (H, K_ner), jnp.float32) * s
    p["ner_bout"] = jax.random.normal(ks[11], (1, K_ner), jnp.float32) * s
    p["trans_ner"] = init_trans(ks[12], K_ner)
    return p


def _pad_gates(w, hp):
    """(In, 4H) -> (In, 4*hp): each gate block lane-aligned, padded with zeros."""
    n_in, h4 = w.shape
    H = h4 // 4
    out = jnp.zeros((n_in, 4 * hp), w.dtype)
    for g in range(4):
        out = out.at[:, g * hp:g * hp + H].set(w[:, g * H:(g + 1) * H])
    return out


def _pad_rows(w, hp):
    """(H, N) -> (hp, N): zero rows for padded hidden units (exact)."""
    H, N = w.shape
    return jnp.zeros((hp, N), w.dtype).at[:H, :].set(w)


def pack_params(p):
    """Kernel-ready weights: lane-aligned gate blocks, H padded to HP (zeros,
    hence numerically exact), matmul operands in bf16."""
    q = {"word_emb": p["word_emb"]}
    for name in ("iob", "ner"):
        q[f"{name}_wih"] = _pad_gates(p[f"{name}_wih"], HP).astype(jnp.bfloat16)
        q[f"{name}_b"] = _pad_gates(p[f"{name}_b"], HP)
        q[f"{name}_whh"] = _pad_rows(_pad_gates(p[f"{name}_whh"], HP),
                                     HP).astype(jnp.bfloat16)
        q[f"{name}_wout"] = _pad_rows(p[f"{name}_wout"], HP).astype(jnp.bfloat16)
        q[f"{name}_bout"] = p[f"{name}_bout"]
        q[f"trans_{name}"] = p[f"trans_{name}"]
    return q


# ---------------------------------------------------------------------------
# Full forward pass (glue in JAX, compute in Pallas kernels)
# ---------------------------------------------------------------------------
def rnn_two_crf_seq_forward(kp, xc, xw, yiob, yner):
    del xc  # char path not implemented (see TODO at top)
    B, T1 = xw.shape
    T = T1 - 1
    K_iob = kp["iob_bout"].shape[1]
    K_ner = kp["ner_bout"].shape[1]

    # mask = xw[:,1:] > PAD (trailing padding only, as pack_padded_sequence
    # requires) -> represented by per-sequence lengths.
    lens = jnp.sum((xw[:, 1:] > PAD_IDX).astype(jnp.int32), axis=1)
    len_b1 = lens[:, None]                                           # (B, 1)

    # --- rnn_iob: embed -> hoisted x@Wih -> LSTM recurrence (+fused proj & mask)
    x = jnp.take(kp["word_emb"], xw[:, 1:], axis=0)                  # (B,T,E)
    x_tbe = jnp.transpose(x, (1, 0, 2)).astype(jnp.bfloat16)         # (T,B,E)
    E = x_tbe.shape[-1]
    gx = matmul_bias(x_tbe.reshape(T * B, E), kp["iob_wih"], kp["iob_b"])
    h_iob = lstm_project(gx.reshape(T, B, 4 * HP), kp["iob_whh"],
                         kp["iob_wout"], kp["iob_bout"], len_b1,
                         K_iob, apply_mask=True)                     # (T,B,K_iob)

    Ziob = crf_partition(h_iob, kp["trans_iob"], len_b1)[:, 0]

    # --- rnn_ner on h_iob (full padded sequence, zero init) + out proj (no mask)
    gx2 = matmul_bias(h_iob.reshape(T * B, K_iob).astype(jnp.bfloat16),
                      kp["ner_wih"], kp["ner_b"])
    ner_out = lstm_project(gx2.reshape(T, B, 4 * HP), kp["ner_whh"],
                           kp["ner_wout"], kp["ner_bout"], len_b1,
                           K_ner, apply_mask=False)                  # (T,B,K_ner)

    Zner = crf_partition(ner_out, kp["trans_ner"], len_b1)[:, 0]

    # --- gold-path scores ---
    y_iob = jnp.transpose(yiob, (1, 0))[:, :, None].astype(jnp.int32)  # (T+1,B,1)
    y_ner = jnp.transpose(yner, (1, 0))[:, :, None].astype(jnp.int32)
    s_iob = crf_score(h_iob, y_iob, len_b1, kp["trans_iob"])[:, 0]
    s_ner = crf_score(ner_out, y_ner, len_b1, kp["trans_ner"])[:, 0]

    return jnp.mean(Ziob - s_iob), jnp.mean(Zner - s_ner)


if __name__ == "__main__":
    key = jax.random.PRNGKey(0)
    B, T = 2, 8
    cti_size, wti_size = 20, 50
    EMBED_SIZE, HIDDEN_SIZE = 32, 32
    K_IOB, K_NER = 8, 8
    C = 4

    ks = jax.random.split(key, 6)
    lengths = jnp.array([T, 5], dtype=jnp.int32)        # trailing pad, sorted desc
    pos = jnp.arange(T, dtype=jnp.int32)[None, :]
    valid = pos < lengths[:, None]

    xw_body = jax.random.randint(ks[0], (B, T), 4, wti_size, dtype=jnp.int32)
    xw_body = jnp.where(valid, xw_body, PAD_IDX).astype(jnp.int32)
    xw = jnp.concatenate([jnp.full((B, 1), SOS_IDX, jnp.int32), xw_body], axis=1)

    xc = jax.random.randint(ks[1], (B, T, C), 4, cti_size, dtype=jnp.int32)  # unused

    yiob_body = jnp.where(valid, jax.random.randint(ks[2], (B, T), 3, K_IOB,
                                                    dtype=jnp.int32),
                          PAD_IDX).astype(jnp.int32)
    yiob = jnp.concatenate([jnp.full((B, 1), SOS_IDX, jnp.int32), yiob_body], axis=1)
    yner_body = jnp.where(valid, jax.random.randint(ks[3], (B, T), 3, K_NER,
                                                    dtype=jnp.int32),
                          PAD_IDX).astype(jnp.int32)
    yner = jnp.concatenate([jnp.full((B, 1), SOS_IDX, jnp.int32), yner_body], axis=1)

    params = init_params(ks[4], wti_size, EMBED_SIZE, HIDDEN_SIZE, K_IOB, K_NER)
    kparams = pack_params(params)

    loss_iob, loss_ner = jax.jit(rnn_two_crf_seq_forward)(kparams, xc, xw, yiob, yner)
    jax.block_until_ready((loss_iob, loss_ner))
    print("KERNEL_OK")
</pallas_src>

<mosaic_0001>
module attributes {stable_mosaic.version = 11 : i64} {
  func.func @_lstm_rec_kernel(%arg0: i32, %arg1: memref<8x2x512xf32, #tpu.memory_space<vmem>>, %arg2: memref<128x512xbf16, #tpu.memory_space<vmem>>, %arg3: memref<128x8xbf16, #tpu.memory_space<vmem>>, %arg4: memref<1x8xf32, #tpu.memory_space<vmem>>, %arg5: memref<2x1xi32, #tpu.memory_space<vmem>>, %arg6: memref<8x2x8xf32, #tpu.memory_space<vmem>>, %arg7: memref<2x128xf32, #tpu.memory_space<vmem>>, %arg8: memref<2x128xf32, #tpu.memory_space<vmem>>) attributes {dimension_semantics = [#tpu.dimension_semantics<arbitrary>], iteration_bounds = array<i64: 1>, scalar_prefetch = 0 : i64, scratch_operands = 2 : i64, tpu.core_type = #tpu.core_type<tc>, window_params = [{transform_indices = @transform_0, window_bounds = array<i64: 8, 2, 512>}, {pipeline_mode = #tpu.pipeline_mode<synchronous>, transform_indices = @transform_1, window_bounds = array<i64: 128, 512>}, {pipeline_mode = #tpu.pipeline_mode<synchronous>, transform_indices = @transform_2, window_bounds = array<i64: 128, 8>}, {pipeline_mode = #tpu.pipeline_mode<synchronous>, transform_indices = @transform_3, window_bounds = array<i64: 1, 8>}, {pipeline_mode = #tpu.pipeline_mode<synchronous>, transform_indices = @transform_4, window_bounds = array<i64: 2, 1>}, {transform_indices = @transform_5, window_bounds = array<i64: 8, 2, 8>}]} {
    %c0_i32 = arith.constant 0 : i32
    %0 = arith.cmpi eq, %arg0, %c0_i32 : i32
    %1 = arith.extui %0 : i1 to i32
    %c0_i32_0 = arith.constant 0 : i32
    %2 = arith.cmpi ne, %1, %c0_i32_0 : i32
    scf.if %2 {
      %cst_104 = arith.constant 0.000000e+00 : f32
      %387 = vector.broadcast %cst_104 : f32 to vector<2x128xf32>
      %c0_105 = arith.constant 0 : index
      %c0_106 = arith.constant 0 : index
      %388 = vector.load %arg7[%c0_105, %c0_106] : memref<2x128xf32, #tpu.memory_space<vmem>>, vector<2x128xf32>
      tpu.vector_store %arg7[%c0_105, %c0_106], %387 {strides = array<i32>} : memref<2x128xf32, #tpu.memory_space<vmem>>, vector<2x128xf32>,
      %cst_107 = arith.constant 0.000000e+00 : f32
      %389 = vector.broadcast %cst_107 : f32 to vector<2x128xf32>
      %c0_108 = arith.constant 0 : index
      %c0_109 = arith.constant 0 : index
      %390 = vector.load %arg8[%c0_108, %c0_109] : memref<2x128xf32, #tpu.memory_space<vmem>>, vector<2x128xf32>
      tpu.vector_store %arg8[%c0_108, %c0_109], %389 {strides = array<i32>} : memref<2x128xf32, #tpu.memory_space<vmem>>, vector<2x128xf32>,
    } else {
    }
    %c0 = arith.constant 0 : index
    %c0_1 = arith.constant 0 : index
    %3 = vector.load %arg2[%c0, %c0_1] : memref<128x512xbf16, #tpu.memory_space<vmem>>, vector<128x512xbf16>
    %c0_2 = arith.constant 0 : index
    %c0_3 = arith.constant 0 : index
    %4 = vector.load %arg3[%c0_2, %c0_3] : memref<128x8xbf16, #tpu.memory_space<vmem>>, vector<128x8xbf16>
    %c0_4 = arith.constant 0 : index
    %c0_5 = arith.constant 0 : index
    %5 = vector.load %arg4[%c0_4, %c0_5] : memref<1x8xf32, #tpu.memory_space<vmem>>, vector<1x8xf32>
    %c0_6 = arith.constant 0 : index
    %c0_7 = arith.constant 0 : index
    %6 = vector.load %arg5[%c0_6, %c0_7] : memref<2x1xi32, #tpu.memory_space<vmem>>, vector<2x1xi32>
    %c0_8 = arith.constant 0 : index
    %c0_9 = arith.constant 0 : index
    %7 = vector.load %arg7[%c0_8, %c0_9] : memref<2x128xf32, #tpu.memory_space<vmem>>, vector<2x128xf32>
    %c0_10 = arith.constant 0 : index
    %c0_11 = arith.constant 0 : index
    %8 = vector.load %arg8[%c0_10, %c0_11] : memref<2x128xf32, #tpu.memory_space<vmem>>, vector<2x128xf32>
    %c0_i32_12 = arith.constant 0 : i32
    %9 = arith.index_cast %c0_i32_12 : i32 to index
    %c0_13 = arith.constant 0 : index
    %c0_14 = arith.constant 0 : index
    %10 = vector.load %arg1[%9, %c0_13, %c0_14] : memref<8x2x512xf32, #tpu.memory_space<vmem>>, vector<1x2x512xf32>
    %11 = vector.shape_cast %10 : vector<1x2x512xf32> to vector<2x512xf32>
    %12 = arith.truncf %7 : vector<2x128xf32> to vector<2x128xbf16>
    %cst = arith.constant dense<0.000000e+00> : vector<2x512xf32>
    %13 = tpu.matmul %12, %3, %cst {dimension_numbers = #tpu.dot_dimension_numbers<[1], [0], [0], [1], [0, 0, 1, 1], [], []>} : vector<2x128xbf16>, vector<128x512xbf16>, vector<2x512xf32> -> vector<2x512xf32>
    %14 = arith.addf %11, %13 : vector<2x512xf32>
    %15 = vector.extract_strided_slice %14 {offsets = [0, 0], sizes = [2, 128], strides = [1, 1]} : vector<2x512xf32> to vector<2x128xf32>
    %16 = arith.negf %15 : vector<2x128xf32>
    %17 = math.exp %16 : vector<2x128xf32>
    %cst_15 = arith.constant 1.000000e+00 : f32
    %18 = vector.broadcast %cst_15 : f32 to vector<2x128xf32>
    %19 = arith.addf %18, %17 : vector<2x128xf32>
    %20 = arith.divf %18, %19 : vector<2x128xf32>
    %21 = vector.extract_strided_slice %14 {offsets = [0, 128], sizes = [2, 128], strides = [1, 1]} : vector<2x512xf32> to vector<2x128xf32>
    %22 = arith.negf %21 : vector<2x128xf32>
    %23 = math.exp %22 : vector<2x128xf32>
    %cst_16 = arith.constant 1.000000e+00 : f32
    %24 = vector.broadcast %cst_16 : f32 to vector<2x128xf32>
    %25 = arith.addf %24, %23 : vector<2x128xf32>
    %26 = arith.divf %24, %25 : vector<2x128xf32>
    %27 = vector.extract_strided_slice %14 {offsets = [0, 256], sizes = [2, 128], strides = [1, 1]} : vector<2x512xf32> to vector<2x128xf32>
    %28 = math.tanh %27 : vector<2x128xf32>
    %29 = vector.extract_strided_slice %14 {offsets = [0, 384], sizes = [2, 128], strides = [1, 1]} : vector<2x512xf32> to vector<2x128xf32>
    %30 = arith.negf %29 : vector<2x128xf32>
    %31 = math.exp %30 : vector<2x128xf32>
    %cst_17 = arith.constant 1.000000e+00 : f32
    %32 = vector.broadcast %cst_17 : f32 to vector<2x128xf32>
    %33 = arith.addf %32, %31 : vector<2x128xf32>
    %34 = arith.divf %32, %33 : vector<2x128xf32>
    %35 = arith.mulf %26, %8 : vector<2x128xf32>
    %36 = arith.mulf %20, %28 : vector<2x128xf32>
    %37 = arith.addf %35, %36 : vector<2x128xf32>
    %38 = math.tanh %37 : vector<2x128xf32>
    %39 = arith.mulf %34, %38 : vector<2x128xf32>
    %40 = arith.truncf %39 : vector<2x128xf32> to vector<2x128xbf16>
    %cst_18 = arith.constant dense<0.000000e+00> : vector<2x8xf32>
    %41 = tpu.matmul %40, %4, %cst_18 {dimension_numbers = #tpu.dot_dimension_numbers<[1], [0], [0], [1], [0, 0, 1, 1], [], []>} : vector<2x128xbf16>, vector<128x8xbf16>, vector<2x8xf32> -> vector<2x8xf32>
    %42 = vector.broadcast %5 : vector<1x8xf32> to vector<2x8xf32>
    %43 = arith.addf %41, %42 : vector<2x8xf32>
    %c8_i32 = arith.constant 8 : i32
    %44 = arith.muli %arg0, %c8_i32 : i32
    %45 = arith.addi %44, %c0_i32_12 : i32
    %46 = vector.broadcast %45 : i32 to vector<2x1xi32>
    %47 = arith.cmpi slt, %46, %6 : vector<2x1xi32>
    %cst_19 = arith.constant 0.000000e+00 : f32
    %48 = vector.shape_cast %47 : vector<2x1xi1> to vector<2x1xi1>
    %49 = vector.broadcast %48 : vector<2x1xi1> to vector<2x8xi1>
    %50 = vector.broadcast %cst_19 : f32 to vector<2x8xf32>
    %51 = arith.select %49, %43, %50 : vector<2x8xi1>, vector<2x8xf32>
    %52 = arith.index_cast %c0_i32_12 : i32 to index
    %c0_20 = arith.constant 0 : index
    %c0_21 = arith.constant 0 : index
    %53 = vector.load %arg6[%52, %c0_20, %c0_21] : memref<8x2x8xf32, #tpu.memory_space<vmem>>, vector<1x2x8xf32>
    %54 = vector.shape_cast %53 : vector<1x2x8xf32> to vector<2x8xf32>
    %55 = vector.shape_cast %51 : vector<2x8xf32> to vector<1x2x8xf32>
    tpu.vector_store %arg6[%52, %c0_20, %c0_21], %55 {strides = array<i32>} : memref<8x2x8xf32, #tpu.memory_space<vmem>>, vector<1x2x8xf32>,
    %c1_i32 = arith.constant 1 : i32
    %56 = arith.index_cast %c1_i32 : i32 to index
    %c0_22 = arith.constant 0 : index
    %c0_23 = arith.constant 0 : index
    %57 = vector.load %arg1[%56, %c0_22, %c0_23] : memref<8x2x512xf32, #tpu.memory_space<vmem>>, vector<1x2x512xf32>
    %58 = vector.shape_cast %57 : vector<1x2x512xf32> to vector<2x512xf32>
    %59 = arith.truncf %39 : vector<2x128xf32> to vector<2x128xbf16>
    %cst_24 = arith.constant dense<0.000000e+00> : vector<2x512xf32>
    %60 = tpu.matmul %59, %3, %cst_24 {dimension_numbers = #tpu.dot_dimension_numbers<[1], [0], [0], [1], [0, 0, 1, 1], [], []>} : vector<2x128xbf16>, vector<128x512xbf16>, vector<2x512xf32> -> vector<2x512xf32>
    %61 = arith.addf %58, %60 : vector<2x512xf32>
    %62 = vector.extract_strided_slice %61 {offsets = [0, 0], sizes = [2, 128], strides = [1, 1]} : vector<2x512xf32> to vector<2x128xf32>
    %63 = arith.negf %62 : vector<2x128xf32>
    %64 = math.exp %63 : vector<2x128xf32>
    %cst_25 = arith.constant 1.000000e+00 : f32
    %65 = vector.broadcast %cst_25 : f32 to vector<2x128xf32>
    %66 = arith.addf %65, %64 : vector<2x128xf32>
    %67 = arith.divf %65, %66 : vector<2x128xf32>
    %68 = vector.extract_strided_slice %61 {offsets = [0, 128], sizes = [2, 128], strides = [1, 1]} : vector<2x512xf32> to vector<2x128xf32>
    %69 = arith.negf %68 : vector<2x128xf32>
    %70 = math.exp %69 : vector<2x128xf32>
    %cst_26 = arith.constant 1.000000e+00 : f32
    %71 = vector.broadcast %cst_26 : f32 to vector<2x128xf32>
    %72 = arith.addf %71, %70 : vector<2x128xf32>
    %73 = arith.divf %71, %72 : vector<2x128xf32>
    %74 = vector.extract_strided_slice %61 {offsets = [0, 256], sizes = [2, 128], strides = [1, 1]} : vector<2x512xf32> to vector<2x128xf32>
    %75 = math.tanh %74 : vector<2x128xf32>
    %76 = vector.extract_strided_slice %61 {offsets = [0, 384], sizes = [2, 128], strides = [1, 1]} : vector<2x512xf32> to vector<2x128xf32>
    %77 = arith.negf %76 : vector<2x128xf32>
    %78 = math.exp %77 : vector<2x128xf32>
    %cst_27 = arith.constant 1.000000e+00 : f32
    %79 = vector.broadcast %cst_27 : f32 to vector<2x128xf32>
    %80 = arith.addf %79, %78 : vector<2x128xf32>
    %81 = arith.divf %79, %80 : vector<2x128xf32>
    %82 = arith.mulf %73, %37 : vector<2x128xf32>
    %83 = arith.mulf %67, %75 : vector<2x128xf32>
    %84 = arith.addf %82, %83 : vector<2x128xf32>
    %85 = math.tanh %84 : vector<2x128xf32>
    %86 = arith.mulf %81, %85 : vector<2x128xf32>
    %87 = arith.truncf %86 : vector<2x128xf32> to vector<2x128xbf16>
    %cst_28 = arith.constant dense<0.000000e+00> : vector<2x8xf32>
    %88 = tpu.matmul %87, %4, %cst_28 {dimension_numbers = #tpu.dot_dimension_numbers<[1], [0], [0], [1], [0, 0, 1, 1], [], []>} : vector<2x128xbf16>, vector<128x8xbf16>, vector<2x8xf32> -> vector<2x8xf32>
    %89 = vector.broadcast %5 : vector<1x8xf32> to vector<2x8xf32>
    %90 = arith.addf %88, %89 : vector<2x8xf32>
    %c8_i32_29 = arith.constant 8 : i32
    %91 = arith.muli %arg0, %c8_i32_29 : i32
    %92 = arith.addi %91, %c1_i32 : i32
    %93 = vector.broadcast %92 : i32 to vector<2x1xi32>
    %94 = arith.cmpi slt, %93, %6 : vector<2x1xi32>
    %cst_30 = arith.constant 0.000000e+00 : f32
    %95 = vector.shape_cast %94 : vector<2x1xi1> to vector<2x1xi1>
    %96 = vector.broadcast %95 : vector<2x1xi1> to vector<2x8xi1>
    %97 = vector.broadcast %cst_30 : f32 to vector<2x8xf32>
    %98 = arith.select %96, %90, %97 : vector<2x8xi1>, vector<2x8xf32>
    %99 = arith.index_cast %c1_i32 : i32 to index
    %c0_31 = arith.constant 0 : index
    %c0_32 = arith.constant 0 : index
    %100 = vector.load %arg6[%99, %c0_31, %c0_32] : memref<8x2x8xf32, #tpu.memory_space<vmem>>, vector<1x2x8xf32>
    %101 = vector.shape_cast %100 : vector<1x2x8xf32> to vector<2x8xf32>
    %102 = vector.shape_cast %98 : vector<2x8xf32> to vector<1x2x8xf32>
    tpu.vector_store %arg6[%99, %c0_31, %c0_32], %102 {strides = array<i32>} : memref<8x2x8xf32, #tpu.memory_space<vmem>>, vector<1x2x8xf32>,
    %c2_i32 = arith.constant 2 : i32
    %103 = arith.index_cast %c2_i32 : i32 to index
    %c0_33 = arith.constant 0 : index
    %c0_34 = arith.constant 0 : index
    %104 = vector.load %arg1[%103, %c0_33, %c0_34] : memref<8x2x512xf32, #tpu.memory_space<vmem>>, vector<1x2x512xf32>
    %105 = vector.shape_cast %104 : vector<1x2x512xf32> to vector<2x512xf32>
    %106 = arith.truncf %86 : vector<2x128xf32> to vector<2x128xbf16>
    %cst_35 = arith.constant dense<0.000000e+00> : vector<2x512xf32>
    %107 = tpu.matmul %106, %3, %cst_35 {dimension_numbers = #tpu.dot_dimension_numbers<[1], [0], [0], [1], [0, 0, 1, 1], [], []>} : vector<2x128xbf16>, vector<128x512xbf16>, vector<2x512xf32> -> vector<2x512xf32>
    %108 = arith.addf %105, %107 : vector<2x512xf32>
    %109 = vector.extract_strided_slice %108 {offsets = [0, 0], sizes = [2, 128], strides = [1, 1]} : vector<2x512xf32> to vector<2x128xf32>
    %110 = arith.negf %109 : vector<2x128xf32>
    %111 = math.exp %110 : vector<2x128xf32>
    %cst_36 = arith.constant 1.000000e+00 : f32
    %112 = vector.broadcast %cst_36 : f32 to vector<2x128xf32>
    %113 = arith.addf %112, %111 : vector<2x128xf32>
    %114 = arith.divf %112, %113 : vector<2x128xf32>
    %115 = vector.extract_strided_slice %108 {offsets = [0, 128], sizes = [2, 128], strides = [1, 1]} : vector<2x512xf32> to vector<2x128xf32>
    %116 = arith.negf %115 : vector<2x128xf32>
    %117 = math.exp %116 : vector<2x128xf32>
    %cst_37 = arith.constant 1.000000e+00 : f32
    %118 = vector.broadcast %cst_37 : f32 to vector<2x128xf32>
    %119 = arith.addf %118, %117 : vector<2x128xf32>
    %120 = arith.divf %118, %119 : vector<2x128xf32>
    %121 = vector.extract_strided_slice %108 {offsets = [0, 256], sizes = [2, 128], strides = [1, 1]} : vector<2x512xf32> to vector<2x128xf32>
    %122 = math.tanh %121 : vector<2x128xf32>
    %123 = vector.extract_strided_slice %108 {offsets = [0, 384], sizes = [2, 128], strides = [1, 1]} : vector<2x512xf32> to vector<2x128xf32>
    %124 = arith.negf %123 : vector<2x128xf32>
    %125 = math.exp %124 : vector<2x128xf32>
    %cst_38 = arith.constant 1.000000e+00 : f32
    %126 = vector.broadcast %cst_38 : f32 to vector<2x128xf32>
    %127 = arith.addf %126, %125 : vector<2x128xf32>
    %128 = arith.divf %126, %127 : vector<2x128xf32>
    %129 = arith.mulf %120, %84 : vector<2x128xf32>
    %130 = arith.mulf %114, %122 : vector<2x128xf32>
    %131 = arith.addf %129, %130 : vector<2x128xf32>
    %132 = math.tanh %131 : vector<2x128xf32>
    %133 = arith.mulf %128, %132 : vector<2x128xf32>
    %134 = arith.truncf %133 : vector<2x128xf32> to vector<2x128xbf16>
    %cst_39 = arith.constant dense<0.000000e+00> : vector<2x8xf32>
    %135 = tpu.matmul %134, %4, %cst_39 {dimension_numbers = #tpu.dot_dimension_numbers<[1], [0], [0], [1], [0, 0, 1, 1], [], []>} : vector<2x128xbf16>, vector<128x8xbf16>, vector<2x8xf32> -> vector<2x8xf32>
    %136 = vector.broadcast %5 : vector<1x8xf32> to vector<2x8xf32>
    %137 = arith.addf %135, %136 : vector<2x8xf32>
    %c8_i32_40 = arith.constant 8 : i32
    %138 = arith.muli %arg0, %c8_i32_40 : i32
    %139 = arith.addi %138, %c2_i32 : i32
    %140 = vector.broadcast %139 : i32 to vector<2x1xi32>
    %141 = arith.cmpi slt, %140, %6 : vector<2x1xi32>
    %cst_41 = arith.constant 0.000000e+00 : f32
    %142 = vector.shape_cast %141 : vector<2x1xi1> to vector<2x1xi1>
    %143 = vector.broadcast %142 : vector<2x1xi1> to vector<2x8xi1>
    %144 = vector.broadcast %cst_41 : f32 to vector<2x8xf32>
    %145 = arith.select %143, %137, %144 : vector<2x8xi1>, vector<2x8xf32>
    %146 = arith.index_cast %c2_i32 : i32 to index
    %c0_42 = arith.constant 0 : index
    %c0_43 = arith.constant 0 : index
    %147 = vector.load %arg6[%146, %c0_42, %c0_43] : memref<8x2x8xf32, #tpu.memory_space<vmem>>, vector<1x2x8xf32>
    %148 = vector.shape_cast %147 : vector<1x2x8xf32> to vector<2x8xf32>
    %149 = vector.shape_cast %145 : vector<2x8xf32> to vector<1x2x8xf32>
    tpu.vector_store %arg6[%146, %c0_42, %c0_43], %149 {strides = array<i32>} : memref<8x2x8xf32, #tpu.memory_space<vmem>>, vector<1x2x8xf32>,
    %c3_i32 = arith.constant 3 : i32
    %150 = arith.index_cast %c3_i32 : i32 to index
    %c0_44 = arith.constant 0 : index
    %c0_45 = arith.constant 0 : index
    %151 = vector.load %arg1[%150, %c0_44, %c0_45] : memref<8x2x512xf32, #tpu.memory_space<vmem>>, vector<1x2x512xf32>
    %152 = vector.shape_cast %151 : vector<1x2x512xf32> to vector<2x512xf32>
    %153 = arith.truncf %133 : vector<2x128xf32> to vector<2x128xbf16>
    %cst_46 = arith.constant dense<0.000000e+00> : vector<2x512xf32>
    %154 = tpu.matmul %153, %3, %cst_46 {dimension_numbers = #tpu.dot_dimension_numbers<[1], [0], [0], [1], [0, 0, 1, 1], [], []>} : vector<2x128xbf16>, vector<128x512xbf16>, vector<2x512xf32> -> vector<2x512xf32>
    %155 = arith.addf %152, %154 : vector<2x512xf32>
    %156 = vector.extract_strided_slice %155 {offsets = [0, 0], sizes = [2, 128], strides = [1, 1]} : vector<2x512xf32> to vector<2x128xf32>
    %157 = arith.negf %156 : vector<2x128xf32>
    %158 = math.exp %157 : vector<2x128xf32>
    %cst_47 = arith.constant 1.000000e+00 : f32
    %159 = vector.broadcast %cst_47 : f32 to vector<2x128xf32>
    %160 = arith.addf %159, %158 : vector<2x128xf32>
    %161 = arith.divf %159, %160 : vector<2x128xf32>
    %162 = vector.extract_strided_slice %155 {offsets = [0, 128], sizes = [2, 128], strides = [1, 1]} : vector<2x512xf32> to vector<2x128xf32>
    %163 = arith.negf %162 : vector<2x128xf32>
    %164 = math.exp %163 : vector<2x128xf32>
    %cst_48 = arith.constant 1.000000e+00 : f32
    %165 = vector.broadcast %cst_48 : f32 to vector<2x128xf32>
    %166 = arith.addf %165, %164 : vector<2x128xf32>
    %167 = arith.divf %165, %166 : vector<2x128xf32>
    %168 = vector.extract_strided_slice %155 {offsets = [0, 256], sizes = [2, 128], strides = [1, 1]} : vector<2x512xf32> to vector<2x128xf32>
    %169 = math.tanh %168 : vector<2x128xf32>
    %170 = vector.extract_strided_slice %155 {offsets = [0, 384], sizes = [2, 128], strides = [1, 1]} : vector<2x512xf32> to vector<2x128xf32>
    %171 = arith.negf %170 : vector<2x128xf32>
    %172 = math.exp %171 : vector<2x128xf32>
    %cst_49 = arith.constant 1.000000e+00 : f32
    %173 = vector.broadcast %cst_49 : f32 to vector<2x128xf32>
    %174 = arith.addf %173, %172 : vector<2x128xf32>
    %175 = arith.divf %173, %174 : vector<2x128xf32>
    %176 = arith.mulf %167, %131 : vector<2x128xf32>
    %177 = arith.mulf %161, %169 : vector<2x128xf32>
    %178 = arith.addf %176, %177 : vector<2x128xf32>
    %179 = math.tanh %178 : vector<2x128xf32>
    %180 = arith.mulf %175, %179 : vector<2x128xf32>
    %181 = arith.truncf %180 : vector<2x128xf32> to vector<2x128xbf16>
    %cst_50 = arith.constant dense<0.000000e+00> : vector<2x8xf32>
    %182 = tpu.matmul %181, %4, %cst_50 {dimension_numbers = #tpu.dot_dimension_numbers<[1], [0], [0], [1], [0, 0, 1, 1], [], []>} : vector<2x128xbf16>, vector<128x8xbf16>, vector<2x8xf32> -> vector<2x8xf32>
    %183 = vector.broadcast %5 : vector<1x8xf32> to vector<2x8xf32>
    %184 = arith.addf %182, %183 : vector<2x8xf32>
    %c8_i32_51 = arith.constant 8 : i32
    %185 = arith.muli %arg0, %c8_i32_51 : i32
    %186 = arith.addi %185, %c3_i32 : i32
    %187 = vector.broadcast %186 : i32 to vector<2x1xi32>
    %188 = arith.cmpi slt, %187, %6 : vector<2x1xi32>
    %cst_52 = arith.constant 0.000000e+00 : f32
    %189 = vector.shape_cast %188 : vector<2x1xi1> to vector<2x1xi1>
    %190 = vector.broadcast %189 : vector<2x1xi1> to vector<2x8xi1>
    %191 = vector.broadcast %cst_52 : f32 to vector<2x8xf32>
    %192 = arith.select %190, %184, %191 : vector<2x8xi1>, vector<2x8xf32>
    %193 = arith.index_cast %c3_i32 : i32 to index
    %c0_53 = arith.constant 0 : index
    %c0_54 = arith.constant 0 : index
    %194 = vector.load %arg6[%193, %c0_53, %c0_54] : memref<8x2x8xf32, #tpu.memory_space<vmem>>, vector<1x2x8xf32>
    %195 = vector.shape_cast %194 : vector<1x2x8xf32> to vector<2x8xf32>
    %196 = vector.shape_cast %192 : vector<2x8xf32> to vector<1x2x8xf32>
    tpu.vector_store %arg6[%193, %c0_53, %c0_54], %196 {strides = array<i32>} : memref<8x2x8xf32, #tpu.memory_space<vmem>>, vector<1x2x8xf32>,
    %c4_i32 = arith.constant 4 : i32
    %197 = arith.index_cast %c4_i32 : i32 to index
    %c0_55 = arith.constant 0 : index
    %c0_56 = arith.constant 0 : index
    %198 = vector.load %arg1[%197, %c0_55, %c0_56] : memref<8x2x512xf32, #tpu.memory_space<vmem>>, vector<1x2x512xf32>
    %199 = vector.shape_cast %198 : vector<1x2x512xf32> to vector<2x512xf32>
    %200 = arith.truncf %180 : vector<2x128xf32> to vector<2x128xbf16>
    %cst_57 = arith.constant dense<0.000000e+00> : vector<2x512xf32>
    %201 = tpu.matmul %200, %3, %cst_57 {dimension_numbers = #tpu.dot_dimension_numbers<[1], [0], [0], [1], [0, 0, 1, 1], [], []>} : vector<2x128xbf16>, vector<128x512xbf16>, vector<2x512xf32> -> vector<2x512xf32>
    %202 = arith.addf %199, %201 : vector<2x512xf32>
    %203 = vector.extract_strided_slice %202 {offsets = [0, 0], sizes = [2, 128], strides = [1, 1]} : vector<2x512xf32> to vector<2x128xf32>
    %204 = arith.negf %203 : vector<2x128xf32>
    %205 = math.exp %204 : vector<2x128xf32>
    %cst_58 = arith.constant 1.000000e+00 : f32
    %206 = vector.broadcast %cst_58 : f32 to vector<2x128xf32>
    %207 = arith.addf %206, %205 : vector<2x128xf32>
    %208 = arith.divf %206, %207 : vector<2x128xf32>
    %209 = vector.extract_strided_slice %202 {offsets = [0, 128], sizes = [2, 128], strides = [1, 1]} : vector<2x512xf32> to vector<2x128xf32>
    %210 = arith.negf %209 : vector<2x128xf32>
    %211 = math.exp %210 : vector<2x128xf32>
    %cst_59 = arith.constant 1.000000e+00 : f32
    %212 = vector.broadcast %cst_59 : f32 to vector<2x128xf32>
    %213 = arith.addf %212, %211 : vector<2x128xf32>
    %214 = arith.divf %212, %213 : vector<2x128xf32>
    %215 = vector.extract_strided_slice %202 {offsets = [0, 256], sizes = [2, 128], strides = [1, 1]} : vector<2x512xf32> to vector<2x128xf32>
    %216 = math.tanh %215 : vector<2x128xf32>
    %217 = vector.extract_strided_slice %202 {offsets = [0, 384], sizes = [2, 128], strides = [1, 1]} : vector<2x512xf32> to vector<2x128xf32>
    %218 = arith.negf %217 : vector<2x128xf32>
    %219 = math.exp %218 : vector<2x128xf32>
    %cst_60 = arith.constant 1.000000e+00 : f32
    %220 = vector.broadcast %cst_60 : f32 to vector<2x128xf32>
    %221 = arith.addf %220, %219 : vector<2x128xf32>
    %222 = arith.divf %220, %221 : vector<2x128xf32>
    %223 = arith.mulf %214, %178 : vector<2x128xf32>
    %224 = arith.mulf %208, %216 : vector<2x128xf32>
    %225 = arith.addf %223, %224 : vector<2x128xf32>
    %226 = math.tanh %225 : vector<2x128xf32>
    %227 = arith.mulf %222, %226 : vector<2x128xf32>
    %228 = arith.truncf %227 : vector<2x128xf32> to vector<2x128xbf16>
    %cst_61 = arith.constant dense<0.000000e+00> : vector<2x8xf32>
    %229 = tpu.matmul %228, %4, %cst_61 {dimension_numbers = #tpu.dot_dimension_numbers<[1], [0], [0], [1], [0, 0, 1, 1], [], []>} : vector<2x128xbf16>, vector<128x8xbf16>, vector<2x8xf32> -> vector<2x8xf32>
    %230 = vector.broadcast %5 : vector<1x8xf32> to vector<2x8xf32>
    %231 = arith.addf %229, %230 : vector<2x8xf32>
    %c8_i32_62 = arith.constant 8 : i32
    %232 = arith.muli %arg0, %c8_i32_62 : i32
    %233 = arith.addi %232, %c4_i32 : i32
    %234 = vector.broadcast %233 : i32 to vector<2x1xi32>
    %235 = arith.cmpi slt, %234, %6 : vector<2x1xi32>
    %cst_63 = arith.constant 0.000000e+00 : f32
    %236 = vector.shape_cast %235 : vector<2x1xi1> to vector<2x1xi1>
    %237 = vector.broadcast %236 : vector<2x1xi1> to vector<2x8xi1>
    %238 = vector.broadcast %cst_63 : f32 to vector<2x8xf32>
    %239 = arith.select %237, %231, %238 : vector<2x8xi1>, vector<2x8xf32>
    %240 = arith.index_cast %c4_i32 : i32 to index
    %c0_64 = arith.constant 0 : index
    %c0_65 = arith.constant 0 : index
    %241 = vector.load %arg6[%240, %c0_64, %c0_65] : memref<8x2x8xf32, #tpu.memory_space<vmem>>, vector<1x2x8xf32>
    %242 = vector.shape_cast %241 : vector<1x2x8xf32> to vector<2x8xf32>
    %243 = vector.shape_cast %239 : vector<2x8xf32> to vector<1x2x8xf32>
    tpu.vector_store %arg6[%240, %c0_64, %c0_65], %243 {strides = array<i32>} : memref<8x2x8xf32, #tpu.memory_space<vmem>>, vector<1x2x8xf32>,
    %c5_i32 = arith.constant 5 : i32
    %244 = arith.index_cast %c5_i32 : i32 to index
    %c0_66 = arith.constant 0 : index
    %c0_67 = arith.constant 0 : index
    %245 = vector.load %arg1[%244, %c0_66, %c0_67] : memref<8x2x512xf32, #tpu.memory_space<vmem>>, vector<1x2x512xf32>
    %246 = vector.shape_cast %245 : vector<1x2x512xf32> to vector<2x512xf32>
    %247 = arith.truncf %227 : vector<2x128xf32> to vector<2x128xbf16>
    %cst_68 = arith.constant dense<0.000000e+00> : vector<2x512xf32>
    %248 = tpu.matmul %247, %3, %cst_68 {dimension_numbers = #tpu.dot_dimension_numbers<[1], [0], [0], [1], [0, 0, 1, 1], [], []>} : vector<2x128xbf16>, vector<128x512xbf16>, vector<2x512xf32> -> vector<2x512xf32>
    %249 = arith.addf %246, %248 : vector<2x512xf32>
    %250 = vector.extract_strided_slice %249 {offsets = [0, 0], sizes = [2, 128], strides = [1, 1]} : vector<2x512xf32> to vector<2x128xf32>
    %251 = arith.negf %250 : vector<2x128xf32>
    %252 = math.exp %251 : vector<2x128xf32>
    %cst_69 = arith.constant 1.000000e+00 : f32
    %253 = vector.broadcast %cst_69 : f32 to vector<2x128xf32>
    %254 = arith.addf %253, %252 : vector<2x128xf32>
    %255 = arith.divf %253, %254 : vector<2x128xf32>
    %256 = vector.extract_strided_slice %249 {offsets = [0, 128], sizes = [2, 128], strides = [1, 1]} : vector<2x512xf32> to vector<2x128xf32>
    %257 = arith.negf %256 : vector<2x128xf32>
    %258 = math.exp %257 : vector<2x128xf32>
    %cst_70 = arith.constant 1.000000e+00 : f32
    %259 = vector.broadcast %cst_70 : f32 to vector<2x128xf32>
    %260 = arith.addf %259, %258 : vector<2x128xf32>
    %261 = arith.divf %259, %260 : vector<2x128xf32>
    %262 = vector.extract_strided_slice %249 {offsets = [0, 256], sizes = [2, 128], strides = [1, 1]} : vector<2x512xf32> to vector<2x128xf32>
    %263 = math.tanh %262 : vector<2x128xf32>
    %264 = vector.extract_strided_slice %249 {offsets = [0, 384], sizes = [2, 128], strides = [1, 1]} : vector<2x512xf32> to vector<2x128xf32>
    %265 = arith.negf %264 : vector<2x128xf32>
    %266 = math.exp %265 : vector<2x128xf32>
    %cst_71 = arith.constant 1.000000e+00 : f32
    %267 = vector.broadcast %cst_71 : f32 to vector<2x128xf32>
    %268 = arith.addf %267, %266 : vector<2x128xf32>
    %269 = arith.divf %267, %268 : vector<2x128xf32>
    %270 = arith.mulf %261, %225 : vector<2x128xf32>
    %271 = arith.mulf %255, %263 : vector<2x128xf32>
    %272 = arith.addf %270, %271 : vector<2x128xf32>
    %273 = math.tanh %272 : vector<2x128xf32>
    %274 = arith.mulf %269, %273 : vector<2x128xf32>
    %275 = arith.truncf %274 : vector<2x128xf32> to vector<2x128xbf16>
    %cst_72 = arith.constant dense<0.000000e+00> : vector<2x8xf32>
    %276 = tpu.matmul %275, %4, %cst_72 {dimension_numbers = #tpu.dot_dimension_numbers<[1], [0], [0], [1], [0, 0, 1, 1], [], []>} : vector<2x128xbf16>, vector<128x8xbf16>, vector<2x8xf32> -> vector<2x8xf32>
    %277 = vector.broadcast %5 : vector<1x8xf32> to vector<2x8xf32>
    %278 = arith.addf %276, %277 : vector<2x8xf32>
    %c8_i32_73 = arith.constant 8 : i32
    %279 = arith.muli %arg0, %c8_i32_73 : i32
    %280 = arith.addi %279, %c5_i32 : i32
    %281 = vector.broadcast %280 : i32 to vector<2x1xi32>
    %282 = arith.cmpi slt, %281, %6 : vector<2x1xi32>
    %cst_74 = arith.constant 0.000000e+00 : f32
    %283 = vector.shape_cast %282 : vector<2x1xi1> to vector<2x1xi1>
    %284 = vector.broadcast %283 : vector<2x1xi1> to vector<2x8xi1>
    %285 = vector.broadcast %cst_74 : f32 to vector<2x8xf32>
    %286 = arith.select %284, %278, %285 : vector<2x8xi1>, vector<2x8xf32>
    %287 = arith.index_cast %c5_i32 : i32 to index
    %c0_75 = arith.constant 0 : index
    %c0_76 = arith.constant 0 : index
    %288 = vector.load %arg6[%287, %c0_75, %c0_76] : memref<8x2x8xf32, #tpu.memory_space<vmem>>, vector<1x2x8xf32>
    %289 = vector.shape_cast %288 : vector<1x2x8xf32> to vector<2x8xf32>
    %290 = vector.shape_cast %286 : vector<2x8xf32> to vector<1x2x8xf32>
    tpu.vector_store %arg6[%287, %c0_75, %c0_76], %290 {strides = array<i32>} : memref<8x2x8xf32, #tpu.memory_space<vmem>>, vector<1x2x8xf32>,
    %c6_i32 = arith.constant 6 : i32
    %291 = arith.index_cast %c6_i32 : i32 to index
    %c0_77 = arith.constant 0 : index
    %c0_78 = arith.constant 0 : index
    %292 = vector.load %arg1[%291, %c0_77, %c0_78] : memref<8x2x512xf32, #tpu.memory_space<vmem>>, vector<1x2x512xf32>
    %293 = vector.shape_cast %292 : vector<1x2x512xf32> to vector<2x512xf32>
    %294 = arith.truncf %274 : vector<2x128xf32> to vector<2x128xbf16>
    %cst_79 = arith.constant dense<0.000000e+00> : vector<2x512xf32>
    %295 = tpu.matmul %294, %3, %cst_79 {dimension_numbers = #tpu.dot_dimension_numbers<[1], [0], [0], [1], [0, 0, 1, 1], [], []>} : vector<2x128xbf16>, vector<128x512xbf16>, vector<2x512xf32> -> vector<2x512xf32>
    %296 = arith.addf %293, %295 : vector<2x512xf32>
    %297 = vector.extract_strided_slice %296 {offsets = [0, 0], sizes = [2, 128], strides = [1, 1]} : vector<2x512xf32> to vector<2x128xf32>
    %298 = arith.negf %297 : vector<2x128xf32>
    %299 = math.exp %298 : vector<2x128xf32>
    %cst_80 = arith.constant 1.000000e+00 : f32
    %300 = vector.broadcast %cst_80 : f32 to vector<2x128xf32>
    %301 = arith.addf %300, %299 : vector<2x128xf32>
    %302 = arith.divf %300, %301 : vector<2x128xf32>
    %303 = vector.extract_strided_slice %296 {offsets = [0, 128], sizes = [2, 128], strides = [1, 1]} : vector<2x512xf32> to vector<2x128xf32>
    %304 = arith.negf %303 : vector<2x128xf32>
    %305 = math.exp %304 : vector<2x128xf32>
    %cst_81 = arith.constant 1.000000e+00 : f32
    %306 = vector.broadcast %cst_81 : f32 to vector<2x128xf32>
    %307 = arith.addf %306, %305 : vector<2x128xf32>
    %308 = arith.divf %306, %307 : vector<2x128xf32>
    %309 = vector.extract_strided_slice %296 {offsets = [0, 256], sizes = [2, 128], strides = [1, 1]} : vector<2x512xf32> to vector<2x128xf32>
    %310 = math.tanh %309 : vector<2x128xf32>
    %311 = vector.extract_strided_slice %296 {offsets = [0, 384], sizes = [2, 128], strides = [1, 1]} : vector<2x512xf32> to vector<2x128xf32>
    %312 = arith.negf %311 : vector<2x128xf32>
    %313 = math.exp %312 : vector<2x128xf32>
    %cst_82 = arith.constant 1.000000e+00 : f32
    %314 = vector.broadcast %cst_82 : f32 to vector<2x128xf32>
    %315 = arith.addf %314, %313 : vector<2x128xf32>
    %316 = arith.divf %314, %315 : vector<2x128xf32>
    %317 = arith.mulf %308, %272 : vector<2x128xf32>
    %318 = arith.mulf %302, %310 : vector<2x128xf32>
    %319 = arith.addf %317, %318 : vector<2x128xf32>
    %320 = math.tanh %319 : vector<2x128xf32>
    %321 = arith.mulf %316, %320 : vector<2x128xf32>
    %322 = arith.truncf %321 : vector<2x128xf32> to vector<2x128xbf16>
    %cst_83 = arith.constant dense<0.000000e+00> : vector<2x8xf32>
    %323 = tpu.matmul %322, %4, %cst_83 {dimension_numbers = #tpu.dot_dimension_numbers<[1], [0], [0], [1], [0, 0, 1, 1], [], []>} : vector<2x128xbf16>, vector<128x8xbf16>, vector<2x8xf32> -> vector<2x8xf32>
    %324 = vector.broadcast %5 : vector<1x8xf32> to vector<2x8xf32>
    %325 = arith.addf %323, %324 : vector<2x8xf32>
    %c8_i32_84 = arith.constant 8 : i32
    %326 = arith.muli %arg0, %c8_i32_84 : i32
    %327 = arith.addi %326, %c6_i32 : i32
    %328 = vector.broadcast %327 : i32 to vector<2x1xi32>
    %329 = arith.cmpi slt, %328, %6 : vector<2x1xi32>
    %cst_85 = arith.constant 0.000000e+00 : f32
    %330 = vector.shape_cast %329 : vector<2x1xi1> to vector<2x1xi1>
    %331 = vector.broadcast %330 : vector<2x1xi1> to vector<2x8xi1>
    %332 = vector.broadcast %cst_85 : f32 to vector<2x8xf32>
    %333 = arith.select %331, %325, %332 : vector<2x8xi1>, vector<2x8xf32>
    %334 = arith.index_cast %c6_i32 : i32 to index
    %c0_86 = arith.constant 0 : index
    %c0_87 = arith.constant 0 : index
    %335 = vector.load %arg6[%334, %c0_86, %c0_87] : memref<8x2x8xf32, #tpu.memory_space<vmem>>, vector<1x2x8xf32>
    %336 = vector.shape_cast %335 : vector<1x2x8xf32> to vector<2x8xf32>
    %337 = vector.shape_cast %333 : vector<2x8xf32> to vector<1x2x8xf32>
    tpu.vector_store %arg6[%334, %c0_86, %c0_87], %337 {strides = array<i32>} : memref<8x2x8xf32, #tpu.memory_space<vmem>>, vector<1x2x8xf32>,
    %c7_i32 = arith.constant 7 : i32
    %338 = arith.index_cast %c7_i32 : i32 to index
    %c0_88 = arith.constant 0 : index
    %c0_89 = arith.constant 0 : index
    %339 = vector.load %arg1[%338, %c0_88, %c0_89] : memref<8x2x512xf32, #tpu.memory_space<vmem>>, vector<1x2x512xf32>
    %340 = vector.shape_cast %339 : vector<1x2x512xf32> to vector<2x512xf32>
    %341 = arith.truncf %321 : vector<2x128xf32> to vector<2x128xbf16>
    %cst_90 = arith.constant dense<0.000000e+00> : vector<2x512xf32>
    %342 = tpu.matmul %341, %3, %cst_90 {dimension_numbers = #tpu.dot_dimension_numbers<[1], [0], [0], [1], [0, 0, 1, 1], [], []>} : vector<2x128xbf16>, vector<128x512xbf16>, vector<2x512xf32> -> vector<2x512xf32>
    %343 = arith.addf %340, %342 : vector<2x512xf32>
    %344 = vector.extract_strided_slice %343 {offsets = [0, 0], sizes = [2, 128], strides = [1, 1]} : vector<2x512xf32> to vector<2x128xf32>
    %345 = arith.negf %344 : vector<2x128xf32>
    %346 = math.exp %345 : vector<2x128xf32>
    %cst_91 = arith.constant 1.000000e+00 : f32
    %347 = vector.broadcast %cst_91 : f32 to vector<2x128xf32>
    %348 = arith.addf %347, %346 : vector<2x128xf32>
    %349 = arith.divf %347, %348 : vector<2x128xf32>
    %350 = vector.extract_strided_slice %343 {offsets = [0, 128], sizes = [2, 128], strides = [1, 1]} : vector<2x512xf32> to vector<2x128xf32>
    %351 = arith.negf %350 : vector<2x128xf32>
    %352 = math.exp %351 : vector<2x128xf32>
    %cst_92 = arith.constant 1.000000e+00 : f32
    %353 = vector.broadcast %cst_92 : f32 to vector<2x128xf32>
    %354 = arith.addf %353, %352 : vector<2x128xf32>
    %355 = arith.divf %353, %354 : vector<2x128xf32>
    %356 = vector.extract_strided_slice %343 {offsets = [0, 256], sizes = [2, 128], strides = [1, 1]} : vector<2x512xf32> to vector<2x128xf32>
    %357 = math.tanh %356 : vector<2x128xf32>
    %358 = vector.extract_strided_slice %343 {offsets = [0, 384], sizes = [2, 128], strides = [1, 1]} : vector<2x512xf32> to vector<2x128xf32>
    %359 = arith.negf %358 : vector<2x128xf32>
    %360 = math.exp %359 : vector<2x128xf32>
    %cst_93 = arith.constant 1.000000e+00 : f32
    %361 = vector.broadcast %cst_93 : f32 to vector<2x128xf32>
    %362 = arith.addf %361, %360 : vector<2x128xf32>
    %363 = arith.divf %361, %362 : vector<2x128xf32>
    %364 = arith.mulf %355, %319 : vector<2x128xf32>
    %365 = arith.mulf %349, %357 : vector<2x128xf32>
    %366 = arith.addf %364, %365 : vector<2x128xf32>
    %367 = math.tanh %366 : vector<2x128xf32>
    %368 = arith.mulf %363, %367 : vector<2x128xf32>
    %369 = arith.truncf %368 : vector<2x128xf32> to vector<2x128xbf16>
    %cst_94 = arith.constant dense<0.000000e+00> : vector<2x8xf32>
    %370 = tpu.matmul %369, %4, %cst_94 {dimension_numbers = #tpu.dot_dimension_numbers<[1], [0], [0], [1], [0, 0, 1, 1], [], []>} : vector<2x128xbf16>, vector<128x8xbf16>, vector<2x8xf32> -> vector<2x8xf32>
    %371 = vector.broadcast %5 : vector<1x8xf32> to vector<2x8xf32>
    %372 = arith.addf %370, %371 : vector<2x8xf32>
    %c8_i32_95 = arith.constant 8 : i32
    %373 = arith.muli %arg0, %c8_i32_95 : i32
    %374 = arith.addi %373, %c7_i32 : i32
    %375 = vector.broadcast %374 : i32 to vector<2x1xi32>
    %376 = arith.cmpi slt, %375, %6 : vector<2x1xi32>
    %cst_96 = arith.constant 0.000000e+00 : f32
    %377 = vector.shape_cast %376 : vector<2x1xi1> to vector<2x1xi1>
    %378 = vector.broadcast %377 : vector<2x1xi1> to vector<2x8xi1>
    %379 = vector.broadcast %cst_96 : f32 to vector<2x8xf32>
    %380 = arith.select %378, %372, %379 : vector<2x8xi1>, vector<2x8xf32>
    %381 = arith.index_cast %c7_i32 : i32 to index
    %c0_97 = arith.constant 0 : index
    %c0_98 = arith.constant 0 : index
    %382 = vector.load %arg6[%381, %c0_97, %c0_98] : memref<8x2x8xf32, #tpu.memory_space<vmem>>, vector<1x2x8xf32>
    %383 = vector.shape_cast %382 : vector<1x2x8xf32> to vector<2x8xf32>
    %384 = vector.shape_cast %380 : vector<2x8xf32> to vector<1x2x8xf32>
    tpu.vector_store %arg6[%381, %c0_97, %c0_98], %384 {strides = array<i32>} : memref<8x2x8xf32, #tpu.memory_space<vmem>>, vector<1x2x8xf32>,
    %c8_i32_99 = arith.constant 8 : i32
    %c0_100 = arith.constant 0 : index
    %c0_101 = arith.constant 0 : index
    %385 = vector.load %arg7[%c0_100, %c0_101] : memref<2x128xf32, #tpu.memory_space<vmem>>, vector<2x128xf32>
    tpu.vector_store %arg7[%c0_100, %c0_101], %368 {strides = array<i32>} : memref<2x128xf32, #tpu.memory_space<vmem>>, vector<2x128xf32>,
    %c0_102 = arith.constant 0 : index
    %c0_103 = arith.constant 0 : index
    %386 = vector.load %arg8[%c0_102, %c0_103] : memref<2x128xf32, #tpu.memory_space<vmem>>, vector<2x128xf32>
    tpu.vector_store %arg8[%c0_102, %c0_103], %366 {strides = array<i32>} : memref<2x128xf32, #tpu.memory_space<vmem>>, vector<2x128xf32>,
    return
  }
  func.func @transform_0(%arg0: i32) -> (i32, i32, i32) {
    %c0_i32 = arith.constant 0 : i32
    %c0_i32_0 = arith.constant 0 : i32
    %c0_i32_1 = arith.constant 0 : i32
    return %arg0, %c0_i32, %c0_i32_0 : i32, i32, i32
  }
  func.func @transform_1(%arg0: i32) -> (i32, i32) {
    %c0_i32 = arith.constant 0 : i32
    %c0_i32_0 = arith.constant 0 : i32
    %c0_i32_1 = arith.constant 0 : i32
    return %c0_i32, %c0_i32_0 : i32, i32
  }
  func.func @transform_2(%arg0: i32) -> (i32, i32) {
    %c0_i32 = arith.constant 0 : i32
    %c0_i32_0 = arith.constant 0 : i32
    %c0_i32_1 = arith.constant 0 : i32
    return %c0_i32, %c0_i32_0 : i32, i32
  }
  func.func @transform_3(%arg0: i32) -> (i32, i32) {
    %c0_i32 = arith.constant 0 : i32
    %c0_i32_0 = arith.constant 0 : i32
    %c0_i32_1 = arith.constant 0 : i32
    return %c0_i32, %c0_i32_0 : i32, i32
  }
  func.func @transform_4(%arg0: i32) -> (i32, i32) {
    %c0_i32 = arith.constant 0 : i32
    %c0_i32_0 = arith.constant 0 : i32
    %c0_i32_1 = arith.constant 0 : i32
    return %c0_i32, %c0_i32_0 : i32, i32
  }
  func.func @transform_5(%arg0: i32) -> (i32, i32, i32) {
    %c0_i32 = arith.constant 0 : i32
    %c0_i32_0 = arith.constant 0 : i32
    %c0_i32_1 = arith.constant 0 : i32
    return %arg0, %c0_i32, %c0_i32_0 : i32, i32, i32
  }
}

module attributes {stable_mosaic.version = 11 : i64} {
  func.func @_matmul_bias_kernel(%arg0: i32, %arg1: memref<16x32xbf16, #tpu.memory_space<vmem>>, %arg2: memref<32x512xbf16, #tpu.memory_space<vmem>>, %arg3: memref<1x512xf32, #tpu.memory_space<vmem>>, %arg4: memref<16x512xf32, #tpu.memory_space<vmem>>) attributes {dimension_semantics = [#tpu.dimension_semantics<parallel>], iteration_bounds = array<i64: 1>, scalar_prefetch = 0 : i64, scratch_operands = 0 : i64, tpu.core_type = #tpu.core_type<tc>, window_params = [{transform_indices = @transform_0, window_bounds = array<i64: 16, 32>}, {pipeline_mode = #tpu.pipeline_mode<synchronous>, transform_indices = @transform_1, window_bounds = array<i64: 32, 512>}, {pipeline_mode = #tpu.pipeline_mode<synchronous>, transform_indices = @transform_2, window_bounds = array<i64: 1, 512>}, {transform_indices = @transform_3, window_bounds = array<i64: 16, 512>}]} {
    %c0 = arith.constant 0 : index
    %c0_0 = arith.constant 0 : index
    %0 = vector.load %arg1[%c0, %c0_0] : memref<16x32xbf16, #tpu.memory_space<vmem>>, vector<16x32xbf16>
    %c0_1 = arith.constant 0 : index
    %c0_2 = arith.constant 0 : index
    %1 = vector.load %arg2[%c0_1, %c0_2] : memref<32x512xbf16, #tpu.memory_space<vmem>>, vector<32x512xbf16>
    %cst = arith.constant dense<0.000000e+00> : vector<16x512xf32>
    %2 = tpu.matmul %0, %1, %cst {dimension_numbers = #tpu.dot_dimension_numbers<[1], [0], [0], [1], [0, 0, 1, 1], [], []>} : vector<16x32xbf16>, vector<32x512xbf16>, vector<16x512xf32> -> vector<16x512xf32>
    %c0_3 = arith.constant 0 : index
    %c0_4 = arith.constant 0 : index
    %3 = vector.load %arg3[%c0_3, %c0_4] : memref<1x512xf32, #tpu.memory_space<vmem>>, vector<1x512xf32>
    %4 = vector.broadcast %3 : vector<1x512xf32> to vector<16x512xf32>
    %5 = arith.addf %2, %4 : vector<16x512xf32>
    %c0_5 = arith.constant 0 : index
    %c0_6 = arith.constant 0 : index
    %6 = vector.load %arg4[%c0_5, %c0_6] : memref<16x512xf32, #tpu.memory_space<vmem>>, vector<16x512xf32>
    tpu.vector_store %arg4[%c0_5, %c0_6], %5 {strides = array<i32>} : memref<16x512xf32, #tpu.memory_space<vmem>>, vector<16x512xf32>,
    return
  }
  func.func @transform_0(%arg0: i32) -> (i32, i32) {
    %c0_i32 = arith.constant 0 : i32
    %c0_i32_0 = arith.constant 0 : i32
    return %arg0, %c0_i32 : i32, i32
  }
  func.func @transform_1(%arg0: i32) -> (i32, i32) {
    %c0_i32 = arith.constant 0 : i32
    %c0_i32_0 = arith.constant 0 : i32
    %c0_i32_1 = arith.constant 0 : i32
    return %c0_i32, %c0_i32_0 : i32, i32
  }
  func.func @transform_2(%arg0: i32) -> (i32, i32) {
    %c0_i32 = arith.constant 0 : i32
    %c0_i32_0 = arith.constant 0 : i32
    %c0_i32_1 = arith.constant 0 : i32
    return %c0_i32, %c0_i32_0 : i32, i32
  }
  func.func @transform_3(%arg0: i32) -> (i32, i32) {
    %c0_i32 = arith.constant 0 : i32
    %c0_i32_0 = arith.constant 0 : i32
    return %arg0, %c0_i32 : i32, i32
  }
}

module attributes {stable_mosaic.version = 11 : i64} {
  func.func @_crf_fwd_kernel(%arg0: i32, %arg1: memref<8x2x8xf32, #tpu.memory_space<vmem>>, %arg2: memref<8x8xf32, #tpu.memory_space<vmem>>, %arg3: memref<2x1xi32, #tpu.memory_space<vmem>>, %arg4: memref<2x1xf32, #tpu.memory_space<vmem>>, %arg5: memref<2x8xf32, #tpu.memory_space<vmem>>) attributes {dimension_semantics = [#tpu.dimension_semantics<arbitrary>], iteration_bounds = array<i64: 1>, scalar_prefetch = 0 : i64, scratch_operands = 1 : i64, tpu.core_type = #tpu.core_type<tc>, window_params = [{transform_indices = @transform_0, window_bounds = array<i64: 8, 2, 8>}, {pipeline_mode = #tpu.pipeline_mode<synchronous>, transform_indices = @transform_1, window_bounds = array<i64: 8, 8>}, {pipeline_mode = #tpu.pipeline_mode<synchronous>, transform_indices = @transform_2, window_bounds = array<i64: 2, 1>}, {pipeline_mode = #tpu.pipeline_mode<synchronous>, transform_indices = @transform_3, window_bounds = array<i64: 2, 1>}]} {
    %c0_i32 = arith.constant 0 : i32
    %0 = arith.cmpi eq, %arg0, %c0_i32 : i32
    %1 = arith.extui %0 : i1 to i32
    %c0_i32_0 = arith.constant 0 : i32
    %2 = arith.cmpi ne, %1, %c0_i32_0 : i32
    scf.if %2 {
      %218 = tpu.iota {dimensions = array<i32: 1>} : vector<2x8xi32>
      %c1_i32_50 = arith.constant 1 : i32
      %219 = vector.broadcast %c1_i32_50 : i32 to vector<2x8xi32>
      %220 = arith.cmpi eq, %218, %219 : vector<2x8xi32>
      %cst_51 = arith.constant 0.000000e+00 : f32
      %cst_52 = arith.constant -1.000000e+04 : f32
      %221 = vector.broadcast %cst_51 : f32 to vector<2x8xf32>
      %222 = vector.broadcast %cst_52 : f32 to vector<2x8xf32>
      %223 = arith.select %220, %221, %222 : vector<2x8xi1>, vector<2x8xf32>
      %c0_53 = arith.constant 0 : index
      %c0_54 = arith.constant 0 : index
      %224 = vector.load %arg5[%c0_53, %c0_54] : memref<2x8xf32, #tpu.memory_space<vmem>>, vector<2x8xf32>
      tpu.vector_store %arg5[%c0_53, %c0_54], %223 {strides = array<i32>} : memref<2x8xf32, #tpu.memory_space<vmem>>, vector<2x8xf32>,
    } else {
    }
    %c0 = arith.constant 0 : index
    %c0_1 = arith.constant 0 : index
    %3 = vector.load %arg2[%c0, %c0_1] : memref<8x8xf32, #tpu.memory_space<vmem>>, vector<8x8xf32>
    %c0_2 = arith.constant 0 : index
    %c0_3 = arith.constant 0 : index
    %4 = vector.load %arg3[%c0_2, %c0_3] : memref<2x1xi32, #tpu.memory_space<vmem>>, vector<2x1xi32>
    %c0_4 = arith.constant 0 : index
    %c0_5 = arith.constant 0 : index
    %5 = vector.load %arg5[%c0_4, %c0_5] : memref<2x8xf32, #tpu.memory_space<vmem>>, vector<2x8xf32>
    %c0_i32_6 = arith.constant 0 : i32
    %6 = arith.index_cast %c0_i32_6 : i32 to index
    %c0_7 = arith.constant 0 : index
    %c0_8 = arith.constant 0 : index
    %7 = vector.load %arg1[%6, %c0_7, %c0_8] : memref<8x2x8xf32, #tpu.memory_space<vmem>>, vector<1x2x8xf32>
    %8 = vector.shape_cast %7 : vector<1x2x8xf32> to vector<2x8xf32>
    %9 = vector.shape_cast %5 : vector<2x8xf32> to vector<2x1x8xf32>
    %10 = vector.shape_cast %8 : vector<2x8xf32> to vector<2x8x1xf32>
    %11 = vector.broadcast %9 : vector<2x1x8xf32> to vector<2x8x8xf32>
    %12 = vector.broadcast %10 : vector<2x8x1xf32> to vector<2x8x8xf32>
    %13 = arith.addf %11, %12 : vector<2x8x8xf32>
    %14 = vector.shape_cast %3 : vector<8x8xf32> to vector<1x8x8xf32>
    %15 = vector.broadcast %14 : vector<1x8x8xf32> to vector<2x8x8xf32>
    %16 = arith.addf %13, %15 : vector<2x8x8xf32>
    %cst = arith.constant dense<0xFF800000> : vector<2x8xf32>
    %17 = vector.multi_reduction <maximumf>, %16, %cst [2] : vector<2x8x8xf32> to vector<2x8xf32>
    %18 = vector.shape_cast %17 : vector<2x8xf32> to vector<2x8x1xf32>
    %19 = vector.broadcast %18 : vector<2x8x1xf32> to vector<2x8x8xf32>
    %20 = arith.subf %16, %19 : vector<2x8x8xf32>
    %21 = math.exp %20 : vector<2x8x8xf32>
    %cst_9 = arith.constant dense<0.000000e+00> : vector<2x8xf32>
    %22 = vector.multi_reduction <add>, %21, %cst_9 [2] : vector<2x8x8xf32> to vector<2x8xf32>
    %23 = math.log %22 : vector<2x8xf32>
    %24 = arith.addf %17, %23 : vector<2x8xf32>
    %c8_i32 = arith.constant 8 : i32
    %25 = arith.muli %arg0, %c8_i32 : i32
    %26 = arith.addi %25, %c0_i32_6 : i32
    %27 = vector.broadcast %26 : i32 to vector<2x1xi32>
    %28 = arith.cmpi slt, %27, %4 : vector<2x1xi32>
    %29 = vector.shape_cast %28 : vector<2x1xi1> to vector<2x1xi1>
    %30 = vector.broadcast %29 : vector<2x1xi1> to vector<2x8xi1>
    %31 = arith.select %30, %24, %5 : vector<2x8xi1>, vector<2x8xf32>
    %c1_i32 = arith.constant 1 : i32
    %32 = arith.index_cast %c1_i32 : i32 to index
    %c0_10 = arith.constant 0 : index
    %c0_11 = arith.constant 0 : index
    %33 = vector.load %arg1[%32, %c0_10, %c0_11] : memref<8x2x8xf32, #tpu.memory_space<vmem>>, vector<1x2x8xf32>
    %34 = vector.shape_cast %33 : vector<1x2x8xf32> to vector<2x8xf32>
    %35 = vector.shape_cast %31 : vector<2x8xf32> to vector<2x1x8xf32>
    %36 = vector.shape_cast %34 : vector<2x8xf32> to vector<2x8x1xf32>
    %37 = vector.broadcast %35 : vector<2x1x8xf32> to vector<2x8x8xf32>
    %38 = vector.broadcast %36 : vector<2x8x1xf32> to vector<2x8x8xf32>
    %39 = arith.addf %37, %38 : vector<2x8x8xf32>
    %40 = vector.shape_cast %3 : vector<8x8xf32> to vector<1x8x8xf32>
    %41 = vector.broadcast %40 : vector<1x8x8xf32> to vector<2x8x8xf32>
    %42 = arith.addf %39, %41 : vector<2x8x8xf32>
    %cst_12 = arith.constant dense<0xFF800000> : vector<2x8xf32>
    %43 = vector.multi_reduction <maximumf>, %42, %cst_12 [2] : vector<2x8x8xf32> to vector<2x8xf32>
    %44 = vector.shape_cast %43 : vector<2x8xf32> to vector<2x8x1xf32>
    %45 = vector.broadcast %44 : vector<2x8x1xf32> to vector<2x8x8xf32>
    %46 = arith.subf %42, %45 : vector<2x8x8xf32>
    %47 = math.exp %46 : vector<2x8x8xf32>
    %cst_13 = arith.constant dense<0.000000e+00> : vector<2x8xf32>
    %48 = vector.multi_reduction <add>, %47, %cst_13 [2] : vector<2x8x8xf32> to vector<2x8xf32>
    %49 = math.log %48 : vector<2x8xf32>
    %50 = arith.addf %43, %49 : vector<2x8xf32>
    %c8_i32_14 = arith.constant 8 : i32
    %51 = arith.muli %arg0, %c8_i32_14 : i32
    %52 = arith.addi %51, %c1_i32 : i32
    %53 = vector.broadcast %52 : i32 to vector<2x1xi32>
    %54 = arith.cmpi slt, %53, %4 : vector<2x1xi32>
    %55 = vector.shape_cast %54 : vector<2x1xi1> to vector<2x1xi1>
    %56 = vector.broadcast %55 : vector<2x1xi1> to vector<2x8xi1>
    %57 = arith.select %56, %50, %31 : vector<2x8xi1>, vector<2x8xf32>
    %c2_i32 = arith.constant 2 : i32
    %58 = arith.index_cast %c2_i32 : i32 to index
    %c0_15 = arith.constant 0 : index
    %c0_16 = arith.constant 0 : index
    %59 = vector.load %arg1[%58, %c0_15, %c0_16] : memref<8x2x8xf32, #tpu.memory_space<vmem>>, vector<1x2x8xf32>
    %60 = vector.shape_cast %59 : vector<1x2x8xf32> to vector<2x8xf32>
    %61 = vector.shape_cast %57 : vector<2x8xf32> to vector<2x1x8xf32>
    %62 = vector.shape_cast %60 : vector<2x8xf32> to vector<2x8x1xf32>
    %63 = vector.broadcast %61 : vector<2x1x8xf32> to vector<2x8x8xf32>
    %64 = vector.broadcast %62 : vector<2x8x1xf32> to vector<2x8x8xf32>
    %65 = arith.addf %63, %64 : vector<2x8x8xf32>
    %66 = vector.shape_cast %3 : vector<8x8xf32> to vector<1x8x8xf32>
    %67 = vector.broadcast %66 : vector<1x8x8xf32> to vector<2x8x8xf32>
    %68 = arith.addf %65, %67 : vector<2x8x8xf32>
    %cst_17 = arith.constant dense<0xFF800000> : vector<2x8xf32>
    %69 = vector.multi_reduction <maximumf>, %68, %cst_17 [2] : vector<2x8x8xf32> to vector<2x8xf32>
    %70 = vector.shape_cast %69 : vector<2x8xf32> to vector<2x8x1xf32>
    %71 = vector.broadcast %70 : vector<2x8x1xf32> to vector<2x8x8xf32>
    %72 = arith.subf %68, %71 : vector<2x8x8xf32>
    %73 = math.exp %72 : vector<2x8x8xf32>
    %cst_18 = arith.constant dense<0.000000e+00> : vector<2x8xf32>
    %74 = vector.multi_reduction <add>, %73, %cst_18 [2] : vector<2x8x8xf32> to vector<2x8xf32>
    %75 = math.log %74 : vector<2x8xf32>
    %76 = arith.addf %69, %75 : vector<2x8xf32>
    %c8_i32_19 = arith.constant 8 : i32
    %77 = arith.muli %arg0, %c8_i32_19 : i32
    %78 = arith.addi %77, %c2_i32 : i32
    %79 = vector.broadcast %78 : i32 to vector<2x1xi32>
    %80 = arith.cmpi slt, %79, %4 : vector<2x1xi32>
    %81 = vector.shape_cast %80 : vector<2x1xi1> to vector<2x1xi1>
    %82 = vector.broadcast %81 : vector<2x1xi1> to vector<2x8xi1>
    %83 = arith.select %82, %76, %57 : vector<2x8xi1>, vector<2x8xf32>
    %c3_i32 = arith.constant 3 : i32
    %84 = arith.index_cast %c3_i32 : i32 to index
    %c0_20 = arith.constant 0 : index
    %c0_21 = arith.constant 0 : index
    %85 = vector.load %arg1[%84, %c0_20, %c0_21] : memref<8x2x8xf32, #tpu.memory_space<vmem>>, vector<1x2x8xf32>
    %86 = vector.shape_cast %85 : vector<1x2x8xf32> to vector<2x8xf32>
    %87 = vector.shape_cast %83 : vector<2x8xf32> to vector<2x1x8xf32>
    %88 = vector.shape_cast %86 : vector<2x8xf32> to vector<2x8x1xf32>
    %89 = vector.broadcast %87 : vector<2x1x8xf32> to vector<2x8x8xf32>
    %90 = vector.broadcast %88 : vector<2x8x1xf32> to vector<2x8x8xf32>
    %91 = arith.addf %89, %90 : vector<2x8x8xf32>
    %92 = vector.shape_cast %3 : vector<8x8xf32> to vector<1x8x8xf32>
    %93 = vector.broadcast %92 : vector<1x8x8xf32> to vector<2x8x8xf32>
    %94 = arith.addf %91, %93 : vector<2x8x8xf32>
    %cst_22 = arith.constant dense<0xFF800000> : vector<2x8xf32>
    %95 = vector.multi_reduction <maximumf>, %94, %cst_22 [2] : vector<2x8x8xf32> to vector<2x8xf32>
    %96 = vector.shape_cast %95 : vector<2x8xf32> to vector<2x8x1xf32>
    %97 = vector.broadcast %96 : vector<2x8x1xf32> to vector<2x8x8xf32>
    %98 = arith.subf %94, %97 : vector<2x8x8xf32>
    %99 = math.exp %98 : vector<2x8x8xf32>
    %cst_23 = arith.constant dense<0.000000e+00> : vector<2x8xf32>
    %100 = vector.multi_reduction <add>, %99, %cst_23 [2] : vector<2x8x8xf32> to vector<2x8xf32>
    %101 = math.log %100 : vector<2x8xf32>
    %102 = arith.addf %95, %101 : vector<2x8xf32>
    %c8_i32_24 = arith.constant 8 : i32
    %103 = arith.muli %arg0, %c8_i32_24 : i32
    %104 = arith.addi %103, %c3_i32 : i32
    %105 = vector.broadcast %104 : i32 to vector<2x1xi32>
    %106 = arith.cmpi slt, %105, %4 : vector<2x1xi32>
    %107 = vector.shape_cast %106 : vector<2x1xi1> to vector<2x1xi1>
    %108 = vector.broadcast %107 : vector<2x1xi1> to vector<2x8xi1>
    %109 = arith.select %108, %102, %83 : vector<2x8xi1>, vector<2x8xf32>
    %c4_i32 = arith.constant 4 : i32
    %110 = arith.index_cast %c4_i32 : i32 to index
    %c0_25 = arith.constant 0 : index
    %c0_26 = arith.constant 0 : index
    %111 = vector.load %arg1[%110, %c0_25, %c0_26] : memref<8x2x8xf32, #tpu.memory_space<vmem>>, vector<1x2x8xf32>
    %112 = vector.shape_cast %111 : vector<1x2x8xf32> to vector<2x8xf32>
    %113 = vector.shape_cast %109 : vector<2x8xf32> to vector<2x1x8xf32>
    %114 = vector.shape_cast %112 : vector<2x8xf32> to vector<2x8x1xf32>
    %115 = vector.broadcast %113 : vector<2x1x8xf32> to vector<2x8x8xf32>
    %116 = vector.broadcast %114 : vector<2x8x1xf32> to vector<2x8x8xf32>
    %117 = arith.addf %115, %116 : vector<2x8x8xf32>
    %118 = vector.shape_cast %3 : vector<8x8xf32> to vector<1x8x8xf32>
    %119 = vector.broadcast %118 : vector<1x8x8xf32> to vector<2x8x8xf32>
    %120 = arith.addf %117, %119 : vector<2x8x8xf32>
    %cst_27 = arith.constant dense<0xFF800000> : vector<2x8xf32>
    %121 = vector.multi_reduction <maximumf>, %120, %cst_27 [2] : vector<2x8x8xf32> to vector<2x8xf32>
    %122 = vector.shape_cast %121 : vector<2x8xf32> to vector<2x8x1xf32>
    %123 = vector.broadcast %122 : vector<2x8x1xf32> to vector<2x8x8xf32>
    %124 = arith.subf %120, %123 : vector<2x8x8xf32>
    %125 = math.exp %124 : vector<2x8x8xf32>
    %cst_28 = arith.constant dense<0.000000e+00> : vector<2x8xf32>
    %126 = vector.multi_reduction <add>, %125, %cst_28 [2] : vector<2x8x8xf32> to vector<2x8xf32>
    %127 = math.log %126 : vector<2x8xf32>
    %128 = arith.addf %121, %127 : vector<2x8xf32>
    %c8_i32_29 = arith.constant 8 : i32
    %129 = arith.muli %arg0, %c8_i32_29 : i32
    %130 = arith.addi %129, %c4_i32 : i32
    %131 = vector.broadcast %130 : i32 to vector<2x1xi32>
    %132 = arith.cmpi slt, %131, %4 : vector<2x1xi32>
    %133 = vector.shape_cast %132 : vector<2x1xi1> to vector<2x1xi1>
    %134 = vector.broadcast %133 : vector<2x1xi1> to vector<2x8xi1>
    %135 = arith.select %134, %128, %109 : vector<2x8xi1>, vector<2x8xf32>
    %c5_i32 = arith.constant 5 : i32
    %136 = arith.index_cast %c5_i32 : i32 to index
    %c0_30 = arith.constant 0 : index
    %c0_31 = arith.constant 0 : index
    %137 = vector.load %arg1[%136, %c0_30, %c0_31] : memref<8x2x8xf32, #tpu.memory_space<vmem>>, vector<1x2x8xf32>
    %138 = vector.shape_cast %137 : vector<1x2x8xf32> to vector<2x8xf32>
    %139 = vector.shape_cast %135 : vector<2x8xf32> to vector<2x1x8xf32>
    %140 = vector.shape_cast %138 : vector<2x8xf32> to vector<2x8x1xf32>
    %141 = vector.broadcast %139 : vector<2x1x8xf32> to vector<2x8x8xf32>
    %142 = vector.broadcast %140 : vector<2x8x1xf32> to vector<2x8x8xf32>
    %143 = arith.addf %141, %142 : vector<2x8x8xf32>
    %144 = vector.shape_cast %3 : vector<8x8xf32> to vector<1x8x8xf32>
    %145 = vector.broadcast %144 : vector<1x8x8xf32> to vector<2x8x8xf32>
    %146 = arith.addf %143, %145 : vector<2x8x8xf32>
    %cst_32 = arith.constant dense<0xFF800000> : vector<2x8xf32>
    %147 = vector.multi_reduction <maximumf>, %146, %cst_32 [2] : vector<2x8x8xf32> to vector<2x8xf32>
    %148 = vector.shape_cast %147 : vector<2x8xf32> to vector<2x8x1xf32>
    %149 = vector.broadcast %148 : vector<2x8x1xf32> to vector<2x8x8xf32>
    %150 = arith.subf %146, %149 : vector<2x8x8xf32>
    %151 = math.exp %150 : vector<2x8x8xf32>
    %cst_33 = arith.constant dense<0.000000e+00> : vector<2x8xf32>
    %152 = vector.multi_reduction <add>, %151, %cst_33 [2] : vector<2x8x8xf32> to vector<2x8xf32>
    %153 = math.log %152 : vector<2x8xf32>
    %154 = arith.addf %147, %153 : vector<2x8xf32>
    %c8_i32_34 = arith.constant 8 : i32
    %155 = arith.muli %arg0, %c8_i32_34 : i32
    %156 = arith.addi %155, %c5_i32 : i32
    %157 = vector.broadcast %156 : i32 to vector<2x1xi32>
    %158 = arith.cmpi slt, %157, %4 : vector<2x1xi32>
    %159 = vector.shape_cast %158 : vector<2x1xi1> to vector<2x1xi1>
    %160 = vector.broadcast %159 : vector<2x1xi1> to vector<2x8xi1>
    %161 = arith.select %160, %154, %135 : vector<2x8xi1>, vector<2x8xf32>
    %c6_i32 = arith.constant 6 : i32
    %162 = arith.index_cast %c6_i32 : i32 to index
    %c0_35 = arith.constant 0 : index
    %c0_36 = arith.constant 0 : index
    %163 = vector.load %arg1[%162, %c0_35, %c0_36] : memref<8x2x8xf32, #tpu.memory_space<vmem>>, vector<1x2x8xf32>
    %164 = vector.shape_cast %163 : vector<1x2x8xf32> to vector<2x8xf32>
    %165 = vector.shape_cast %161 : vector<2x8xf32> to vector<2x1x8xf32>
    %166 = vector.shape_cast %164 : vector<2x8xf32> to vector<2x8x1xf32>
    %167 = vector.broadcast %165 : vector<2x1x8xf32> to vector<2x8x8xf32>
    %168 = vector.broadcast %166 : vector<2x8x1xf32> to vector<2x8x8xf32>
    %169 = arith.addf %167, %168 : vector<2x8x8xf32>
    %170 = vector.shape_cast %3 : vector<8x8xf32> to vector<1x8x8xf32>
    %171 = vector.broadcast %170 : vector<1x8x8xf32> to vector<2x8x8xf32>
    %172 = arith.addf %169, %171 : vector<2x8x8xf32>
    %cst_37 = arith.constant dense<0xFF800000> : vector<2x8xf32>
    %173 = vector.multi_reduction <maximumf>, %172, %cst_37 [2] : vector<2x8x8xf32> to vector<2x8xf32>
    %174 = vector.shape_cast %173 : vector<2x8xf32> to vector<2x8x1xf32>
    %175 = vector.broadcast %174 : vector<2x8x1xf32> to vector<2x8x8xf32>
    %176 = arith.subf %172, %175 : vector<2x8x8xf32>
    %177 = math.exp %176 : vector<2x8x8xf32>
    %cst_38 = arith.constant dense<0.000000e+00> : vector<2x8xf32>
    %178 = vector.multi_reduction <add>, %177, %cst_38 [2] : vector<2x8x8xf32> to vector<2x8xf32>
    %179 = math.log %178 : vector<2x8xf32>
    %180 = arith.addf %173, %179 : vector<2x8xf32>
    %c8_i32_39 = arith.constant 8 : i32
    %181 = arith.muli %arg0, %c8_i32_39 : i32
    %182 = arith.addi %181, %c6_i32 : i32
    %183 = vector.broadcast %182 : i32 to vector<2x1xi32>
    %184 = arith.cmpi slt, %183, %4 : vector<2x1xi32>
    %185 = vector.shape_cast %184 : vector<2x1xi1> to vector<2x1xi1>
    %186 = vector.broadcast %185 : vector<2x1xi1> to vector<2x8xi1>
    %187 = arith.select %186, %180, %161 : vector<2x8xi1>, vector<2x8xf32>
    %c7_i32 = arith.constant 7 : i32
    %188 = arith.index_cast %c7_i32 : i32 to index
    %c0_40 = arith.constant 0 : index
    %c0_41 = arith.constant 0 : index
    %189 = vector.load %arg1[%188, %c0_40, %c0_41] : memref<8x2x8xf32, #tpu.memory_space<vmem>>, vector<1x2x8xf32>
    %190 = vector.shape_cast %189 : vector<1x2x8xf32> to vector<2x8xf32>
    %191 = vector.shape_cast %187 : vector<2x8xf32> to vector<2x1x8xf32>
    %192 = vector.shape_cast %190 : vector<2x8xf32> to vector<2x8x1xf32>
    %193 = vector.broadcast %191 : vector<2x1x8xf32> to vector<2x8x8xf32>
    %194 = vector.broadcast %192 : vector<2x8x1xf32> to vector<2x8x8xf32>
    %195 = arith.addf %193, %194 : vector<2x8x8xf32>
    %196 = vector.shape_cast %3 : vector<8x8xf32> to vector<1x8x8xf32>
    %197 = vector.broadcast %196 : vector<1x8x8xf32> to vector<2x8x8xf32>
    %198 = arith.addf %195, %197 : vector<2x8x8xf32>
    %cst_42 = arith.constant dense<0xFF800000> : vector<2x8xf32>
    %199 = vector.multi_reduction <maximumf>, %198, %cst_42 [2] : vector<2x8x8xf32> to vector<2x8xf32>
    %200 = vector.shape_cast %199 : vector<2x8xf32> to vector<2x8x1xf32>
    %201 = vector.broadcast %200 : vector<2x8x1xf32> to vector<2x8x8xf32>
    %202 = arith.subf %198, %201 : vector<2x8x8xf32>
    %203 = math.exp %202 : vector<2x8x8xf32>
    %cst_43 = arith.constant dense<0.000000e+00> : vector<2x8xf32>
    %204 = vector.multi_reduction <add>, %203, %cst_43 [2] : vector<2x8x8xf32> to vector<2x8xf32>
    %205 = math.log %204 : vector<2x8xf32>
    %206 = arith.addf %199, %205 : vector<2x8xf32>
    %c8_i32_44 = arith.constant 8 : i32
    %207 = arith.muli %arg0, %c8_i32_44 : i32
    %208 = arith.addi %207, %c7_i32 : i32
    %209 = vector.broadcast %208 : i32 to vector<2x1xi32>
    %210 = arith.cmpi slt, %209, %4 : vector<2x1xi32>
    %211 = vector.shape_cast %210 : vector<2x1xi1> to vector<2x1xi1>
    %212 = vector.broadcast %211 : vector<2x1xi1> to vector<2x8xi1>
    %213 = arith.select %212, %206, %187 : vector<2x8xi1>, vector<2x8xf32>
    %c8_i32_45 = arith.constant 8 : i32
    %c0_46 = arith.constant 0 : index
    %c0_47 = arith.constant 0 : index
    %214 = vector.load %arg5[%c0_46, %c0_47] : memref<2x8xf32, #tpu.memory_space<vmem>>, vector<2x8xf32>
    tpu.vector_store %arg5[%c0_46, %c0_47], %213 {strides = array<i32>} : memref<2x8xf32, #tpu.memory_space<vmem>>, vector<2x8xf32>,
    %c0_i32_48 = arith.constant 0 : i32
    %215 = arith.cmpi eq, %arg0, %c0_i32_48 : i32
    %216 = arith.extui %215 : i1 to i32
    %c0_i32_49 = arith.constant 0 : i32
    %217 = arith.cmpi ne, %216, %c0_i32_49 : i32
    scf.if %217 {
      %218 = vector.extract_strided_slice %3 {offsets = [2, 0], sizes = [1, 8], strides = [1, 1]} : vector<8x8xf32> to vector<1x8xf32>
      %219 = vector.broadcast %218 : vector<1x8xf32> to vector<2x8xf32>
      %220 = arith.addf %213, %219 : vector<2x8xf32>
      %cst_50 = arith.constant dense<0xFF800000> : vector<2xf32>
      %221 = vector.multi_reduction <maximumf>, %220, %cst_50 [1] : vector<2x8xf32> to vector<2xf32>
      %222 = vector.shape_cast %221 : vector<2xf32> to vector<2x1xf32>
      %223 = vector.broadcast %222 : vector<2x1xf32> to vector<2x8xf32>
      %224 = arith.subf %220, %223 : vector<2x8xf32>
      %225 = math.exp %224 : vector<2x8xf32>
      %cst_51 = arith.constant dense<0.000000e+00> : vector<2xf32>
      %226 = vector.multi_reduction <add>, %225, %cst_51 [1] : vector<2x8xf32> to vector<2xf32>
      %227 = vector.shape_cast %226 : vector<2xf32> to vector<2x1xf32>
      %228 = math.log %227 : vector<2x1xf32>
      %229 = arith.addf %222, %228 : vector<2x1xf32>
      %c0_52 = arith.constant 0 : index
      %c0_53 = arith.constant 0 : index
      %230 = vector.load %arg4[%c0_52, %c0_53] : memref<2x1xf32, #tpu.memory_space<vmem>>, vector<2x1xf32>
      tpu.vector_store %arg4[%c0_52, %c0_53], %229 {strides = array<i32>} : memref<2x1xf32, #tpu.memory_space<vmem>>, vector<2x1xf32>,
    } else {
    }
    return
  }
  func.func @transform_0(%arg0: i32) -> (i32, i32, i32) {
    %c0_i32 = arith.constant 0 : i32
    %c0_i32_0 = arith.constant 0 : i32
    %c0_i32_1 = arith.constant 0 : i32
    return %arg0, %c0_i32, %c0_i32_0 : i32, i32, i32
  }
  func.func @transform_1(%arg0: i32) -> (i32, i32) {
    %c0_i32 = arith.constant 0 : i32
    %c0_i32_0 = arith.constant 0 : i32
    %c0_i32_1 = arith.constant 0 : i32
    return %c0_i32, %c0_i32_0 : i32, i32
  }
  func.func @transform_2(%arg0: i32) -> (i32, i32) {
    %c0_i32 = arith.constant 0 : i32
    %c0_i32_0 = arith.constant 0 : i32
    %c0_i32_1 = arith.constant 0 : i32
    return %c0_i32, %c0_i32_0 : i32, i32
  }
  func.func @transform_3(%arg0: i32) -> (i32, i32) {
    %c0_i32 = arith.constant 0 : i32
    %c0_i32_0 = arith.constant 0 : i32
    %c0_i32_1 = arith.constant 0 : i32
    return %c0_i32, %c0_i32_0 : i32, i32
  }
}

module attributes {stable_mosaic.version = 11 : i64} {
  func.func @_crf_score_kernel(%arg0: memref<8x2x8xf32, #tpu.memory_space<vmem>>, %arg1: memref<9x2x1xi32, #tpu.memory_space<vmem>>, %arg2: memref<2x1xi32, #tpu.memory_space<vmem>>, %arg3: memref<1x64xf32, #tpu.memory_space<vmem>>, %arg4: memref<1x8xf32, #tpu.memory_space<vmem>>, %arg5: memref<2x1xf32, #tpu.memory_space<vmem>>) attributes {dimension_semantics = [], scalar_prefetch = 0 : i64, scratch_operands = 0 : i64, tpu.core_type = #tpu.core_type<tc>} {
    %c0 = arith.constant 0 : index
    %c0_0 = arith.constant 0 : index
    %c0_1 = arith.constant 0 : index
    %0 = vector.load %arg1[%c0, %c0_0, %c0_1] : memref<9x2x1xi32, #tpu.memory_space<vmem>>, vector<9x2x1xi32>
    %c0_2 = arith.constant 0 : index
    %c0_3 = arith.constant 0 : index
    %1 = vector.load %arg2[%c0_2, %c0_3] : memref<2x1xi32, #tpu.memory_space<vmem>>, vector<2x1xi32>
    %2 = vector.extract_strided_slice %0 {offsets = [1, 0, 0], sizes = [8, 2, 1], strides = [1, 1, 1]} : vector<9x2x1xi32> to vector<8x2x1xi32>
    %3 = vector.extract_strided_slice %0 {offsets = [0, 0, 0], sizes = [8, 2, 1], strides = [1, 1, 1]} : vector<9x2x1xi32> to vector<8x2x1xi32>
    %4 = tpu.iota {dimensions = array<i32: 2>} : vector<8x2x8xi32>
    %5 = vector.broadcast %2 : vector<8x2x1xi32> to vector<8x2x8xi32>
    %6 = arith.cmpi eq, %4, %5 : vector<8x2x8xi32>
    %7 = arith.extui %6 : vector<8x2x8xi1> to vector<8x2x8xi32>
    %8 = arith.sitofp %7 : vector<8x2x8xi32> to vector<8x2x8xf32>
    %c0_4 = arith.constant 0 : index
    %c0_5 = arith.constant 0 : index
    %c0_6 = arith.constant 0 : index
    %9 = vector.load %arg0[%c0_4, %c0_5, %c0_6] : memref<8x2x8xf32, #tpu.memory_space<vmem>>, vector<8x2x8xf32>
    %10 = arith.mulf %9, %8 : vector<8x2x8xf32>
    %cst = arith.constant dense<0.000000e+00> : vector<8x2xf32>
    %11 = vector.multi_reduction <add>, %10, %cst [2] : vector<8x2x8xf32> to vector<8x2xf32>
    %12 = vector.shape_cast %11 : vector<8x2xf32> to vector<8x2x1xf32>
    %13 = tpu.iota {dimensions = array<i32: 2>} : vector<8x2x64xi32>
    %c8_i32 = arith.constant 8 : i32
    %14 = vector.broadcast %c8_i32 : i32 to vector<8x2x1xi32>
    %15 = arith.muli %2, %14 : vector<8x2x1xi32>
    %16 = arith.addi %15, %3 : vector<8x2x1xi32>
    %17 = vector.broadcast %16 : vector<8x2x1xi32> to vector<8x2x64xi32>
    %18 = arith.cmpi eq, %13, %17 : vector<8x2x64xi32>
    %19 = arith.extui %18 : vector<8x2x64xi1> to vector<8x2x64xi32>
    %20 = arith.sitofp %19 : vector<8x2x64xi32> to vector<8x2x64xf32>
    %c0_7 = arith.constant 0 : index
    %c0_8 = arith.constant 0 : index
    %21 = vector.load %arg3[%c0_7, %c0_8] : memref<1x64xf32, #tpu.memory_space<vmem>>, vector<1x64xf32>
    %22 = vector.shape_cast %21 : vector<1x64xf32> to vector<1x1x64xf32>
    %23 = vector.broadcast %22 : vector<1x1x64xf32> to vector<8x2x64xf32>
    %24 = arith.mulf %20, %23 : vector<8x2x64xf32>
    %cst_9 = arith.constant dense<0.000000e+00> : vector<8x2xf32>
    %25 = vector.multi_reduction <add>, %24, %cst_9 [2] : vector<8x2x64xf32> to vector<8x2xf32>
    %26 = vector.shape_cast %25 : vector<8x2xf32> to vector<8x2x1xf32>
    %27 = tpu.iota {dimensions = array<i32: 0>} : vector<8x2x1xi32>
    %28 = vector.shape_cast %1 : vector<2x1xi32> to vector<1x2x1xi32>
    %29 = vector.broadcast %28 : vector<1x2x1xi32> to vector<8x2x1xi32>
    %30 = arith.cmpi slt, %27, %29 : vector<8x2x1xi32>
    %31 = arith.extui %30 : vector<8x2x1xi1> to vector<8x2x1xi32>
    %32 = arith.sitofp %31 : vector<8x2x1xi32> to vector<8x2x1xf32>
    %33 = arith.addf %12, %26 : vector<8x2x1xf32>
    %34 = arith.mulf %33, %32 : vector<8x2x1xf32>
    %cst_10 = arith.constant dense<0.000000e+00> : vector<2x1xf32>
    %35 = vector.multi_reduction <add>, %34, %cst_10 [0] : vector<8x2x1xf32> to vector<2x1xf32>
    %36 = tpu.iota {dimensions = array<i32: 2>} : vector<9x2x8xi32>
    %37 = vector.broadcast %0 : vector<9x2x1xi32> to vector<9x2x8xi32>
    %38 = arith.cmpi eq, %36, %37 : vector<9x2x8xi32>
    %39 = arith.extui %38 : vector<9x2x8xi1> to vector<9x2x8xi32>
    %40 = arith.sitofp %39 : vector<9x2x8xi32> to vector<9x2x8xf32>
    %c0_11 = arith.constant 0 : index
    %c0_12 = arith.constant 0 : index
    %41 = vector.load %arg4[%c0_11, %c0_12] : memref<1x8xf32, #tpu.memory_space<vmem>>, vector<1x8xf32>
    %42 = vector.shape_cast %41 : vector<1x8xf32> to vector<1x1x8xf32>
    %43 = vector.broadcast %42 : vector<1x1x8xf32> to vector<9x2x8xf32>
    %44 = arith.mulf %40, %43 : vector<9x2x8xf32>
    %cst_13 = arith.constant dense<0.000000e+00> : vector<9x2xf32>
    %45 = vector.multi_reduction <add>, %44, %cst_13 [2] : vector<9x2x8xf32> to vector<9x2xf32>
    %46 = vector.shape_cast %45 : vector<9x2xf32> to vector<9x2x1xf32>
    %47 = tpu.iota {dimensions = array<i32: 0>} : vector<9x2x1xi32>
    %48 = vector.shape_cast %1 : vector<2x1xi32> to vector<1x2x1xi32>
    %49 = vector.broadcast %48 : vector<1x2x1xi32> to vector<9x2x1xi32>
    %50 = arith.cmpi eq, %47, %49 : vector<9x2x1xi32>
    %51 = arith.extui %50 : vector<9x2x1xi1> to vector<9x2x1xi32>
    %52 = arith.sitofp %51 : vector<9x2x1xi32> to vector<9x2x1xf32>
    %53 = arith.mulf %46, %52 : vector<9x2x1xf32>
    %cst_14 = arith.constant dense<0.000000e+00> : vector<2x1xf32>
    %54 = vector.multi_reduction <add>, %53, %cst_14 [0] : vector<9x2x1xf32> to vector<2x1xf32>
    %55 = arith.addf %35, %54 : vector<2x1xf32>
    %c0_15 = arith.constant 0 : index
    %c0_16 = arith.constant 0 : index
    %56 = vector.load %arg5[%c0_15, %c0_16] : memref<2x1xf32, #tpu.memory_space<vmem>>, vector<2x1xf32>
    tpu.vector_store %arg5[%c0_15, %c0_16], %55 {strides = array<i32>} : memref<2x1xf32, #tpu.memory_space<vmem>>, vector<2x1xf32>,
    return
  }
}

module attributes {stable_mosaic.version = 11 : i64} {
  func.func @_matmul_bias_kernel(%arg0: i32, %arg1: memref<16x8xbf16, #tpu.memory_space<vmem>>, %arg2: memref<8x512xbf16, #tpu.memory_space<vmem>>, %arg3: memref<1x512xf32, #tpu.memory_space<vmem>>, %arg4: memref<16x512xf32, #tpu.memory_space<vmem>>) attributes {dimension_semantics = [#tpu.dimension_semantics<parallel>], iteration_bounds = array<i64: 1>, scalar_prefetch = 0 : i64, scratch_operands = 0 : i64, tpu.core_type = #tpu.core_type<tc>, window_params = [{transform_indices = @transform_0, window_bounds = array<i64: 16, 8>}, {pipeline_mode = #tpu.pipeline_mode<synchronous>, transform_indices = @transform_1, window_bounds = array<i64: 8, 512>}, {pipeline_mode = #tpu.pipeline_mode<synchronous>, transform_indices = @transform_2, window_bounds = array<i64: 1, 512>}, {transform_indices = @transform_3, window_bounds = array<i64: 16, 512>}]} {
    %c0 = arith.constant 0 : index
    %c0_0 = arith.constant 0 : index
    %0 = vector.load %arg1[%c0, %c0_0] : memref<16x8xbf16, #tpu.memory_space<vmem>>, vector<16x8xbf16>
    %c0_1 = arith.constant 0 : index
    %c0_2 = arith.constant 0 : index
    %1 = vector.load %arg2[%c0_1, %c0_2] : memref<8x512xbf16, #tpu.memory_space<vmem>>, vector<8x512xbf16>
    %cst = arith.constant dense<0.000000e+00> : vector<16x512xf32>
    %2 = tpu.matmul %0, %1, %cst {dimension_numbers = #tpu.dot_dimension_numbers<[1], [0], [0], [1], [0, 0, 1, 1], [], []>} : vector<16x8xbf16>, vector<8x512xbf16>, vector<16x512xf32> -> vector<16x512xf32>
    %c0_3 = arith.constant 0 : index
    %c0_4 = arith.constant 0 : index
    %3 = vector.load %arg3[%c0_3, %c0_4] : memref<1x512xf32, #tpu.memory_space<vmem>>, vector<1x512xf32>
    %4 = vector.broadcast %3 : vector<1x512xf32> to vector<16x512xf32>
    %5 = arith.addf %2, %4 : vector<16x512xf32>
    %c0_5 = arith.constant 0 : index
    %c0_6 = arith.constant 0 : index
    %6 = vector.load %arg4[%c0_5, %c0_6] : memref<16x512xf32, #tpu.memory_space<vmem>>, vector<16x512xf32>
    tpu.vector_store %arg4[%c0_5, %c0_6], %5 {strides = array<i32>} : memref<16x512xf32, #tpu.memory_space<vmem>>, vector<16x512xf32>,
    return
  }
  func.func @transform_0(%arg0: i32) -> (i32, i32) {
    %c0_i32 = arith.constant 0 : i32
    %c0_i32_0 = arith.constant 0 : i32
    return %arg0, %c0_i32 : i32, i32
  }
  func.func @transform_1(%arg0: i32) -> (i32, i32) {
    %c0_i32 = arith.constant 0 : i32
    %c0_i32_0 = arith.constant 0 : i32
    %c0_i32_1 = arith.constant 0 : i32
    return %c0_i32, %c0_i32_0 : i32, i32
  }
  func.func @transform_2(%arg0: i32) -> (i32, i32) {
    %c0_i32 = arith.constant 0 : i32
    %c0_i32_0 = arith.constant 0 : i32
    %c0_i32_1 = arith.constant 0 : i32
    return %c0_i32, %c0_i32_0 : i32, i32
  }
  func.func @transform_3(%arg0: i32) -> (i32, i32) {
    %c0_i32 = arith.constant 0 : i32
    %c0_i32_0 = arith.constant 0 : i32
    return %arg0, %c0_i32 : i32, i32
  }
}

module attributes {stable_mosaic.version = 11 : i64} {
  func.func @_lstm_rec_kernel(%arg0: i32, %arg1: memref<8x2x512xf32, #tpu.memory_space<vmem>>, %arg2: memref<128x512xbf16, #tpu.memory_space<vmem>>, %arg3: memref<128x8xbf16, #tpu.memory_space<vmem>>, %arg4: memref<1x8xf32, #tpu.memory_space<vmem>>, %arg5: memref<2x1xi32, #tpu.memory_space<vmem>>, %arg6: memref<8x2x8xf32, #tpu.memory_space<vmem>>, %arg7: memref<2x128xf32, #tpu.memory_space<vmem>>, %arg8: memref<2x128xf32, #tpu.memory_space<vmem>>) attributes {dimension_semantics = [#tpu.dimension_semantics<arbitrary>], iteration_bounds = array<i64: 1>, scalar_prefetch = 0 : i64, scratch_operands = 2 : i64, tpu.core_type = #tpu.core_type<tc>, window_params = [{transform_indices = @transform_0, window_bounds = array<i64: 8, 2, 512>}, {pipeline_mode = #tpu.pipeline_mode<synchronous>, transform_indices = @transform_1, window_bounds = array<i64: 128, 512>}, {pipeline_mode = #tpu.pipeline_mode<synchronous>, transform_indices = @transform_2, window_bounds = array<i64: 128, 8>}, {pipeline_mode = #tpu.pipeline_mode<synchronous>, transform_indices = @transform_3, window_bounds = array<i64: 1, 8>}, {pipeline_mode = #tpu.pipeline_mode<synchronous>, transform_indices = @transform_4, window_bounds = array<i64: 2, 1>}, {transform_indices = @transform_5, window_bounds = array<i64: 8, 2, 8>}]} {
    %c0_i32 = arith.constant 0 : i32
    %0 = arith.cmpi eq, %arg0, %c0_i32 : i32
    %1 = arith.extui %0 : i1 to i32
    %c0_i32_0 = arith.constant 0 : i32
    %2 = arith.cmpi ne, %1, %c0_i32_0 : i32
    scf.if %2 {
      %cst_86 = arith.constant 0.000000e+00 : f32
      %322 = vector.broadcast %cst_86 : f32 to vector<2x128xf32>
      %c0_87 = arith.constant 0 : index
      %c0_88 = arith.constant 0 : index
      %323 = vector.load %arg7[%c0_87, %c0_88] : memref<2x128xf32, #tpu.memory_space<vmem>>, vector<2x128xf32>
      tpu.vector_store %arg7[%c0_87, %c0_88], %322 {strides = array<i32>} : memref<2x128xf32, #tpu.memory_space<vmem>>, vector<2x128xf32>,
      %cst_89 = arith.constant 0.000000e+00 : f32
      %324 = vector.broadcast %cst_89 : f32 to vector<2x128xf32>
      %c0_90 = arith.constant 0 : index
      %c0_91 = arith.constant 0 : index
      %325 = vector.load %arg8[%c0_90, %c0_91] : memref<2x128xf32, #tpu.memory_space<vmem>>, vector<2x128xf32>
      tpu.vector_store %arg8[%c0_90, %c0_91], %324 {strides = array<i32>} : memref<2x128xf32, #tpu.memory_space<vmem>>, vector<2x128xf32>,
    } else {
    }
    %c0 = arith.constant 0 : index
    %c0_1 = arith.constant 0 : index
    %3 = vector.load %arg2[%c0, %c0_1] : memref<128x512xbf16, #tpu.memory_space<vmem>>, vector<128x512xbf16>
    %c0_2 = arith.constant 0 : index
    %c0_3 = arith.constant 0 : index
    %4 = vector.load %arg3[%c0_2, %c0_3] : memref<128x8xbf16, #tpu.memory_space<vmem>>, vector<128x8xbf16>
    %c0_4 = arith.constant 0 : index
    %c0_5 = arith.constant 0 : index
    %5 = vector.load %arg4[%c0_4, %c0_5] : memref<1x8xf32, #tpu.memory_space<vmem>>, vector<1x8xf32>
    %c0_6 = arith.constant 0 : index
    %c0_7 = arith.constant 0 : index
    %6 = vector.load %arg7[%c0_6, %c0_7] : memref<2x128xf32, #tpu.memory_space<vmem>>, vector<2x128xf32>
    %c0_8 = arith.constant 0 : index
    %c0_9 = arith.constant 0 : index
    %7 = vector.load %arg8[%c0_8, %c0_9] : memref<2x128xf32, #tpu.memory_space<vmem>>, vector<2x128xf32>
    %c0_i32_10 = arith.constant 0 : i32
    %8 = arith.index_cast %c0_i32_10 : i32 to index
    %c0_11 = arith.constant 0 : index
    %c0_12 = arith.constant 0 : index
    %9 = vector.load %arg1[%8, %c0_11, %c0_12] : memref<8x2x512xf32, #tpu.memory_space<vmem>>, vector<1x2x512xf32>
    %10 = vector.shape_cast %9 : vector<1x2x512xf32> to vector<2x512xf32>
    %11 = arith.truncf %6 : vector<2x128xf32> to vector<2x128xbf16>
    %cst = arith.constant dense<0.000000e+00> : vector<2x512xf32>
    %12 = tpu.matmul %11, %3, %cst {dimension_numbers = #tpu.dot_dimension_numbers<[1], [0], [0], [1], [0, 0, 1, 1], [], []>} : vector<2x128xbf16>, vector<128x512xbf16>, vector<2x512xf32> -> vector<2x512xf32>
    %13 = arith.addf %10, %12 : vector<2x512xf32>
    %14 = vector.extract_strided_slice %13 {offsets = [0, 0], sizes = [2, 128], strides = [1, 1]} : vector<2x512xf32> to vector<2x128xf32>
    %15 = arith.negf %14 : vector<2x128xf32>
    %16 = math.exp %15 : vector<2x128xf32>
    %cst_13 = arith.constant 1.000000e+00 : f32
    %17 = vector.broadcast %cst_13 : f32 to vector<2x128xf32>
    %18 = arith.addf %17, %16 : vector<2x128xf32>
    %19 = arith.divf %17, %18 : vector<2x128xf32>
    %20 = vector.extract_strided_slice %13 {offsets = [0, 128], sizes = [2, 128], strides = [1, 1]} : vector<2x512xf32> to vector<2x128xf32>
    %21 = arith.negf %20 : vector<2x128xf32>
    %22 = math.exp %21 : vector<2x128xf32>
    %cst_14 = arith.constant 1.000000e+00 : f32
    %23 = vector.broadcast %cst_14 : f32 to vector<2x128xf32>
    %24 = arith.addf %23, %22 : vector<2x128xf32>
    %25 = arith.divf %23, %24 : vector<2x128xf32>
    %26 = vector.extract_strided_slice %13 {offsets = [0, 256], sizes = [2, 128], strides = [1, 1]} : vector<2x512xf32> to vector<2x128xf32>
    %27 = math.tanh %26 : vector<2x128xf32>
    %28 = vector.extract_strided_slice %13 {offsets = [0, 384], sizes = [2, 128], strides = [1, 1]} : vector<2x512xf32> to vector<2x128xf32>
    %29 = arith.negf %28 : vector<2x128xf32>
    %30 = math.exp %29 : vector<2x128xf32>
    %cst_15 = arith.constant 1.000000e+00 : f32
    %31 = vector.broadcast %cst_15 : f32 to vector<2x128xf32>
    %32 = arith.addf %31, %30 : vector<2x128xf32>
    %33 = arith.divf %31, %32 : vector<2x128xf32>
    %34 = arith.mulf %25, %7 : vector<2x128xf32>
    %35 = arith.mulf %19, %27 : vector<2x128xf32>
    %36 = arith.addf %34, %35 : vector<2x128xf32>
    %37 = math.tanh %36 : vector<2x128xf32>
    %38 = arith.mulf %33, %37 : vector<2x128xf32>
    %39 = arith.truncf %38 : vector<2x128xf32> to vector<2x128xbf16>
    %cst_16 = arith.constant dense<0.000000e+00> : vector<2x8xf32>
    %40 = tpu.matmul %39, %4, %cst_16 {dimension_numbers = #tpu.dot_dimension_numbers<[1], [0], [0], [1], [0, 0, 1, 1], [], []>} : vector<2x128xbf16>, vector<128x8xbf16>, vector<2x8xf32> -> vector<2x8xf32>
    %41 = vector.broadcast %5 : vector<1x8xf32> to vector<2x8xf32>
    %42 = arith.addf %40, %41 : vector<2x8xf32>
    %43 = arith.index_cast %c0_i32_10 : i32 to index
    %c0_17 = arith.constant 0 : index
    %c0_18 = arith.constant 0 : index
    %44 = vector.load %arg6[%43, %c0_17, %c0_18] : memref<8x2x8xf32, #tpu.memory_space<vmem>>, vector<1x2x8xf32>
    %45 = vector.shape_cast %44 : vector<1x2x8xf32> to vector<2x8xf32>
    %46 = vector.shape_cast %42 : vector<2x8xf32> to vector<1x2x8xf32>
    tpu.vector_store %arg6[%43, %c0_17, %c0_18], %46 {strides = array<i32>} : memref<8x2x8xf32, #tpu.memory_space<vmem>>, vector<1x2x8xf32>,
    %c1_i32 = arith.constant 1 : i32
    %47 = arith.index_cast %c1_i32 : i32 to index
    %c0_19 = arith.constant 0 : index
    %c0_20 = arith.constant 0 : index
    %48 = vector.load %arg1[%47, %c0_19, %c0_20] : memref<8x2x512xf32, #tpu.memory_space<vmem>>, vector<1x2x512xf32>
    %49 = vector.shape_cast %48 : vector<1x2x512xf32> to vector<2x512xf32>
    %50 = arith.truncf %38 : vector<2x128xf32> to vector<2x128xbf16>
    %cst_21 = arith.constant dense<0.000000e+00> : vector<2x512xf32>
    %51 = tpu.matmul %50, %3, %cst_21 {dimension_numbers = #tpu.dot_dimension_numbers<[1], [0], [0], [1], [0, 0, 1, 1], [], []>} : vector<2x128xbf16>, vector<128x512xbf16>, vector<2x512xf32> -> vector<2x512xf32>
    %52 = arith.addf %49, %51 : vector<2x512xf32>
    %53 = vector.extract_strided_slice %52 {offsets = [0, 0], sizes = [2, 128], strides = [1, 1]} : vector<2x512xf32> to vector<2x128xf32>
    %54 = arith.negf %53 : vector<2x128xf32>
    %55 = math.exp %54 : vector<2x128xf32>
    %cst_22 = arith.constant 1.000000e+00 : f32
    %56 = vector.broadcast %cst_22 : f32 to vector<2x128xf32>
    %57 = arith.addf %56, %55 : vector<2x128xf32>
    %58 = arith.divf %56, %57 : vector<2x128xf32>
    %59 = vector.extract_strided_slice %52 {offsets = [0, 128], sizes = [2, 128], strides = [1, 1]} : vector<2x512xf32> to vector<2x128xf32>
    %60 = arith.negf %59 : vector<2x128xf32>
    %61 = math.exp %60 : vector<2x128xf32>
    %cst_23 = arith.constant 1.000000e+00 : f32
    %62 = vector.broadcast %cst_23 : f32 to vector<2x128xf32>
    %63 = arith.addf %62, %61 : vector<2x128xf32>
    %64 = arith.divf %62, %63 : vector<2x128xf32>
    %65 = vector.extract_strided_slice %52 {offsets = [0, 256], sizes = [2, 128], strides = [1, 1]} : vector<2x512xf32> to vector<2x128xf32>
    %66 = math.tanh %65 : vector<2x128xf32>
    %67 = vector.extract_strided_slice %52 {offsets = [0, 384], sizes = [2, 128], strides = [1, 1]} : vector<2x512xf32> to vector<2x128xf32>
    %68 = arith.negf %67 : vector<2x128xf32>
    %69 = math.exp %68 : vector<2x128xf32>
    %cst_24 = arith.constant 1.000000e+00 : f32
    %70 = vector.broadcast %cst_24 : f32 to vector<2x128xf32>
    %71 = arith.addf %70, %69 : vector<2x128xf32>
    %72 = arith.divf %70, %71 : vector<2x128xf32>
    %73 = arith.mulf %64, %36 : vector<2x128xf32>
    %74 = arith.mulf %58, %66 : vector<2x128xf32>
    %75 = arith.addf %73, %74 : vector<2x128xf32>
    %76 = math.tanh %75 : vector<2x128xf32>
    %77 = arith.mulf %72, %76 : vector<2x128xf32>
    %78 = arith.truncf %77 : vector<2x128xf32> to vector<2x128xbf16>
    %cst_25 = arith.constant dense<0.000000e+00> : vector<2x8xf32>
    %79 = tpu.matmul %78, %4, %cst_25 {dimension_numbers = #tpu.dot_dimension_numbers<[1], [0], [0], [1], [0, 0, 1, 1], [], []>} : vector<2x128xbf16>, vector<128x8xbf16>, vector<2x8xf32> -> vector<2x8xf32>
    %80 = vector.broadcast %5 : vector<1x8xf32> to vector<2x8xf32>
    %81 = arith.addf %79, %80 : vector<2x8xf32>
    %82 = arith.index_cast %c1_i32 : i32 to index
    %c0_26 = arith.constant 0 : index
    %c0_27 = arith.constant 0 : index
    %83 = vector.load %arg6[%82, %c0_26, %c0_27] : memref<8x2x8xf32, #tpu.memory_space<vmem>>, vector<1x2x8xf32>
    %84 = vector.shape_cast %83 : vector<1x2x8xf32> to vector<2x8xf32>
    %85 = vector.shape_cast %81 : vector<2x8xf32> to vector<1x2x8xf32>
    tpu.vector_store %arg6[%82, %c0_26, %c0_27], %85 {strides = array<i32>} : memref<8x2x8xf32, #tpu.memory_space<vmem>>, vector<1x2x8xf32>,
    %c2_i32 = arith.constant 2 : i32
    %86 = arith.index_cast %c2_i32 : i32 to index
    %c0_28 = arith.constant 0 : index
    %c0_29 = arith.constant 0 : index
    %87 = vector.load %arg1[%86, %c0_28, %c0_29] : memref<8x2x512xf32, #tpu.memory_space<vmem>>, vector<1x2x512xf32>
    %88 = vector.shape_cast %87 : vector<1x2x512xf32> to vector<2x512xf32>
    %89 = arith.truncf %77 : vector<2x128xf32> to vector<2x128xbf16>
    %cst_30 = arith.constant dense<0.000000e+00> : vector<2x512xf32>
    %90 = tpu.matmul %89, %3, %cst_30 {dimension_numbers = #tpu.dot_dimension_numbers<[1], [0], [0], [1], [0, 0, 1, 1], [], []>} : vector<2x128xbf16>, vector<128x512xbf16>, vector<2x512xf32> -> vector<2x512xf32>
    %91 = arith.addf %88, %90 : vector<2x512xf32>
    %92 = vector.extract_strided_slice %91 {offsets = [0, 0], sizes = [2, 128], strides = [1, 1]} : vector<2x512xf32> to vector<2x128xf32>
    %93 = arith.negf %92 : vector<2x128xf32>
    %94 = math.exp %93 : vector<2x128xf32>
    %cst_31 = arith.constant 1.000000e+00 : f32
    %95 = vector.broadcast %cst_31 : f32 to vector<2x128xf32>
    %96 = arith.addf %95, %94 : vector<2x128xf32>
    %97 = arith.divf %95, %96 : vector<2x128xf32>
    %98 = vector.extract_strided_slice %91 {offsets = [0, 128], sizes = [2, 128], strides = [1, 1]} : vector<2x512xf32> to vector<2x128xf32>
    %99 = arith.negf %98 : vector<2x128xf32>
    %100 = math.exp %99 : vector<2x128xf32>
    %cst_32 = arith.constant 1.000000e+00 : f32
    %101 = vector.broadcast %cst_32 : f32 to vector<2x128xf32>
    %102 = arith.addf %101, %100 : vector<2x128xf32>
    %103 = arith.divf %101, %102 : vector<2x128xf32>
    %104 = vector.extract_strided_slice %91 {offsets = [0, 256], sizes = [2, 128], strides = [1, 1]} : vector<2x512xf32> to vector<2x128xf32>
    %105 = math.tanh %104 : vector<2x128xf32>
    %106 = vector.extract_strided_slice %91 {offsets = [0, 384], sizes = [2, 128], strides = [1, 1]} : vector<2x512xf32> to vector<2x128xf32>
    %107 = arith.negf %106 : vector<2x128xf32>
    %108 = math.exp %107 : vector<2x128xf32>
    %cst_33 = arith.constant 1.000000e+00 : f32
    %109 = vector.broadcast %cst_33 : f32 to vector<2x128xf32>
    %110 = arith.addf %109, %108 : vector<2x128xf32>
    %111 = arith.divf %109, %110 : vector<2x128xf32>
    %112 = arith.mulf %103, %75 : vector<2x128xf32>
    %113 = arith.mulf %97, %105 : vector<2x128xf32>
    %114 = arith.addf %112, %113 : vector<2x128xf32>
    %115 = math.tanh %114 : vector<2x128xf32>
    %116 = arith.mulf %111, %115 : vector<2x128xf32>
    %117 = arith.truncf %116 : vector<2x128xf32> to vector<2x128xbf16>
    %cst_34 = arith.constant dense<0.000000e+00> : vector<2x8xf32>
    %118 = tpu.matmul %117, %4, %cst_34 {dimension_numbers = #tpu.dot_dimension_numbers<[1], [0], [0], [1], [0, 0, 1, 1], [], []>} : vector<2x128xbf16>, vector<128x8xbf16>, vector<2x8xf32> -> vector<2x8xf32>
    %119 = vector.broadcast %5 : vector<1x8xf32> to vector<2x8xf32>
    %120 = arith.addf %118, %119 : vector<2x8xf32>
    %121 = arith.index_cast %c2_i32 : i32 to index
    %c0_35 = arith.constant 0 : index
    %c0_36 = arith.constant 0 : index
    %122 = vector.load %arg6[%121, %c0_35, %c0_36] : memref<8x2x8xf32, #tpu.memory_space<vmem>>, vector<1x2x8xf32>
    %123 = vector.shape_cast %122 : vector<1x2x8xf32> to vector<2x8xf32>
    %124 = vector.shape_cast %120 : vector<2x8xf32> to vector<1x2x8xf32>
    tpu.vector_store %arg6[%121, %c0_35, %c0_36], %124 {strides = array<i32>} : memref<8x2x8xf32, #tpu.memory_space<vmem>>, vector<1x2x8xf32>,
    %c3_i32 = arith.constant 3 : i32
    %125 = arith.index_cast %c3_i32 : i32 to index
    %c0_37 = arith.constant 0 : index
    %c0_38 = arith.constant 0 : index
    %126 = vector.load %arg1[%125, %c0_37, %c0_38] : memref<8x2x512xf32, #tpu.memory_space<vmem>>, vector<1x2x512xf32>
    %127 = vector.shape_cast %126 : vector<1x2x512xf32> to vector<2x512xf32>
    %128 = arith.truncf %116 : vector<2x128xf32> to vector<2x128xbf16>
    %cst_39 = arith.constant dense<0.000000e+00> : vector<2x512xf32>
    %129 = tpu.matmul %128, %3, %cst_39 {dimension_numbers = #tpu.dot_dimension_numbers<[1], [0], [0], [1], [0, 0, 1, 1], [], []>} : vector<2x128xbf16>, vector<128x512xbf16>, vector<2x512xf32> -> vector<2x512xf32>
    %130 = arith.addf %127, %129 : vector<2x512xf32>
    %131 = vector.extract_strided_slice %130 {offsets = [0, 0], sizes = [2, 128], strides = [1, 1]} : vector<2x512xf32> to vector<2x128xf32>
    %132 = arith.negf %131 : vector<2x128xf32>
    %133 = math.exp %132 : vector<2x128xf32>
    %cst_40 = arith.constant 1.000000e+00 : f32
    %134 = vector.broadcast %cst_40 : f32 to vector<2x128xf32>
    %135 = arith.addf %134, %133 : vector<2x128xf32>
    %136 = arith.divf %134, %135 : vector<2x128xf32>
    %137 = vector.extract_strided_slice %130 {offsets = [0, 128], sizes = [2, 128], strides = [1, 1]} : vector<2x512xf32> to vector<2x128xf32>
    %138 = arith.negf %137 : vector<2x128xf32>
    %139 = math.exp %138 : vector<2x128xf32>
    %cst_41 = arith.constant 1.000000e+00 : f32
    %140 = vector.broadcast %cst_41 : f32 to vector<2x128xf32>
    %141 = arith.addf %140, %139 : vector<2x128xf32>
    %142 = arith.divf %140, %141 : vector<2x128xf32>
    %143 = vector.extract_strided_slice %130 {offsets = [0, 256], sizes = [2, 128], strides = [1, 1]} : vector<2x512xf32> to vector<2x128xf32>
    %144 = math.tanh %143 : vector<2x128xf32>
    %145 = vector.extract_strided_slice %130 {offsets = [0, 384], sizes = [2, 128], strides = [1, 1]} : vector<2x512xf32> to vector<2x128xf32>
    %146 = arith.negf %145 : vector<2x128xf32>
    %147 = math.exp %146 : vector<2x128xf32>
    %cst_42 = arith.constant 1.000000e+00 : f32
    %148 = vector.broadcast %cst_42 : f32 to vector<2x128xf32>
    %149 = arith.addf %148, %147 : vector<2x128xf32>
    %150 = arith.divf %148, %149 : vector<2x128xf32>
    %151 = arith.mulf %142, %114 : vector<2x128xf32>
    %152 = arith.mulf %136, %144 : vector<2x128xf32>
    %153 = arith.addf %151, %152 : vector<2x128xf32>
    %154 = math.tanh %153 : vector<2x128xf32>
    %155 = arith.mulf %150, %154 : vector<2x128xf32>
    %156 = arith.truncf %155 : vector<2x128xf32> to vector<2x128xbf16>
    %cst_43 = arith.constant dense<0.000000e+00> : vector<2x8xf32>
    %157 = tpu.matmul %156, %4, %cst_43 {dimension_numbers = #tpu.dot_dimension_numbers<[1], [0], [0], [1], [0, 0, 1, 1], [], []>} : vector<2x128xbf16>, vector<128x8xbf16>, vector<2x8xf32> -> vector<2x8xf32>
    %158 = vector.broadcast %5 : vector<1x8xf32> to vector<2x8xf32>
    %159 = arith.addf %157, %158 : vector<2x8xf32>
    %160 = arith.index_cast %c3_i32 : i32 to index
    %c0_44 = arith.constant 0 : index
    %c0_45 = arith.constant 0 : index
    %161 = vector.load %arg6[%160, %c0_44, %c0_45] : memref<8x2x8xf32, #tpu.memory_space<vmem>>, vector<1x2x8xf32>
    %162 = vector.shape_cast %161 : vector<1x2x8xf32> to vector<2x8xf32>
    %163 = vector.shape_cast %159 : vector<2x8xf32> to vector<1x2x8xf32>
    tpu.vector_store %arg6[%160, %c0_44, %c0_45], %163 {strides = array<i32>} : memref<8x2x8xf32, #tpu.memory_space<vmem>>, vector<1x2x8xf32>,
    %c4_i32 = arith.constant 4 : i32
    %164 = arith.index_cast %c4_i32 : i32 to index
    %c0_46 = arith.constant 0 : index
    %c0_47 = arith.constant 0 : index
    %165 = vector.load %arg1[%164, %c0_46, %c0_47] : memref<8x2x512xf32, #tpu.memory_space<vmem>>, vector<1x2x512xf32>
    %166 = vector.shape_cast %165 : vector<1x2x512xf32> to vector<2x512xf32>
    %167 = arith.truncf %155 : vector<2x128xf32> to vector<2x128xbf16>
    %cst_48 = arith.constant dense<0.000000e+00> : vector<2x512xf32>
    %168 = tpu.matmul %167, %3, %cst_48 {dimension_numbers = #tpu.dot_dimension_numbers<[1], [0], [0], [1], [0, 0, 1, 1], [], []>} : vector<2x128xbf16>, vector<128x512xbf16>, vector<2x512xf32> -> vector<2x512xf32>
    %169 = arith.addf %166, %168 : vector<2x512xf32>
    %170 = vector.extract_strided_slice %169 {offsets = [0, 0], sizes = [2, 128], strides = [1, 1]} : vector<2x512xf32> to vector<2x128xf32>
    %171 = arith.negf %170 : vector<2x128xf32>
    %172 = math.exp %171 : vector<2x128xf32>
    %cst_49 = arith.constant 1.000000e+00 : f32
    %173 = vector.broadcast %cst_49 : f32 to vector<2x128xf32>
    %174 = arith.addf %173, %172 : vector<2x128xf32>
    %175 = arith.divf %173, %174 : vector<2x128xf32>
    %176 = vector.extract_strided_slice %169 {offsets = [0, 128], sizes = [2, 128], strides = [1, 1]} : vector<2x512xf32> to vector<2x128xf32>
    %177 = arith.negf %176 : vector<2x128xf32>
    %178 = math.exp %177 : vector<2x128xf32>
    %cst_50 = arith.constant 1.000000e+00 : f32
    %179 = vector.broadcast %cst_50 : f32 to vector<2x128xf32>
    %180 = arith.addf %179, %178 : vector<2x128xf32>
    %181 = arith.divf %179, %180 : vector<2x128xf32>
    %182 = vector.extract_strided_slice %169 {offsets = [0, 256], sizes = [2, 128], strides = [1, 1]} : vector<2x512xf32> to vector<2x128xf32>
    %183 = math.tanh %182 : vector<2x128xf32>
    %184 = vector.extract_strided_slice %169 {offsets = [0, 384], sizes = [2, 128], strides = [1, 1]} : vector<2x512xf32> to vector<2x128xf32>
    %185 = arith.negf %184 : vector<2x128xf32>
    %186 = math.exp %185 : vector<2x128xf32>
    %cst_51 = arith.constant 1.000000e+00 : f32
    %187 = vector.broadcast %cst_51 : f32 to vector<2x128xf32>
    %188 = arith.addf %187, %186 : vector<2x128xf32>
    %189 = arith.divf %187, %188 : vector<2x128xf32>
    %190 = arith.mulf %181, %153 : vector<2x128xf32>
    %191 = arith.mulf %175, %183 : vector<2x128xf32>
    %192 = arith.addf %190, %191 : vector<2x128xf32>
    %193 = math.tanh %192 : vector<2x128xf32>
    %194 = arith.mulf %189, %193 : vector<2x128xf32>
    %195 = arith.truncf %194 : vector<2x128xf32> to vector<2x128xbf16>
    %cst_52 = arith.constant dense<0.000000e+00> : vector<2x8xf32>
    %196 = tpu.matmul %195, %4, %cst_52 {dimension_numbers = #tpu.dot_dimension_numbers<[1], [0], [0], [1], [0, 0, 1, 1], [], []>} : vector<2x128xbf16>, vector<128x8xbf16>, vector<2x8xf32> -> vector<2x8xf32>
    %197 = vector.broadcast %5 : vector<1x8xf32> to vector<2x8xf32>
    %198 = arith.addf %196, %197 : vector<2x8xf32>
    %199 = arith.index_cast %c4_i32 : i32 to index
    %c0_53 = arith.constant 0 : index
    %c0_54 = arith.constant 0 : index
    %200 = vector.load %arg6[%199, %c0_53, %c0_54] : memref<8x2x8xf32, #tpu.memory_space<vmem>>, vector<1x2x8xf32>
    %201 = vector.shape_cast %200 : vector<1x2x8xf32> to vector<2x8xf32>
    %202 = vector.shape_cast %198 : vector<2x8xf32> to vector<1x2x8xf32>
    tpu.vector_store %arg6[%199, %c0_53, %c0_54], %202 {strides = array<i32>} : memref<8x2x8xf32, #tpu.memory_space<vmem>>, vector<1x2x8xf32>,
    %c5_i32 = arith.constant 5 : i32
    %203 = arith.index_cast %c5_i32 : i32 to index
    %c0_55 = arith.constant 0 : index
    %c0_56 = arith.constant 0 : index
    %204 = vector.load %arg1[%203, %c0_55, %c0_56] : memref<8x2x512xf32, #tpu.memory_space<vmem>>, vector<1x2x512xf32>
    %205 = vector.shape_cast %204 : vector<1x2x512xf32> to vector<2x512xf32>
    %206 = arith.truncf %194 : vector<2x128xf32> to vector<2x128xbf16>
    %cst_57 = arith.constant dense<0.000000e+00> : vector<2x512xf32>
    %207 = tpu.matmul %206, %3, %cst_57 {dimension_numbers = #tpu.dot_dimension_numbers<[1], [0], [0], [1], [0, 0, 1, 1], [], []>} : vector<2x128xbf16>, vector<128x512xbf16>, vector<2x512xf32> -> vector<2x512xf32>
    %208 = arith.addf %205, %207 : vector<2x512xf32>
    %209 = vector.extract_strided_slice %208 {offsets = [0, 0], sizes = [2, 128], strides = [1, 1]} : vector<2x512xf32> to vector<2x128xf32>
    %210 = arith.negf %209 : vector<2x128xf32>
    %211 = math.exp %210 : vector<2x128xf32>
    %cst_58 = arith.constant 1.000000e+00 : f32
    %212 = vector.broadcast %cst_58 : f32 to vector<2x128xf32>
    %213 = arith.addf %212, %211 : vector<2x128xf32>
    %214 = arith.divf %212, %213 : vector<2x128xf32>
    %215 = vector.extract_strided_slice %208 {offsets = [0, 128], sizes = [2, 128], strides = [1, 1]} : vector<2x512xf32> to vector<2x128xf32>
    %216 = arith.negf %215 : vector<2x128xf32>
    %217 = math.exp %216 : vector<2x128xf32>
    %cst_59 = arith.constant 1.000000e+00 : f32
    %218 = vector.broadcast %cst_59 : f32 to vector<2x128xf32>
    %219 = arith.addf %218, %217 : vector<2x128xf32>
    %220 = arith.divf %218, %219 : vector<2x128xf32>
    %221 = vector.extract_strided_slice %208 {offsets = [0, 256], sizes = [2, 128], strides = [1, 1]} : vector<2x512xf32> to vector<2x128xf32>
    %222 = math.tanh %221 : vector<2x128xf32>
    %223 = vector.extract_strided_slice %208 {offsets = [0, 384], sizes = [2, 128], strides = [1, 1]} : vector<2x512xf32> to vector<2x128xf32>
    %224 = arith.negf %223 : vector<2x128xf32>
    %225 = math.exp %224 : vector<2x128xf32>
    %cst_60 = arith.constant 1.000000e+00 : f32
    %226 = vector.broadcast %cst_60 : f32 to vector<2x128xf32>
    %227 = arith.addf %226, %225 : vector<2x128xf32>
    %228 = arith.divf %226, %227 : vector<2x128xf32>
    %229 = arith.mulf %220, %192 : vector<2x128xf32>
    %230 = arith.mulf %214, %222 : vector<2x128xf32>
    %231 = arith.addf %229, %230 : vector<2x128xf32>
    %232 = math.tanh %231 : vector<2x128xf32>
    %233 = arith.mulf %228, %232 : vector<2x128xf32>
    %234 = arith.truncf %233 : vector<2x128xf32> to vector<2x128xbf16>
    %cst_61 = arith.constant dense<0.000000e+00> : vector<2x8xf32>
    %235 = tpu.matmul %234, %4, %cst_61 {dimension_numbers = #tpu.dot_dimension_numbers<[1], [0], [0], [1], [0, 0, 1, 1], [], []>} : vector<2x128xbf16>, vector<128x8xbf16>, vector<2x8xf32> -> vector<2x8xf32>
    %236 = vector.broadcast %5 : vector<1x8xf32> to vector<2x8xf32>
    %237 = arith.addf %235, %236 : vector<2x8xf32>
    %238 = arith.index_cast %c5_i32 : i32 to index
    %c0_62 = arith.constant 0 : index
    %c0_63 = arith.constant 0 : index
    %239 = vector.load %arg6[%238, %c0_62, %c0_63] : memref<8x2x8xf32, #tpu.memory_space<vmem>>, vector<1x2x8xf32>
    %240 = vector.shape_cast %239 : vector<1x2x8xf32> to vector<2x8xf32>
    %241 = vector.shape_cast %237 : vector<2x8xf32> to vector<1x2x8xf32>
    tpu.vector_store %arg6[%238, %c0_62, %c0_63], %241 {strides = array<i32>} : memref<8x2x8xf32, #tpu.memory_space<vmem>>, vector<1x2x8xf32>,
    %c6_i32 = arith.constant 6 : i32
    %242 = arith.index_cast %c6_i32 : i32 to index
    %c0_64 = arith.constant 0 : index
    %c0_65 = arith.constant 0 : index
    %243 = vector.load %arg1[%242, %c0_64, %c0_65] : memref<8x2x512xf32, #tpu.memory_space<vmem>>, vector<1x2x512xf32>
    %244 = vector.shape_cast %243 : vector<1x2x512xf32> to vector<2x512xf32>
    %245 = arith.truncf %233 : vector<2x128xf32> to vector<2x128xbf16>
    %cst_66 = arith.constant dense<0.000000e+00> : vector<2x512xf32>
    %246 = tpu.matmul %245, %3, %cst_66 {dimension_numbers = #tpu.dot_dimension_numbers<[1], [0], [0], [1], [0, 0, 1, 1], [], []>} : vector<2x128xbf16>, vector<128x512xbf16>, vector<2x512xf32> -> vector<2x512xf32>
    %247 = arith.addf %244, %246 : vector<2x512xf32>
    %248 = vector.extract_strided_slice %247 {offsets = [0, 0], sizes = [2, 128], strides = [1, 1]} : vector<2x512xf32> to vector<2x128xf32>
    %249 = arith.negf %248 : vector<2x128xf32>
    %250 = math.exp %249 : vector<2x128xf32>
    %cst_67 = arith.constant 1.000000e+00 : f32
    %251 = vector.broadcast %cst_67 : f32 to vector<2x128xf32>
    %252 = arith.addf %251, %250 : vector<2x128xf32>
    %253 = arith.divf %251, %252 : vector<2x128xf32>
    %254 = vector.extract_strided_slice %247 {offsets = [0, 128], sizes = [2, 128], strides = [1, 1]} : vector<2x512xf32> to vector<2x128xf32>
    %255 = arith.negf %254 : vector<2x128xf32>
    %256 = math.exp %255 : vector<2x128xf32>
    %cst_68 = arith.constant 1.000000e+00 : f32
    %257 = vector.broadcast %cst_68 : f32 to vector<2x128xf32>
    %258 = arith.addf %257, %256 : vector<2x128xf32>
    %259 = arith.divf %257, %258 : vector<2x128xf32>
    %260 = vector.extract_strided_slice %247 {offsets = [0, 256], sizes = [2, 128], strides = [1, 1]} : vector<2x512xf32> to vector<2x128xf32>
    %261 = math.tanh %260 : vector<2x128xf32>
    %262 = vector.extract_strided_slice %247 {offsets = [0, 384], sizes = [2, 128], strides = [1, 1]} : vector<2x512xf32> to vector<2x128xf32>
    %263 = arith.negf %262 : vector<2x128xf32>
    %264 = math.exp %263 : vector<2x128xf32>
    %cst_69 = arith.constant 1.000000e+00 : f32
    %265 = vector.broadcast %cst_69 : f32 to vector<2x128xf32>
    %266 = arith.addf %265, %264 : vector<2x128xf32>
    %267 = arith.divf %265, %266 : vector<2x128xf32>
    %268 = arith.mulf %259, %231 : vector<2x128xf32>
    %269 = arith.mulf %253, %261 : vector<2x128xf32>
    %270 = arith.addf %268, %269 : vector<2x128xf32>
    %271 = math.tanh %270 : vector<2x128xf32>
    %272 = arith.mulf %267, %271 : vector<2x128xf32>
    %273 = arith.truncf %272 : vector<2x128xf32> to vector<2x128xbf16>
    %cst_70 = arith.constant dense<0.000000e+00> : vector<2x8xf32>
    %274 = tpu.matmul %273, %4, %cst_70 {dimension_numbers = #tpu.dot_dimension_numbers<[1], [0], [0], [1], [0, 0, 1, 1], [], []>} : vector<2x128xbf16>, vector<128x8xbf16>, vector<2x8xf32> -> vector<2x8xf32>
    %275 = vector.broadcast %5 : vector<1x8xf32> to vector<2x8xf32>
    %276 = arith.addf %274, %275 : vector<2x8xf32>
    %277 = arith.index_cast %c6_i32 : i32 to index
    %c0_71 = arith.constant 0 : index
    %c0_72 = arith.constant 0 : index
    %278 = vector.load %arg6[%277, %c0_71, %c0_72] : memref<8x2x8xf32, #tpu.memory_space<vmem>>, vector<1x2x8xf32>
    %279 = vector.shape_cast %278 : vector<1x2x8xf32> to vector<2x8xf32>
    %280 = vector.shape_cast %276 : vector<2x8xf32> to vector<1x2x8xf32>
    tpu.vector_store %arg6[%277, %c0_71, %c0_72], %280 {strides = array<i32>} : memref<8x2x8xf32, #tpu.memory_space<vmem>>, vector<1x2x8xf32>,
    %c7_i32 = arith.constant 7 : i32
    %281 = arith.index_cast %c7_i32 : i32 to index
    %c0_73 = arith.constant 0 : index
    %c0_74 = arith.constant 0 : index
    %282 = vector.load %arg1[%281, %c0_73, %c0_74] : memref<8x2x512xf32, #tpu.memory_space<vmem>>, vector<1x2x512xf32>
    %283 = vector.shape_cast %282 : vector<1x2x512xf32> to vector<2x512xf32>
    %284 = arith.truncf %272 : vector<2x128xf32> to vector<2x128xbf16>
    %cst_75 = arith.constant dense<0.000000e+00> : vector<2x512xf32>
    %285 = tpu.matmul %284, %3, %cst_75 {dimension_numbers = #tpu.dot_dimension_numbers<[1], [0], [0], [1], [0, 0, 1, 1], [], []>} : vector<2x128xbf16>, vector<128x512xbf16>, vector<2x512xf32> -> vector<2x512xf32>
    %286 = arith.addf %283, %285 : vector<2x512xf32>
    %287 = vector.extract_strided_slice %286 {offsets = [0, 0], sizes = [2, 128], strides = [1, 1]} : vector<2x512xf32> to vector<2x128xf32>
    %288 = arith.negf %287 : vector<2x128xf32>
    %289 = math.exp %288 : vector<2x128xf32>
    %cst_76 = arith.constant 1.000000e+00 : f32
    %290 = vector.broadcast %cst_76 : f32 to vector<2x128xf32>
    %291 = arith.addf %290, %289 : vector<2x128xf32>
    %292 = arith.divf %290, %291 : vector<2x128xf32>
    %293 = vector.extract_strided_slice %286 {offsets = [0, 128], sizes = [2, 128], strides = [1, 1]} : vector<2x512xf32> to vector<2x128xf32>
    %294 = arith.negf %293 : vector<2x128xf32>
    %295 = math.exp %294 : vector<2x128xf32>
    %cst_77 = arith.constant 1.000000e+00 : f32
    %296 = vector.broadcast %cst_77 : f32 to vector<2x128xf32>
    %297 = arith.addf %296, %295 : vector<2x128xf32>
    %298 = arith.divf %296, %297 : vector<2x128xf32>
    %299 = vector.extract_strided_slice %286 {offsets = [0, 256], sizes = [2, 128], strides = [1, 1]} : vector<2x512xf32> to vector<2x128xf32>
    %300 = math.tanh %299 : vector<2x128xf32>
    %301 = vector.extract_strided_slice %286 {offsets = [0, 384], sizes = [2, 128], strides = [1, 1]} : vector<2x512xf32> to vector<2x128xf32>
    %302 = arith.negf %301 : vector<2x128xf32>
    %303 = math.exp %302 : vector<2x128xf32>
    %cst_78 = arith.constant 1.000000e+00 : f32
    %304 = vector.broadcast %cst_78 : f32 to vector<2x128xf32>
    %305 = arith.addf %304, %303 : vector<2x128xf32>
    %306 = arith.divf %304, %305 : vector<2x128xf32>
    %307 = arith.mulf %298, %270 : vector<2x128xf32>
    %308 = arith.mulf %292, %300 : vector<2x128xf32>
    %309 = arith.addf %307, %308 : vector<2x128xf32>
    %310 = math.tanh %309 : vector<2x128xf32>
    %311 = arith.mulf %306, %310 : vector<2x128xf32>
    %312 = arith.truncf %311 : vector<2x128xf32> to vector<2x128xbf16>
    %cst_79 = arith.constant dense<0.000000e+00> : vector<2x8xf32>
    %313 = tpu.matmul %312, %4, %cst_79 {dimension_numbers = #tpu.dot_dimension_numbers<[1], [0], [0], [1], [0, 0, 1, 1], [], []>} : vector<2x128xbf16>, vector<128x8xbf16>, vector<2x8xf32> -> vector<2x8xf32>
    %314 = vector.broadcast %5 : vector<1x8xf32> to vector<2x8xf32>
    %315 = arith.addf %313, %314 : vector<2x8xf32>
    %316 = arith.index_cast %c7_i32 : i32 to index
    %c0_80 = arith.constant 0 : index
    %c0_81 = arith.constant 0 : index
    %317 = vector.load %arg6[%316, %c0_80, %c0_81] : memref<8x2x8xf32, #tpu.memory_space<vmem>>, vector<1x2x8xf32>
    %318 = vector.shape_cast %317 : vector<1x2x8xf32> to vector<2x8xf32>
    %319 = vector.shape_cast %315 : vector<2x8xf32> to vector<1x2x8xf32>
    tpu.vector_store %arg6[%316, %c0_80, %c0_81], %319 {strides = array<i32>} : memref<8x2x8xf32, #tpu.memory_space<vmem>>, vector<1x2x8xf32>,
    %c8_i32 = arith.constant 8 : i32
    %c0_82 = arith.constant 0 : index
    %c0_83 = arith.constant 0 : index
    %320 = vector.load %arg7[%c0_82, %c0_83] : memref<2x128xf32, #tpu.memory_space<vmem>>, vector<2x128xf32>
    tpu.vector_store %arg7[%c0_82, %c0_83], %311 {strides = array<i32>} : memref<2x128xf32, #tpu.memory_space<vmem>>, vector<2x128xf32>,
    %c0_84 = arith.constant 0 : index
    %c0_85 = arith.constant 0 : index
    %321 = vector.load %arg8[%c0_84, %c0_85] : memref<2x128xf32, #tpu.memory_space<vmem>>, vector<2x128xf32>
    tpu.vector_store %arg8[%c0_84, %c0_85], %309 {strides = array<i32>} : memref<2x128xf32, #tpu.memory_space<vmem>>, vector<2x128xf32>,
    return
  }
  func.func @transform_0(%arg0: i32) -> (i32, i32, i32) {
    %c0_i32 = arith.constant 0 : i32
    %c0_i32_0 = arith.constant 0 : i32
    %c0_i32_1 = arith.constant 0 : i32
    return %arg0, %c0_i32, %c0_i32_0 : i32, i32, i32
  }
  func.func @transform_1(%arg0: i32) -> (i32, i32) {
    %c0_i32 = arith.constant 0 : i32
    %c0_i32_0 = arith.constant 0 : i32
    %c0_i32_1 = arith.constant 0 : i32
    return %c0_i32, %c0_i32_0 : i32, i32
  }
  func.func @transform_2(%arg0: i32) -> (i32, i32) {
    %c0_i32 = arith.constant 0 : i32
    %c0_i32_0 = arith.constant 0 : i32
    %c0_i32_1 = arith.constant 0 : i32
    return %c0_i32, %c0_i32_0 : i32, i32
  }
  func.func @transform_3(%arg0: i32) -> (i32, i32) {
    %c0_i32 = arith.constant 0 : i32
    %c0_i32_0 = arith.constant 0 : i32
    %c0_i32_1 = arith.constant 0 : i32
    return %c0_i32, %c0_i32_0 : i32, i32
  }
  func.func @transform_4(%arg0: i32) -> (i32, i32) {
    %c0_i32 = arith.constant 0 : i32
    %c0_i32_0 = arith.constant 0 : i32
    %c0_i32_1 = arith.constant 0 : i32
    return %c0_i32, %c0_i32_0 : i32, i32
  }
  func.func @transform_5(%arg0: i32) -> (i32, i32, i32) {
    %c0_i32 = arith.constant 0 : i32
    %c0_i32_0 = arith.constant 0 : i32
    %c0_i32_1 = arith.constant 0 : i32
    return %arg0, %c0_i32, %c0_i32_0 : i32, i32, i32
  }
}

</mosaic_0001>

<llo_original>
// kernel: rnn_two_crf_seq_forward.14
$region0: #{rnn_two_crf_seq_forward.14}
  #allocation0 [shape = 'u32[]', space=smem, size = 0x4, offset = 0x4, fixed_abs, tag = 'smem constant byte address 0x4 - core index']
  #allocation1 [shape = 'u32[72,128]{1,0:T(1,128)}', space=vmem, size = 0x9000, scoped, tag = 'internal scratch']
  %s0 = inlined_call_operand.vmem [shape: f32[8,2,8], index: 0, kind: input, shape index: {}]
  %s1 = inlined_call_operand.vmem [shape: s32[9,2,1], index: 1, kind: input, shape index: {}]
  %s2 = inlined_call_operand.vmem [shape: s32[2,1], index: 2, kind: input, shape index: {}]
  %s3 = inlined_call_operand.vmem [shape: f32[1,64], index: 3, kind: input, shape index: {}]
  %s4 = inlined_call_operand.vmem [shape: f32[1,8], index: 4, kind: input, shape index: {}]
  %s5 = inlined_call_operand.vmem [shape: f32[2,1], index: 5, kind: output, shape index: {}]
  %s6 = sld [smem:[#allocation0]]
  $region30: #{rnn_two_crf_seq_forward.14} parent=0
    _
  %s8 = ssub.s32 1, %s6
  %s9 = scalar_select 0, %s8, %s6
  // Predicated region
  $region2: #{rnn_two_crf_seq_forward.14} parent=0 // pred_check
    _
  $region3: #{rnn_two_crf_seq_forward.14} parent=0 // pred_check_branch
    %11 = sbr.rel (0) target = $region5
  $region4: #{rnn_two_crf_seq_forward.14} parent=0 // pred_region
    _
  $region5: #{rnn_two_crf_seq_forward.14} parent=0 // pred_fallthru
    _
  // Predicated region
  $region6: #{rnn_two_crf_seq_forward.14} parent=0 // pred_check
    _
  $region7: #{rnn_two_crf_seq_forward.14} parent=0 // pred_check_branch
    %13 = sbr.rel (0) target = $region9
  $region8: #{rnn_two_crf_seq_forward.14} parent=0 // pred_region
    _
  $region9: #{rnn_two_crf_seq_forward.14} parent=0 // pred_fallthru
    _
  // Predicated region
  $region10: #{rnn_two_crf_seq_forward.14} parent=0 // pred_check
    _
  $region11: #{rnn_two_crf_seq_forward.14} parent=0 // pred_check_branch
    %15 = sbr.rel (0) target = $region13
  $region12: #{rnn_two_crf_seq_forward.14} parent=0 // pred_region
    _
  $region13: #{rnn_two_crf_seq_forward.14} parent=0 // pred_fallthru
    _
  // Predicated region
  $region14: #{rnn_two_crf_seq_forward.14} parent=0 // pred_check
    _
  $region15: #{rnn_two_crf_seq_forward.14} parent=0 // pred_check_branch
    %17 = sbr.rel (0) target = $region17
  $region16: #{rnn_two_crf_seq_forward.14} parent=0 // pred_region
    _
  $region17: #{rnn_two_crf_seq_forward.14} parent=0 // pred_fallthru
    _
  // Predicated region
  $region18: #{rnn_two_crf_seq_forward.14} parent=0 // pred_check
    _
  $region19: #{rnn_two_crf_seq_forward.14} parent=0 // pred_check_branch
    %19 = sbr.rel (0) target = $region21
  $region20: #{rnn_two_crf_seq_forward.14} parent=0 // pred_region
    _
  $region21: #{rnn_two_crf_seq_forward.14} parent=0 // pred_fallthru
    _
  %v20 = vld [vmem:[%s1] sm:$0x3]
  %v21 = vld [vmem:[%s1 + $0x2] sm:$0x3]
  %v22 = vld [vmem:[%s1 + $0x4] sm:$0x3]
  %v23 = vld [vmem:[%s1 + $0x6] sm:$0x3]
  %v24 = vld [vmem:[%s1 + $0x8] sm:$0x3]
  %v25 = vld [vmem:[%s1 + $0xa] sm:$0x3]
  %v26 = vld [vmem:[%s1 + $0xc] sm:$0x3]
  %v27 = vld [vmem:[%s1 + $0xe] sm:$0x3]
  %v28 = vld [vmem:[%s1 + $0x10] sm:$0x3]
  %v29 = vld [vmem:[%s2] sm:$0x3]
  %v30 = vlaneseq
  %v31 = vand.u32 %v30, 127
  %32 = vset.pattern.permute.xlu0 0
  %33 = vperm.xlu0 %32, %v21
  %v34 = vpop.permute.xlu0 %33
  %35 = vset.pattern.permute.xlu0 0
  %36 = vperm.xlu0 %35, %v22
  %v37 = vpop.permute.xlu0 %36
  %38 = vset.pattern.permute.xlu0 0
  %39 = vperm.xlu0 %38, %v23
  %v40 = vpop.permute.xlu0 %39
  %41 = vset.pattern.permute.xlu0 0
  %42 = vperm.xlu0 %41, %v24
  %v43 = vpop.permute.xlu0 %42
  %44 = vset.pattern.permute.xlu0 0
  %45 = vperm.xlu0 %44, %v25
  %v46 = vpop.permute.xlu0 %45
  %47 = vset.pattern.permute.xlu0 0
  %48 = vperm.xlu0 %47, %v26
  %v49 = vpop.permute.xlu0 %48
  %50 = vset.pattern.permute.xlu0 0
  %51 = vperm.xlu0 %50, %v27
  %v52 = vpop.permute.xlu0 %51
  %53 = vset.pattern.permute.xlu0 0
  %54 = vperm.xlu0 %53, %v28
  %v55 = vpop.permute.xlu0 %54
  %vm56 = vcmp.eq.s32.totalorder %v31, %v34
  %vm57 = vcmp.eq.s32.totalorder %v31, %v37
  %vm58 = vcmp.eq.s32.totalorder %v31, %v40
  %vm59 = vcmp.eq.s32.totalorder %v31, %v43
  %vm60 = vcmp.eq.s32.totalorder %v31, %v46
  %vm61 = vcmp.eq.s32.totalorder %v31, %v49
  %vm62 = vcmp.eq.s32.totalorder %v31, %v52
  %vm63 = vcmp.eq.s32.totalorder %v31, %v55
  %v64 = vsel %vm56, 1, 0
  %v65 = vsel %vm57, 1, 0
  %v66 = vsel %vm58, 1, 0
  %v67 = vsel %vm59, 1, 0
  %v68 = vsel %vm60, 1, 0
  %v69 = vsel %vm61, 1, 0
  %v70 = vsel %vm62, 1, 0
  %v71 = vsel %vm63, 1, 0
  %v72 = vcvt.s32.f32 %v64
  %v73 = vcvt.s32.f32 %v65
  %v74 = vcvt.s32.f32 %v66
  %v75 = vcvt.s32.f32 %v67
  %v76 = vcvt.s32.f32 %v68
  %v77 = vcvt.s32.f32 %v69
  %v78 = vcvt.s32.f32 %v70
  %v79 = vcvt.s32.f32 %v71
  %v80 = vld [vmem:[%s0] sm:$0x3]
  %v81 = vld [vmem:[%s0 + $0x2] sm:$0x3]
  %v82 = vld [vmem:[%s0 + $0x4] sm:$0x3]
  %v83 = vld [vmem:[%s0 + $0x6] sm:$0x3]
  %v84 = vld [vmem:[%s0 + $0x8] sm:$0x3]
  %v85 = vld [vmem:[%s0 + $0xa] sm:$0x3]
  %v86 = vld [vmem:[%s0 + $0xc] sm:$0x3]
  %v87 = vld [vmem:[%s0 + $0xe] sm:$0x3]
  %v88 = vmul.f32 %v80, %v72
  %v89 = vmul.f32 %v81, %v73
  %v90 = vmul.f32 %v82, %v74
  %v91 = vmul.f32 %v83, %v75
  %v92 = vmul.f32 %v84, %v76
  %v93 = vmul.f32 %v85, %v77
  %v94 = vmul.f32 %v86, %v78
  %v95 = vmul.f32 %v87, %v79
  %vm96 = vcmask 58368
  %v97 = vsel %vm96, %v88, 0.0
  %98 = vadd.xlane.f32.xlu0 %v97
  %v99 = vpop.xlane.xlu0 %98
  %v100 = vsel %vm96, %v89, 0.0
  %101 = vadd.xlane.f32.xlu0 %v100
  %v102 = vpop.xlane.xlu0 %101
  %v103 = vsel %vm96, %v90, 0.0
  %104 = vadd.xlane.f32.xlu0 %v103
  %v105 = vpop.xlane.xlu0 %104
  %v106 = vsel %vm96, %v91, 0.0
  %107 = vadd.xlane.f32.xlu0 %v106
  %v108 = vpop.xlane.xlu0 %107
  %v109 = vsel %vm96, %v92, 0.0
  %110 = vadd.xlane.f32.xlu0 %v109
  %v111 = vpop.xlane.xlu0 %110
  %v112 = vsel %vm96, %v93, 0.0
  %113 = vadd.xlane.f32.xlu0 %v112
  %v114 = vpop.xlane.xlu0 %113
  %v115 = vsel %vm96, %v94, 0.0
  %116 = vadd.xlane.f32.xlu0 %v115
  %v117 = vpop.xlane.xlu0 %116
  %v118 = vsel %vm96, %v95, 0.0
  %119 = vadd.xlane.f32.xlu0 %v118
  %v120 = vpop.xlane.xlu0 %119
  %v121 = vmul.u32 %v21, 8
  %v122 = vmul.u32 %v22, 8
  %v123 = vmul.u32 %v23, 8
  %v124 = vmul.u32 %v24, 8
  %v125 = vmul.u32 %v25, 8
  %v126 = vmul.u32 %v26, 8
  %v127 = vmul.u32 %v27, 8
  %v128 = vmul.u32 %v28, 8
  %v129 = vadd.s32 %v121, %v20
  %v130 = vadd.s32 %v122, %v21
  %v131 = vadd.s32 %v123, %v22
  %v132 = vadd.s32 %v124, %v23
  %v133 = vadd.s32 %v125, %v24
  %v134 = vadd.s32 %v126, %v25
  %v135 = vadd.s32 %v127, %v26
  %v136 = vadd.s32 %v128, %v27
  %137 = vset.pattern.permute.xlu0 0
  %138 = vperm.xlu0 %137, %v129
  %v139 = vpop.permute.xlu0 %138
  %140 = vset.pattern.permute.xlu0 0
  %141 = vperm.xlu0 %140, %v130
  %v142 = vpop.permute.xlu0 %141
  %143 = vset.pattern.permute.xlu0 0
  %144 = vperm.xlu0 %143, %v131
  %v145 = vpop.permute.xlu0 %144
  %146 = vset.pattern.permute.xlu0 0
  %147 = vperm.xlu0 %146, %v132
  %v148 = vpop.permute.xlu0 %147
  %149 = vset.pattern.permute.xlu0 0
  %150 = vperm.xlu0 %149, %v133
  %v151 = vpop.permute.xlu0 %150
  %152 = vset.pattern.permute.xlu0 0
  %153 = vperm.xlu0 %152, %v134
  %v154 = vpop.permute.xlu0 %153
  %155 = vset.pattern.permute.xlu0 0
  %156 = vperm.xlu0 %155, %v135
  %v157 = vpop.permute.xlu0 %156
  %158 = vset.pattern.permute.xlu0 0
  %159 = vperm.xlu0 %158, %v136
  %v160 = vpop.permute.xlu0 %159
  %vm161 = vcmp.eq.s32.totalorder %v31, %v139
  %vm162 = vcmp.eq.s32.totalorder %v31, %v142
  %vm163 = vcmp.eq.s32.totalorder %v31, %v145
  %vm164 = vcmp.eq.s32.totalorder %v31, %v148
  %vm165 = vcmp.eq.s32.totalorder %v31, %v151
  %vm166 = vcmp.eq.s32.totalorder %v31, %v154
  %vm167 = vcmp.eq.s32.totalorder %v31, %v157
  %vm168 = vcmp.eq.s32.totalorder %v31, %v160
  %v169 = vsel %vm161, 1, 0
  %v170 = vsel %vm162, 1, 0
  %v171 = vsel %vm163, 1, 0
  %v172 = vsel %vm164, 1, 0
  %v173 = vsel %vm165, 1, 0
  %v174 = vsel %vm166, 1, 0
  %v175 = vsel %vm167, 1, 0
  %v176 = vsel %vm168, 1, 0
  %v177 = vcvt.s32.f32 %v169
  %v178 = vcvt.s32.f32 %v170
  %v179 = vcvt.s32.f32 %v171
  %v180 = vcvt.s32.f32 %v172
  %v181 = vcvt.s32.f32 %v173
  %v182 = vcvt.s32.f32 %v174
  %v183 = vcvt.s32.f32 %v175
  %v184 = vcvt.s32.f32 %v176
  %v185 = vld [vmem:[%s3] sm:$0x1]
  %v187 = vperm.slane %v185, 0
  %v189 = vmul.f32 %v177, %v187
  %v190 = vmul.f32 %v178, %v187
  %v191 = vmul.f32 %v179, %v187
  %v192 = vmul.f32 %v180, %v187
  %v193 = vmul.f32 %v181, %v187
  %v194 = vmul.f32 %v182, %v187
  %v195 = vmul.f32 %v183, %v187
  %v196 = vmul.f32 %v184, %v187
  %vm197 = vcmask 517120
  %v198 = vsel %vm197, %v189, 0.0
  %199 = vadd.xlane.f32.xlu0 %v198
  %v200 = vpop.xlane.xlu0 %199
  %v201 = vsel %vm197, %v190, 0.0
  %202 = vadd.xlane.f32.xlu0 %v201
  %v203 = vpop.xlane.xlu0 %202
  %v204 = vsel %vm197, %v191, 0.0
  %205 = vadd.xlane.f32.xlu0 %v204
  %v206 = vpop.xlane.xlu0 %205
  %v207 = vsel %vm197, %v192, 0.0
  %208 = vadd.xlane.f32.xlu0 %v207
  %v209 = vpop.xlane.xlu0 %208
  %v210 = vsel %vm197, %v193, 0.0
  %211 = vadd.xlane.f32.xlu0 %v210
  %v212 = vpop.xlane.xlu0 %211
  %v213 = vsel %vm197, %v194, 0.0
  %214 = vadd.xlane.f32.xlu0 %v213
  %v215 = vpop.xlane.xlu0 %214
  %v216 = vsel %vm197, %v195, 0.0
  %217 = vadd.xlane.f32.xlu0 %v216
  %v218 = vpop.xlane.xlu0 %217
  %v219 = vsel %vm197, %v196, 0.0
  %220 = vadd.xlane.f32.xlu0 %v219
  %v221 = vpop.xlane.xlu0 %220
  %vm222 = vcmp.gt.s32.totalorder %v29, 0
  %vm223 = vcmp.gt.s32.totalorder %v29, 1
  %vm224 = vcmp.gt.s32.totalorder %v29, 2
  %vm225 = vcmp.gt.s32.totalorder %v29, 3
  %vm226 = vcmp.gt.s32.totalorder %v29, 4
  %vm227 = vcmp.gt.s32.totalorder %v29, 5
  %vm228 = vcmp.gt.s32.totalorder %v29, 6
  %vm229 = vcmp.gt.s32.totalorder %v29, 7
  %v230 = vsel %vm222, 1, 0
  %v231 = vsel %vm223, 1, 0
  %v232 = vsel %vm224, 1, 0
  %v233 = vsel %vm225, 1, 0
  %v234 = vsel %vm226, 1, 0
  %v235 = vsel %vm227, 1, 0
  %v236 = vsel %vm228, 1, 0
  %v237 = vsel %vm229, 1, 0
  %v238 = vcvt.s32.f32 %v230
  %v239 = vcvt.s32.f32 %v231
  %v240 = vcvt.s32.f32 %v232
  %v241 = vcvt.s32.f32 %v233
  %v242 = vcvt.s32.f32 %v234
  %v243 = vcvt.s32.f32 %v235
  %v244 = vcvt.s32.f32 %v236
  %v245 = vcvt.s32.f32 %v237
  %v246 = vadd.f32 %v99, %v200
  %v247 = vadd.f32 %v102, %v203
  %v248 = vadd.f32 %v105, %v206
  %v249 = vadd.f32 %v108, %v209
  %v250 = vadd.f32 %v111, %v212
  %v251 = vadd.f32 %v114, %v215
  %v252 = vadd.f32 %v117, %v218
  %v253 = vadd.f32 %v120, %v221
  %v254 = vmul.f32 %v246, %v238
  %v255 = vmul.f32 %v247, %v239
  %v256 = vmul.f32 %v248, %v240
  %v257 = vmul.f32 %v249, %v241
  %v258 = vmul.f32 %v250, %v242
  %v259 = vmul.f32 %v251, %v243
  %v260 = vmul.f32 %v252, %v244
  %v261 = vmul.f32 %v253, %v245
  %vm262 = vcmask 1024
  %v263 = vsel %vm262, %v254, 0.0
  %v264 = vsel %vm262, %v255, 0.0
  %v265 = vadd.f32 %v263, %v264
  %v266 = vsel %vm262, %v256, 0.0
  %v267 = vadd.f32 %v265, %v266
  %v268 = vsel %vm262, %v257, 0.0
  %v269 = vadd.f32 %v267, %v268
  %v270 = vsel %vm262, %v258, 0.0
  %v271 = vadd.f32 %v269, %v270
  %v272 = vsel %vm262, %v259, 0.0
  %v273 = vadd.f32 %v271, %v272
  %v274 = vsel %vm262, %v260, 0.0
  %v275 = vadd.f32 %v273, %v274
  %v276 = vsel %vm262, %v261, 0.0
  %v277 = vadd.f32 %v275, %v276
  %278 = vset.pattern.permute.xlu0 0
  %279 = vperm.xlu0 %278, %v20
  %v280 = vpop.permute.xlu0 %279
  %vm281 = vcmp.eq.s32.totalorder %v31, %v280
  %v282 = vsel %vm281, 1, 0
  %v283 = vcvt.s32.f32 %v282
  %v284 = vld [vmem:[%s4] sm:$0x1]
  %v286 = vperm.slane %v284, 0
  %v288 = vmul.f32 %v283, %v286
  %v289 = vmul.f32 %v72, %v286
  %v290 = vmul.f32 %v73, %v286
  %v291 = vmul.f32 %v74, %v286
  %v292 = vmul.f32 %v75, %v286
  %v293 = vmul.f32 %v76, %v286
  %v294 = vmul.f32 %v77, %v286
  %v295 = vmul.f32 %v78, %v286
  %v296 = vmul.f32 %v79, %v286
  %v297 = vsel %vm96, %v288, 0.0
  %298 = vadd.xlane.f32.xlu0 %v297
  %v299 = vpop.xlane.xlu0 %298
  %v300 = vsel %vm96, %v289, 0.0
  %301 = vadd.xlane.f32.xlu0 %v300
  %v302 = vpop.xlane.xlu0 %301
  %v303 = vsel %vm96, %v290, 0.0
  %304 = vadd.xlane.f32.xlu0 %v303
  %v305 = vpop.xlane.xlu0 %304
  %v306 = vsel %vm96, %v291, 0.0
  %307 = vadd.xlane.f32.xlu0 %v306
  %v308 = vpop.xlane.xlu0 %307
  %v309 = vsel %vm96, %v292, 0.0
  %310 = vadd.xlane.f32.xlu0 %v309
  %v311 = vpop.xlane.xlu0 %310
  %v312 = vsel %vm96, %v293, 0.0
  %313 = vadd.xlane.f32.xlu0 %v312
  %v314 = vpop.xlane.xlu0 %313
  %v315 = vsel %vm96, %v294, 0.0
  %316 = vadd.xlane.f32.xlu0 %v315
  %v317 = vpop.xlane.xlu0 %316
  %v318 = vsel %vm96, %v295, 0.0
  %319 = vadd.xlane.f32.xlu0 %v318
  %v320 = vpop.xlane.xlu0 %319
  %v321 = vsel %vm96, %v296, 0.0
  %322 = vadd.xlane.f32.xlu0 %v321
  %v323 = vpop.xlane.xlu0 %322
  %vm324 = vcmp.eq.s32.totalorder %v29, 0
  %vm325 = vcmp.eq.s32.totalorder %v29, 1
  %vm326 = vcmp.eq.s32.totalorder %v29, 2
  %vm327 = vcmp.eq.s32.totalorder %v29, 3
  %vm328 = vcmp.eq.s32.totalorder %v29, 4
  %vm329 = vcmp.eq.s32.totalorder %v29, 5
  %vm330 = vcmp.eq.s32.totalorder %v29, 6
  %vm331 = vcmp.eq.s32.totalorder %v29, 7
  %vm332 = vcmp.eq.s32.totalorder %v29, 8
  %v333 = vsel %vm324, 1, 0
  %v334 = vsel %vm325, 1, 0
  %v335 = vsel %vm326, 1, 0
  %v336 = vsel %vm327, 1, 0
  %v337 = vsel %vm328, 1, 0
  %v338 = vsel %vm329, 1, 0
  %v339 = vsel %vm330, 1, 0
  %v340 = vsel %vm331, 1, 0
  %v341 = vsel %vm332, 1, 0
  %v342 = vcvt.s32.f32 %v333
  %v343 = vcvt.s32.f32 %v334
  %v344 = vcvt.s32.f32 %v335
  %v345 = vcvt.s32.f32 %v336
  %v346 = vcvt.s32.f32 %v337
  %v347 = vcvt.s32.f32 %v338
  %v348 = vcvt.s32.f32 %v339
  %v349 = vcvt.s32.f32 %v340
  %v350 = vcvt.s32.f32 %v341
  %v351 = vmul.f32 %v299, %v342
  %v352 = vmul.f32 %v302, %v343
  %v353 = vmul.f32 %v305, %v344
  %v354 = vmul.f32 %v308, %v345
  %v355 = vmul.f32 %v311, %v346
  %v356 = vmul.f32 %v314, %v347
  %v357 = vmul.f32 %v317, %v348
  %v358 = vmul.f32 %v320, %v349
  %v359 = vmul.f32 %v323, %v350
  %v360 = vsel %vm262, %v351, 0.0
  %v361 = vsel %vm262, %v352, 0.0
  %v362 = vadd.f32 %v360, %v361
  %v363 = vsel %vm262, %v353, 0.0
  %v364 = vadd.f32 %v362, %v363
  %v365 = vsel %vm262, %v354, 0.0
  %v366 = vadd.f32 %v364, %v365
  %v367 = vsel %vm262, %v355, 0.0
  %v368 = vadd.f32 %v366, %v367
  %v369 = vsel %vm262, %v356, 0.0
  %v370 = vadd.f32 %v368, %v369
  %v371 = vsel %vm262, %v357, 0.0
  %v372 = vadd.f32 %v370, %v371
  %v373 = vsel %vm262, %v358, 0.0
  %v374 = vadd.f32 %v372, %v373
  %v375 = vsel %vm262, %v359, 0.0
  %v376 = vadd.f32 %v374, %v375
  %v377 = vadd.f32 %v277, %v376
  %378 = vst.msk [vmem:[%s5] sm:$0x3] %vm262, %v377
  // Predicated region
  $region22: #{rnn_two_crf_seq_forward.14} parent=0 // pred_check
    _
  $region23: #{rnn_two_crf_seq_forward.14} parent=0 // pred_check_branch
    %380 = sbr.rel (0) target = $region25
  $region24: #{rnn_two_crf_seq_forward.14} parent=0 // pred_region
    _
  $region25: #{rnn_two_crf_seq_forward.14} parent=0 // pred_fallthru
    _
  // Predicated region
  $region26: #{rnn_two_crf_seq_forward.14} parent=0 // pred_check
    _
  $region27: #{rnn_two_crf_seq_forward.14} parent=0 // pred_check_branch
    %382 = sbr.rel (0) target = $region29
  $region28: #{rnn_two_crf_seq_forward.14} parent=0 // pred_region
    _
  $region29: #{rnn_two_crf_seq_forward.14} parent=0 // pred_fallthru
    _

// kernel: rnn_two_crf_seq_forward.8
$region0: #{rnn_two_crf_seq_forward.8}
  #allocation0 [shape = 'u32[]', space=smem, size = 0x4, offset = 0x4, fixed_abs, tag = 'smem constant byte address 0x4 - core index']
  #allocation1 [shape = 'u32[72,128]{1,0:T(1,128)}', space=vmem, size = 0x9000, scoped, tag = 'internal scratch']
  %s0 = inlined_call_operand.vmem [shape: bf16[16,32], index: 0, kind: input, shape index: {}]
  %s1 = inlined_call_operand.hbm [shape: bf16[32,512], index: 1, kind: input, shape index: {}]
  %s2 = inlined_call_operand.vmem [shape: f32[1,512], index: 2, kind: input, shape index: {}]
  %s3 = inlined_call_operand.vmem [shape: f32[16,512], index: 3, kind: output, shape index: {}]
  %s4 = sld [smem:[#allocation0]]
  $region26: #{rnn_two_crf_seq_forward.8} parent=0
    _
  %s6 = ssub.s32 1, %s4
  %s7 = scalar_select 0, %s6, %s4
  $region1: #{rnn_two_crf_seq_forward.8} parent=0
    #allocation2 [shape = 'u8[32768]{0}', space=vmem, size = 0x8000, scoped, tag = 'input window, operand 1, single buffered']
    #allocation3 [shape = 's32[1]{0}', space=sflag, size = 0x4, scoped, tag = 'scoped memory for rnn_two_crf_seq_forward.8']
    %8 = vsyncpa [#allocation3], 0
    // Predicated region
    $region2: #{rnn_two_crf_seq_forward.8} parent=1 // pred_check
      _
    $region3: #{rnn_two_crf_seq_forward.8} parent=1 // pred_check_branch
      %10 = sbr.rel (0) target = $region5
    $region4: #{rnn_two_crf_seq_forward.8} parent=1 // pred_region
      _
    $region5: #{rnn_two_crf_seq_forward.8} parent=1 // pred_fallthru
      _
    // Predicated region
    $region6: #{rnn_two_crf_seq_forward.8} parent=1 // pred_check
      _
    $region7: #{rnn_two_crf_seq_forward.8} parent=1 // pred_check_branch
      %12 = sbr.rel (0) target = $region9
    $region8: #{rnn_two_crf_seq_forward.8} parent=1 // pred_region
      %14 = vsyncadd [#allocation3], 0
      %s15 = sshll.u32 %s1, 4
      %s16 = int_to_ptr.hbm [resolvable:$true] %s15
      %s17 = sshll.u32 [#allocation2], 4
      %s18 = int_to_ptr.vmem [resolvable:$true] %s17
      %23 = dma.hbm_to_vmem [thread:$0]  %s16, 1024, %s18, [#allocation3], 256, 256, 16
    $region9: #{rnn_two_crf_seq_forward.8} parent=1 // pred_fallthru
      _
    // Predicated region
    $region10: #{rnn_two_crf_seq_forward.8} parent=1 // pred_check
      _
    $region11: #{rnn_two_crf_seq_forward.8} parent=1 // pred_check_branch
      %25 = sbr.rel (0) target = $region13
    $region12: #{rnn_two_crf_seq_forward.8} parent=1 // pred_region
      _
    $region13: #{rnn_two_crf_seq_forward.8} parent=1 // pred_fallthru
      _
    // Predicated region
    $region14: #{rnn_two_crf_seq_forward.8} parent=1 // pred_check
      _
    $region15: #{rnn_two_crf_seq_forward.8} parent=1 // pred_check_branch
      %27 = sbr.rel (0) target = $region17
    $region16: #{rnn_two_crf_seq_forward.8} parent=1 // pred_region
      %29 = dma.done [#allocation3], 1024
    $region17: #{rnn_two_crf_seq_forward.8} parent=1 // pred_fallthru
      _
    %v31 = vld [vmem:[%s0] sm:$0xf]
    %v32 = vld [vmem:[%s0 + $0x4] sm:$0xf]
    %v33 = vld [vmem:[#allocation2] sm:$0xff]
    %v34 = vld [vmem:[#allocation2 + $0x8] sm:$0xff]
    %v35 = vld [vmem:[#allocation2 + $0x10] sm:$0xff]
    %v36 = vld [vmem:[#allocation2 + $0x18] sm:$0xff]
    %v37 = vld [vmem:[#allocation2 + $0x20] sm:$0xff]
    %v38 = vld [vmem:[#allocation2 + $0x28] sm:$0xff]
    %v39 = vld [vmem:[#allocation2 + $0x30] sm:$0xff]
    %v40 = vld [vmem:[#allocation2 + $0x38] sm:$0xff]
    %v41 = vld [vmem:[%s2] sm:$0xf]
    %v43 = vperm.slane %v41, 0
    %v44 = vperm.slane %v41, 1
    %v45 = vperm.slane %v41, 2
    %v46 = vperm.slane %v41, 3
    %v53 = vunpack.c.l.b16 %v31
    %v54 = vunpack.c.l.b16 %v32
    %v55 = vpack.c.b16 %v54, %v53
    %v64 = vunpack.c.l.b16 %v33
    %v65 = vunpack.c.h.b16 %v33
    %v66 = vunpack.c.l.b16 %v34
    %v67 = vunpack.c.h.b16 %v34
    %v68 = vunpack.c.l.b16 %v35
    %v69 = vunpack.c.h.b16 %v35
    %v70 = vunpack.c.l.b16 %v36
    %v71 = vunpack.c.h.b16 %v36
    %v72 = vunpack.c.l.b16 %v37
    %v73 = vunpack.c.h.b16 %v37
    %v74 = vunpack.c.l.b16 %v38
    %v75 = vunpack.c.h.b16 %v38
    %v76 = vunpack.c.l.b16 %v39
    %v77 = vunpack.c.h.b16 %v39
    %v78 = vunpack.c.l.b16 %v40
    %v79 = vunpack.c.h.b16 %v40
    %v80 = vpack.c.b16 %v68, %v64
    %v81 = vpack.c.b16 %v69, %v65
    %v82 = vpack.c.b16 %v70, %v66
    %v83 = vpack.c.b16 %v71, %v67
    %v84 = vpack.c.b16 %v76, %v72
    %v85 = vpack.c.b16 %v77, %v73
    %v86 = vpack.c.b16 %v78, %v74
    %v87 = vpack.c.b16 %v79, %v75
    %vm96 = vcmask 261120
    %v98 = vsel %vm96, %v55, 0
    %100 = vmatpush.bf16.msra.mxu0 0
    %101 = vmatpush.bf16.msra.mxu0 0
    %102 = vmatpush.bf16.msra.mxu0 0
    %103 = vmatpush.bf16.msra.mxu0 0
    %104 = vmatpush.bf16.msra.mxu0 0
    %105 = vmatpush.bf16.msra.mxu0 0
    %106 = vmatpush.bf16.msra.mxu0 %v84
    %107 = vmatpush.bf16.msra.mxu0 %v80
    %108 = vmatmul.bf16.gmra.mxu0 %v98
    %v109 = vpop.f32.mrf.mxu0
    %v110 = vadd.f32 %v43, %v109
    %v111 = vpop.f32.mrf.mxu0
    %v112 = vadd.f32 %v43, %v111
    %113 = vdwg.mxu0
    %114 = vmatpush.bf16.msra.mxu0 0
    %115 = vmatpush.bf16.msra.mxu0 0
    %116 = vmatpush.bf16.msra.mxu0 0
    %117 = vmatpush.bf16.msra.mxu0 0
    %118 = vmatpush.bf16.msra.mxu0 0
    %119 = vmatpush.bf16.msra.mxu0 0
    %120 = vmatpush.bf16.msra.mxu0 %v85
    %121 = vmatpush.bf16.msra.mxu0 %v81
    %122 = vmatmul.bf16.gmra.mxu0 %v98
    %v123 = vpop.f32.mrf.mxu0
    %v124 = vadd.f32 %v44, %v123
    %v125 = vpop.f32.mrf.mxu0
    %v126 = vadd.f32 %v44, %v125
    %127 = vdwg.mxu0
    %128 = vmatpush.bf16.msra.mxu0 0
    %129 = vmatpush.bf16.msra.mxu0 0
    %130 = vmatpush.bf16.msra.mxu0 0
    %131 = vmatpush.bf16.msra.mxu0 0
    %132 = vmatpush.bf16.msra.mxu0 0
    %133 = vmatpush.bf16.msra.mxu0 0
    %134 = vmatpush.bf16.msra.mxu0 %v86
    %135 = vmatpush.bf16.msra.mxu0 %v82
    %136 = vmatmul.bf16.gmra.mxu0 %v98
    %v137 = vpop.f32.mrf.mxu0
    %v138 = vadd.f32 %v45, %v137
    %v139 = vpop.f32.mrf.mxu0
    %v140 = vadd.f32 %v45, %v139
    %141 = vdwg.mxu0
    %142 = vmatpush.bf16.msra.mxu0 0
    %143 = vmatpush.bf16.msra.mxu0 0
    %144 = vmatpush.bf16.msra.mxu0 0
    %145 = vmatpush.bf16.msra.mxu0 0
    %146 = vmatpush.bf16.msra.mxu0 0
    %147 = vmatpush.bf16.msra.mxu0 0
    %148 = vmatpush.bf16.msra.mxu0 %v87
    %149 = vmatpush.bf16.msra.mxu0 %v83
    %150 = vmatmul.bf16.gmra.mxu0 %v98
    %v151 = vpop.f32.mrf.mxu0
    %v152 = vadd.f32 %v46, %v151
    %v153 = vpop.f32.mrf.mxu0
    %v154 = vadd.f32 %v46, %v153
    %155 = vdwg.mxu0
    %156 = vst [vmem:[%s3] sm:$0xff] %v110
    %157 = vst [vmem:[%s3 + $0x8] sm:$0xff] %v124
    %158 = vst [vmem:[%s3 + $0x10] sm:$0xff] %v138
    %159 = vst [vmem:[%s3 + $0x18] sm:$0xff] %v152
    %160 = vst [vmem:[%s3 + $0x20] sm:$0xff] %v112
    %161 = vst [vmem:[%s3 + $0x28] sm:$0xff] %v126
    %162 = vst [vmem:[%s3 + $0x30] sm:$0xff] %v140
    %163 = vst [vmem:[%s3 + $0x38] sm:$0xff] %v154
    // Predicated region
    $region18: #{rnn_two_crf_seq_forward.8} parent=1 // pred_check
      _
    $region19: #{rnn_two_crf_seq_forward.8} parent=1 // pred_check_branch
      %165 = sbr.rel (0) target = $region21
    $region20: #{rnn_two_crf_seq_forward.8} parent=1 // pred_region
      _
    $region21: #{rnn_two_crf_seq_forward.8} parent=1 // pred_fallthru
      _
    // Predicated region
    $region22: #{rnn_two_crf_seq_forward.8} parent=1 // pred_check
      _
    $region23: #{rnn_two_crf_seq_forward.8} parent=1 // pred_check_branch
      %167 = sbr.rel (0) target = $region25
    $region24: #{rnn_two_crf_seq_forward.8} parent=1 // pred_region
      _
    $region25: #{rnn_two_crf_seq_forward.8} parent=1 // pred_fallthru
      _
    %168 = vsyncpa [#allocation3], 1

// kernel: rnn_two_crf_seq_forward.10
$region0: #{rnn_two_crf_seq_forward.10}
  #allocation0 [shape = 'u32[]', space=smem, size = 0x4, offset = 0x4, fixed_abs, tag = 'smem constant byte address 0x4 - core index']
  #allocation1 [shape = 'u32[72,128]{1,0:T(1,128)}', space=vmem, size = 0x9000, scoped, tag = 'internal scratch']
  #allocation2 [shape = 'f32[2,8]{1,0:T(2,128)}', space=vmem, size = 0x400, scoped, tag = 'scratch operand']
  %s0 = inlined_call_operand.vmem [shape: f32[8,2,8], index: 0, kind: input, shape index: {}]
  %s1 = inlined_call_operand.vmem [shape: f32[8,8], index: 1, kind: input, shape index: {}]
  %s2 = inlined_call_operand.vmem [shape: s32[2,1], index: 2, kind: input, shape index: {}]
  %s3 = inlined_call_operand.vmem [shape: f32[2,1], index: 3, kind: output, shape index: {}]
  %s4 = sld [smem:[#allocation0]]
  $region30: #{rnn_two_crf_seq_forward.10} parent=0
    _
  %s6 = ssub.s32 1, %s4
  %s7 = scalar_select 0, %s6, %s4
  // Predicated region
  $region2: #{rnn_two_crf_seq_forward.10} parent=0 // pred_check
    _
  $region3: #{rnn_two_crf_seq_forward.10} parent=0 // pred_check_branch
    %9 = sbr.rel (0) target = $region5
  $region4: #{rnn_two_crf_seq_forward.10} parent=0 // pred_region
    _
  $region5: #{rnn_two_crf_seq_forward.10} parent=0 // pred_fallthru
    _
  // Predicated region
  $region6: #{rnn_two_crf_seq_forward.10} parent=0 // pred_check
    _
  $region7: #{rnn_two_crf_seq_forward.10} parent=0 // pred_check_branch
    %11 = sbr.rel (0) target = $region9
  $region8: #{rnn_two_crf_seq_forward.10} parent=0 // pred_region
    _
  $region9: #{rnn_two_crf_seq_forward.10} parent=0 // pred_fallthru
    _
  // Predicated region
  $region10: #{rnn_two_crf_seq_forward.10} parent=0 // pred_check
    _
  $region11: #{rnn_two_crf_seq_forward.10} parent=0 // pred_check_branch
    %13 = sbr.rel (0) target = $region13
  $region12: #{rnn_two_crf_seq_forward.10} parent=0 // pred_region
    _
  $region13: #{rnn_two_crf_seq_forward.10} parent=0 // pred_fallthru
    _
  %p14 = scmp.eq.s32.totalorder 0, 0
  // Predicated region
  $region14: #{rnn_two_crf_seq_forward.10} parent=0 // pred_check
    %p15 = pneg %p14
  $region15: #{rnn_two_crf_seq_forward.10} parent=0 // pred_check_branch
    %17 = sbr.rel (%p15) target = $region17
  $region16: #{rnn_two_crf_seq_forward.10} parent=0 // pred_region
    %v18 = vlaneseq
    %v19 = vand.u32 %v18, 127
    %vm20 = vcmp.eq.s32.totalorder %v19, 1
    %v21 = vsel %vm20, 0.0, -10000.0
    %vm22 = vcmask 58368
    %23 = vst.msk [vmem:[#allocation2] sm:$0x3] %vm22, %v21
  $region17: #{rnn_two_crf_seq_forward.10} parent=0 // pred_fallthru
    _
  %v24 = vld [vmem:[%s1] sm:$0xff]
  %v25 = vld [vmem:[%s2] sm:$0x3]
  %v26 = vld [vmem:[#allocation2] sm:$0x3]
  %v27 = vld [vmem:[%s0] sm:$0x3]
  %v29 = vrot.slane %v26, 1
  %v30 = vperm.slane %v27, 0
  %v31 = vlaneseq
  %v32 = vshrl.u32 %v31, 7
  %34 = vset.pattern.permute.xlu0 %v32
  %35 = vperm.xlu0 %34, %v30
  %v36 = vpop.permute.xlu0 %35
  %v37 = vperm.slane %v27, 1
  %v38 = vlaneseq
  %v39 = vshrl.u32 %v38, 7
  %41 = vset.pattern.permute.xlu0 %v39
  %42 = vperm.xlu0 %41, %v37
  %v43 = vpop.permute.xlu0 %42
  %v44 = vperm.slane %v26, 0
  %v45 = vperm.slane %v29, 0
  %v48 = vadd.f32 %v44, %v36
  %v49 = vadd.f32 %v45, %v43
  %v50 = vadd.f32 %v48, %v24
  %v51 = vadd.f32 %v49, %v24
  %vm52 = vcmask 64512
  %v53 = vsel %vm52, %v50, -inf
  %54 = vmax.xlane.f32.xlu0 %v53
  %v55 = vpop.xlane.xlu0 %54
  %v56 = vsel %vm52, %v51, -inf
  %57 = vmax.xlane.f32.xlu0 %v56
  %v58 = vpop.xlane.xlu0 %57
  %v59 = vsub.f32 %v50, %v55
  %v60 = vsub.f32 %v51, %v58
  %v61 = vmul.f32 %v59, 1.442695
  %v62 = vpow.pop %v61
  %v63 = vmul.f32 %v60, 1.442695
  %v64 = vpow.pop %v63
  %v65 = vsel %vm52, %v62, 0.0
  %66 = vadd.xlane.f32.xlu0 %v65
  %v67 = vpop.xlane.xlu0 %66
  %v68 = vsel %vm52, %v64, 0.0
  %69 = vadd.xlane.f32.xlu0 %v68
  %v70 = vpop.xlane.xlu0 %69
  %v71 = vlog2.pop %v67
  %v72 = vmul.f32 %v71, 0.6931472
  %v73 = vlog2.pop %v70
  %v74 = vmul.f32 %v73, 0.6931472
  %v75 = vadd.f32 %v55, %v72
  %v76 = vadd.f32 %v58, %v74
  %s77 = smul.u32 0, 8
  %v78 = vstv %s77
  %vm79 = vcmp.lt.s32.totalorder %v78, %v25
  %v80 = vsel %vm79, 1, 0
  %81 = vset.pattern.permute.xlu0 0
  %82 = vperm.xlu0 %81, %v80
  %v83 = vpop.permute.xlu0 %82
  %vm84 = vcmp.eq.s32.totalorder %v83, 1
  %v87 = vlaneseq
  %v88 = vand.u32 %v87, 127
  %v89 = vperm.slane %v75, %v88
  %v90 = vperm.slane %v76, %v88
  %vm91 = vcmask 1041409
  %v92 = vsel %vm91, %v90, %v89
  %v94 = vsel %vm84, %v92, %v26
  %s95 = scalar_lea.vmem %s0, 2
  %v96 = vld [vmem:[%s95] sm:$0x3]
  %v98 = vrot.slane %v94, 1
  %v99 = vperm.slane %v96, 0
  %v100 = vlaneseq
  %v101 = vshrl.u32 %v100, 7
  %103 = vset.pattern.permute.xlu0 %v101
  %104 = vperm.xlu0 %103, %v99
  %v105 = vpop.permute.xlu0 %104
  %v106 = vperm.slane %v96, 1
  %v107 = vlaneseq
  %v108 = vshrl.u32 %v107, 7
  %110 = vset.pattern.permute.xlu0 %v108
  %111 = vperm.xlu0 %110, %v106
  %v112 = vpop.permute.xlu0 %111
  %v113 = vperm.slane %v94, 0
  %v114 = vperm.slane %v98, 0
  %v117 = vadd.f32 %v113, %v105
  %v118 = vadd.f32 %v114, %v112
  %v119 = vadd.f32 %v117, %v24
  %v120 = vadd.f32 %v118, %v24
  %v121 = vsel %vm52, %v119, -inf
  %122 = vmax.xlane.f32.xlu0 %v121
  %v123 = vpop.xlane.xlu0 %122
  %v124 = vsel %vm52, %v120, -inf
  %125 = vmax.xlane.f32.xlu0 %v124
  %v126 = vpop.xlane.xlu0 %125
  %v127 = vsub.f32 %v119, %v123
  %v128 = vsub.f32 %v120, %v126
  %v129 = vmul.f32 %v127, 1.442695
  %v130 = vpow.pop %v129
  %v131 = vmul.f32 %v128, 1.442695
  %v132 = vpow.pop %v131
  %v133 = vsel %vm52, %v130, 0.0
  %134 = vadd.xlane.f32.xlu0 %v133
  %v135 = vpop.xlane.xlu0 %134
  %v136 = vsel %vm52, %v132, 0.0
  %137 = vadd.xlane.f32.xlu0 %v136
  %v138 = vpop.xlane.xlu0 %137
  %v139 = vlog2.pop %v135
  %v140 = vmul.f32 %v139, 0.6931472
  %v141 = vlog2.pop %v138
  %v142 = vmul.f32 %v141, 0.6931472
  %v143 = vadd.f32 %v123, %v140
  %v144 = vadd.f32 %v126, %v142
  %s145 = sadd.s32 %s77, 1
  %v146 = vstv %s145
  %vm147 = vcmp.lt.s32.totalorder %v146, %v25
  %v148 = vsel %vm147, 1, 0
  %149 = vset.pattern.permute.xlu0 0
  %150 = vperm.xlu0 %149, %v148
  %v151 = vpop.permute.xlu0 %150
  %vm152 = vcmp.eq.s32.totalorder %v151, 1
  %v155 = vperm.slane %v143, %v88
  %v156 = vperm.slane %v144, %v88
  %v157 = vsel %vm91, %v156, %v155
  %v159 = vsel %vm152, %v157, %v94
  %s160 = scalar_lea.vmem %s0, 4
  %v161 = vld [vmem:[%s160] sm:$0x3]
  %v163 = vrot.slane %v159, 1
  %v164 = vperm.slane %v161, 0
  %v165 = vlaneseq
  %v166 = vshrl.u32 %v165, 7
  %168 = vset.pattern.permute.xlu0 %v166
  %169 = vperm.xlu0 %168, %v164
  %v170 = vpop.permute.xlu0 %169
  %v171 = vperm.slane %v161, 1
  %v172 = vlaneseq
  %v173 = vshrl.u32 %v172, 7
  %175 = vset.pattern.permute.xlu0 %v173
  %176 = vperm.xlu0 %175, %v171
  %v177 = vpop.permute.xlu0 %176
  %v178 = vperm.slane %v159, 0
  %v179 = vperm.slane %v163, 0
  %v182 = vadd.f32 %v178, %v170
  %v183 = vadd.f32 %v179, %v177
  %v184 = vadd.f32 %v182, %v24
  %v185 = vadd.f32 %v183, %v24
  %v186 = vsel %vm52, %v184, -inf
  %187 = vmax.xlane.f32.xlu0 %v186
  %v188 = vpop.xlane.xlu0 %187
  %v189 = vsel %vm52, %v185, -inf
  %190 = vmax.xlane.f32.xlu0 %v189
  %v191 = vpop.xlane.xlu0 %190
  %v192 = vsub.f32 %v184, %v188
  %v193 = vsub.f32 %v185, %v191
  %v194 = vmul.f32 %v192, 1.442695
  %v195 = vpow.pop %v194
  %v196 = vmul.f32 %v193, 1.442695
  %v197 = vpow.pop %v196
  %v198 = vsel %vm52, %v195, 0.0
  %199 = vadd.xlane.f32.xlu0 %v198
  %v200 = vpop.xlane.xlu0 %199
  %v201 = vsel %vm52, %v197, 0.0
  %202 = vadd.xlane.f32.xlu0 %v201
  %v203 = vpop.xlane.xlu0 %202
  %v204 = vlog2.pop %v200
  %v205 = vmul.f32 %v204, 0.6931472
  %v206 = vlog2.pop %v203
  %v207 = vmul.f32 %v206, 0.6931472
  %v208 = vadd.f32 %v188, %v205
  %v209 = vadd.f32 %v191, %v207
  %s210 = sadd.s32 %s77, 2
  %v211 = vstv %s210
  %vm212 = vcmp.lt.s32.totalorder %v211, %v25
  %v213 = vsel %vm212, 1, 0
  %214 = vset.pattern.permute.xlu0 0
  %215 = vperm.xlu0 %214, %v213
  %v216 = vpop.permute.xlu0 %215
  %vm217 = vcmp.eq.s32.totalorder %v216, 1
  %v220 = vperm.slane %v208, %v88
  %v221 = vperm.slane %v209, %v88
  %v222 = vsel %vm91, %v221, %v220
  %v224 = vsel %vm217, %v222, %v159
  %s225 = scalar_lea.vmem %s0, 6
  %v226 = vld [vmem:[%s225] sm:$0x3]
  %v228 = vrot.slane %v224, 1
  %v229 = vperm.slane %v226, 0
  %v230 = vlaneseq
  %v231 = vshrl.u32 %v230, 7
  %233 = vset.pattern.permute.xlu0 %v231
  %234 = vperm.xlu0 %233, %v229
  %v235 = vpop.permute.xlu0 %234
  %v236 = vperm.slane %v226, 1
  %v237 = vlaneseq
  %v238 = vshrl.u32 %v237, 7
  %240 = vset.pattern.permute.xlu0 %v238
  %241 = vperm.xlu0 %240, %v236
  %v242 = vpop.permute.xlu0 %241
  %v243 = vperm.slane %v224, 0
  %v244 = vperm.slane %v228, 0
  %v247 = vadd.f32 %v243, %v235
  %v248 = vadd.f32 %v244, %v242
  %v249 = vadd.f32 %v247, %v24
  %v250 = vadd.f32 %v248, %v24
  %v251 = vsel %vm52, %v249, -inf
  %252 = vmax.xlane.f32.xlu0 %v251
  %v253 = vpop.xlane.xlu0 %252
  %v254 = vsel %vm52, %v250, -inf
  %255 = vmax.xlane.f32.xlu0 %v254
  %v256 = vpop.xlane.xlu0 %255
  %v257 = vsub.f32 %v249, %v253
  %v258 = vsub.f32 %v250, %v256
  %v259 = vmul.f32 %v257, 1.442695
  %v260 = vpow.pop %v259
  %v261 = vmul.f32 %v258, 1.442695
  %v262 = vpow.pop %v261
  %v263 = vsel %vm52, %v260, 0.0
  %264 = vadd.xlane.f32.xlu0 %v263
  %v265 = vpop.xlane.xlu0 %264
  %v266 = vsel %vm52, %v262, 0.0
  %267 = vadd.xlane.f32.xlu0 %v266
  %v268 = vpop.xlane.xlu0 %267
  %v269 = vlog2.pop %v265
  %v270 = vmul.f32 %v269, 0.6931472
  %v271 = vlog2.pop %v268
  %v272 = vmul.f32 %v271, 0.6931472
  %v273 = vadd.f32 %v253, %v270
  %v274 = vadd.f32 %v256, %v272
  %s275 = sadd.s32 %s77, 3
  %v276 = vstv %s275
  %vm277 = vcmp.lt.s32.totalorder %v276, %v25
  %v278 = vsel %vm277, 1, 0
  %279 = vset.pattern.permute.xlu0 0
  %280 = vperm.xlu0 %279, %v278
  %v281 = vpop.permute.xlu0 %280
  %vm282 = vcmp.eq.s32.totalorder %v281, 1
  %v285 = vperm.slane %v273, %v88
  %v286 = vperm.slane %v274, %v88
  %v287 = vsel %vm91, %v286, %v285
  %v289 = vsel %vm282, %v287, %v224
  %s290 = scalar_lea.vmem %s0, 8
  %v291 = vld [vmem:[%s290] sm:$0x3]
  %v293 = vrot.slane %v289, 1
  %v294 = vperm.slane %v291, 0
  %v295 = vlaneseq
  %v296 = vshrl.u32 %v295, 7
  %298 = vset.pattern.permute.xlu0 %v296
  %299 = vperm.xlu0 %298, %v294
  %v300 = vpop.permute.xlu0 %299
  %v301 = vperm.slane %v291, 1
  %v302 = vlaneseq
  %v303 = vshrl.u32 %v302, 7
  %305 = vset.pattern.permute.xlu0 %v303
  %306 = vperm.xlu0 %305, %v301
  %v307 = vpop.permute.xlu0 %306
  %v308 = vperm.slane %v289, 0
  %v309 = vperm.slane %v293, 0
  %v312 = vadd.f32 %v308, %v300
  %v313 = vadd.f32 %v309, %v307
  %v314 = vadd.f32 %v312, %v24
  %v315 = vadd.f32 %v313, %v24
  %v316 = vsel %vm52, %v314, -inf
  %317 = vmax.xlane.f32.xlu0 %v316
  %v318 = vpop.xlane.xlu0 %317
  %v319 = vsel %vm52, %v315, -inf
  %320 = vmax.xlane.f32.xlu0 %v319
  %v321 = vpop.xlane.xlu0 %320
  %v322 = vsub.f32 %v314, %v318
  %v323 = vsub.f32 %v315, %v321
  %v324 = vmul.f32 %v322, 1.442695
  %v325 = vpow.pop %v324
  %v326 = vmul.f32 %v323, 1.442695
  %v327 = vpow.pop %v326
  %v328 = vsel %vm52, %v325, 0.0
  %329 = vadd.xlane.f32.xlu0 %v328
  %v330 = vpop.xlane.xlu0 %329
  %v331 = vsel %vm52, %v327, 0.0
  %332 = vadd.xlane.f32.xlu0 %v331
  %v333 = vpop.xlane.xlu0 %332
  %v334 = vlog2.pop %v330
  %v335 = vmul.f32 %v334, 0.6931472
  %v336 = vlog2.pop %v333
  %v337 = vmul.f32 %v336, 0.6931472
  %v338 = vadd.f32 %v318, %v335
  %v339 = vadd.f32 %v321, %v337
  %s340 = sadd.s32 %s77, 4
  %v341 = vstv %s340
  %vm342 = vcmp.lt.s32.totalorder %v341, %v25
  %v343 = vsel %vm342, 1, 0
  %344 = vset.pattern.permute.xlu0 0
  %345 = vperm.xlu0 %344, %v343
  %v346 = vpop.permute.xlu0 %345
  %vm347 = vcmp.eq.s32.totalorder %v346, 1
  %v350 = vperm.slane %v338, %v88
  %v351 = vperm.slane %v339, %v88
  %v352 = vsel %vm91, %v351, %v350
  %v354 = vsel %vm347, %v352, %v289
  %s355 = scalar_lea.vmem %s0, 10
  %v356 = vld [vmem:[%s355] sm:$0x3]
  %v358 = vrot.slane %v354, 1
  %v359 = vperm.slane %v356, 0
  %v360 = vlaneseq
  %v361 = vshrl.u32 %v360, 7
  %363 = vset.pattern.permute.xlu0 %v361
  %364 = vperm.xlu0 %363, %v359
  %v365 = vpop.permute.xlu0 %364
  %v366 = vperm.slane %v356, 1
  %v367 = vlaneseq
  %v368 = vshrl.u32 %v367, 7
  %370 = vset.pattern.permute.xlu0 %v368
  %371 = vperm.xlu0 %370, %v366
  %v372 = vpop.permute.xlu0 %371
  %v373 = vperm.slane %v354, 0
  %v374 = vperm.slane %v358, 0
  %v377 = vadd.f32 %v373, %v365
  %v378 = vadd.f32 %v374, %v372
  %v379 = vadd.f32 %v377, %v24
  %v380 = vadd.f32 %v378, %v24
  %v381 = vsel %vm52, %v379, -inf
  %382 = vmax.xlane.f32.xlu0 %v381
  %v383 = vpop.xlane.xlu0 %382
  %v384 = vsel %vm52, %v380, -inf
  %385 = vmax.xlane.f32.xlu0 %v384
  %v386 = vpop.xlane.xlu0 %385
  %v387 = vsub.f32 %v379, %v383
  %v388 = vsub.f32 %v380, %v386
  %v389 = vmul.f32 %v387, 1.442695
  %v390 = vpow.pop %v389
  %v391 = vmul.f32 %v388, 1.442695
  %v392 = vpow.pop %v391
  %v393 = vsel %vm52, %v390, 0.0
  %394 = vadd.xlane.f32.xlu0 %v393
  %v395 = vpop.xlane.xlu0 %394
  %v396 = vsel %vm52, %v392, 0.0
  %397 = vadd.xlane.f32.xlu0 %v396
  %v398 = vpop.xlane.xlu0 %397
  %v399 = vlog2.pop %v395
  %v400 = vmul.f32 %v399, 0.6931472
  %v401 = vlog2.pop %v398
  %v402 = vmul.f32 %v401, 0.6931472
  %v403 = vadd.f32 %v383, %v400
  %v404 = vadd.f32 %v386, %v402
  %s405 = sadd.s32 %s77, 5
  %v406 = vstv %s405
  %vm407 = vcmp.lt.s32.totalorder %v406, %v25
  %v408 = vsel %vm407, 1, 0
  %409 = vset.pattern.permute.xlu0 0
  %410 = vperm.xlu0 %409, %v408
  %v411 = vpop.permute.xlu0 %410
  %vm412 = vcmp.eq.s32.totalorder %v411, 1
  %v415 = vperm.slane %v403, %v88
  %v416 = vperm.slane %v404, %v88
  %v417 = vsel %vm91, %v416, %v415
  %v419 = vsel %vm412, %v417, %v354
  %s420 = scalar_lea.vmem %s0, 12
  %v421 = vld [vmem:[%s420] sm:$0x3]
  %v423 = vrot.slane %v419, 1
  %v424 = vperm.slane %v421, 0
  %v425 = vlaneseq
  %v426 = vshrl.u32 %v425, 7
  %428 = vset.pattern.permute.xlu0 %v426
  %429 = vperm.xlu0 %428, %v424
  %v430 = vpop.permute.xlu0 %429
  %v431 = vperm.slane %v421, 1
  %v432 = vlaneseq
  %v433 = vshrl.u32 %v432, 7
  %435 = vset.pattern.permute.xlu0 %v433
  %436 = vperm.xlu0 %435, %v431
  %v437 = vpop.permute.xlu0 %436
  %v438 = vperm.slane %v419, 0
  %v439 = vperm.slane %v423, 0
  %v442 = vadd.f32 %v438, %v430
  %v443 = vadd.f32 %v439, %v437
  %v444 = vadd.f32 %v442, %v24
  %v445 = vadd.f32 %v443, %v24
  %v446 = vsel %vm52, %v444, -inf
  %447 = vmax.xlane.f32.xlu0 %v446
  %v448 = vpop.xlane.xlu0 %447
  %v449 = vsel %vm52, %v445, -inf
  %450 = vmax.xlane.f32.xlu0 %v449
  %v451 = vpop.xlane.xlu0 %450
  %v452 = vsub.f32 %v444, %v448
  %v453 = vsub.f32 %v445, %v451
  %v454 = vmul.f32 %v452, 1.442695
  %v455 = vpow.pop %v454
  %v456 = vmul.f32 %v453, 1.442695
  %v457 = vpow.pop %v456
  %v458 = vsel %vm52, %v455, 0.0
  %459 = vadd.xlane.f32.xlu0 %v458
  %v460 = vpop.xlane.xlu0 %459
  %v461 = vsel %vm52, %v457, 0.0
  %462 = vadd.xlane.f32.xlu0 %v461
  %v463 = vpop.xlane.xlu0 %462
  %v464 = vlog2.pop %v460
  %v465 = vmul.f32 %v464, 0.6931472
  %v466 = vlog2.pop %v463
  %v467 = vmul.f32 %v466, 0.6931472
  %v468 = vadd.f32 %v448, %v465
  %v469 = vadd.f32 %v451, %v467
  %s470 = sadd.s32 %s77, 6
  %v471 = vstv %s470
  %vm472 = vcmp.lt.s32.totalorder %v471, %v25
  %v473 = vsel %vm472, 1, 0
  %474 = vset.pattern.permute.xlu0 0
  %475 = vperm.xlu0 %474, %v473
  %v476 = vpop.permute.xlu0 %475
  %vm477 = vcmp.eq.s32.totalorder %v476, 1
  %v480 = vperm.slane %v468, %v88
  %v481 = vperm.slane %v469, %v88
  %v482 = vsel %vm91, %v481, %v480
  %v484 = vsel %vm477, %v482, %v419
  %s485 = scalar_lea.vmem %s0, 14
  %v486 = vld [vmem:[%s485] sm:$0x3]
  %v488 = vrot.slane %v484, 1
  %v489 = vperm.slane %v486, 0
  %v490 = vlaneseq
  %v491 = vshrl.u32 %v490, 7
  %493 = vset.pattern.permute.xlu0 %v491
  %494 = vperm.xlu0 %493, %v489
  %v495 = vpop.permute.xlu0 %494
  %v496 = vperm.slane %v486, 1
  %v497 = vlaneseq
  %v498 = vshrl.u32 %v497, 7
  %500 = vset.pattern.permute.xlu0 %v498
  %501 = vperm.xlu0 %500, %v496
  %v502 = vpop.permute.xlu0 %501
  %v503 = vperm.slane %v484, 0
  %v504 = vperm.slane %v488, 0
  %v507 = vadd.f32 %v503, %v495
  %v508 = vadd.f32 %v504, %v502
  %v509 = vadd.f32 %v507, %v24
  %v510 = vadd.f32 %v508, %v24
  %v511 = vsel %vm52, %v509, -inf
  %512 = vmax.xlane.f32.xlu0 %v511
  %v513 = vpop.xlane.xlu0 %512
  %v514 = vsel %vm52, %v510, -inf
  %515 = vmax.xlane.f32.xlu0 %v514
  %v516 = vpop.xlane.xlu0 %515
  %v517 = vsub.f32 %v509, %v513
  %v518 = vsub.f32 %v510, %v516
  %v519 = vmul.f32 %v517, 1.442695
  %v520 = vpow.pop %v519
  %v521 = vmul.f32 %v518, 1.442695
  %v522 = vpow.pop %v521
  %v523 = vsel %vm52, %v520, 0.0
  %524 = vadd.xlane.f32.xlu0 %v523
  %v525 = vpop.xlane.xlu0 %524
  %v526 = vsel %vm52, %v522, 0.0
  %527 = vadd.xlane.f32.xlu0 %v526
  %v528 = vpop.xlane.xlu0 %527
  %v529 = vlog2.pop %v525
  %v530 = vmul.f32 %v529, 0.6931472
  %v531 = vlog2.pop %v528
  %v532 = vmul.f32 %v531, 0.6931472
  %v533 = vadd.f32 %v513, %v530
  %v534 = vadd.f32 %v516, %v532
  %s535 = sadd.s32 %s77, 7
  %v536 = vstv %s535
  %vm537 = vcmp.lt.s32.totalorder %v536, %v25
  %v538 = vsel %vm537, 1, 0
  %539 = vset.pattern.permute.xlu0 0
  %540 = vperm.xlu0 %539, %v538
  %v541 = vpop.permute.xlu0 %540
  %vm542 = vcmp.eq.s32.totalorder %v541, 1
  %v545 = vperm.slane %v533, %v88
  %v546 = vperm.slane %v534, %v88
  %v547 = vsel %vm91, %v546, %v545
  %v549 = vsel %vm542, %v547, %v484
  %vm550 = vcmask 58368
  %551 = vst.msk [vmem:[#allocation2] sm:$0x3] %vm550, %v549
  // Predicated region
  $region18: #{rnn_two_crf_seq_forward.10} parent=0 // pred_check
    %p552 = pneg %p14
  $region19: #{rnn_two_crf_seq_forward.10} parent=0 // pred_check_branch
    %554 = sbr.rel (%p552) target = $region21
  $region20: #{rnn_two_crf_seq_forward.10} parent=0 // pred_region
    %v555 = vperm.slane %v24, 2
    %v556 = vadd.f32 %v549, %v555
    %v557 = vsel %vm550, %v556, -inf
    %558 = vmax.xlane.f32.xlu0 %v557
    %v559 = vpop.xlane.xlu0 %558
    %v560 = vsub.f32 %v556, %v559
    %v561 = vmul.f32 %v560, 1.442695
    %v562 = vpow.pop %v561
    %v563 = vsel %vm550, %v562, 0.0
    %564 = vadd.xlane.f32.xlu0 %v563
    %v565 = vpop.xlane.xlu0 %564
    %v566 = vlog2.pop %v565
    %v567 = vmul.f32 %v566, 0.6931472
    %v568 = vadd.f32 %v559, %v567
    %vm569 = vcmask 1024
    %570 = vst.msk [vmem:[%s3] sm:$0x3] %vm569, %v568
  $region21: #{rnn_two_crf_seq_forward.10} parent=0 // pred_fallthru
    _
  // Predicated region
  $region22: #{rnn_two_crf_seq_forward.10} parent=0 // pred_check
    _
  $region23: #{rnn_two_crf_seq_forward.10} parent=0 // pred_check_branch
    %572 = sbr.rel (0) target = $region25
  $region24: #{rnn_two_crf_seq_forward.10} parent=0 // pred_region
    _
  $region25: #{rnn_two_crf_seq_forward.10} parent=0 // pred_fallthru
    _
  // Predicated region
  $region26: #{rnn_two_crf_seq_forward.10} parent=0 // pred_check
    _
  $region27: #{rnn_two_crf_seq_forward.10} parent=0 // pred_check_branch
    %574 = sbr.rel (0) target = $region29
  $region28: #{rnn_two_crf_seq_forward.10} parent=0 // pred_region
    _
  $region29: #{rnn_two_crf_seq_forward.10} parent=0 // pred_fallthru
    _

// kernel: rnn_two_crf_seq_forward.11
$region0: #{rnn_two_crf_seq_forward.11}
  #allocation0 [shape = 'u32[]', space=smem, size = 0x4, offset = 0x4, fixed_abs, tag = 'smem constant byte address 0x4 - core index']
  #allocation1 [shape = 'u32[72,128]{1,0:T(1,128)}', space=vmem, size = 0x9000, scoped, tag = 'internal scratch']
  %s0 = inlined_call_operand.vmem [shape: bf16[16,8], index: 0, kind: input, shape index: {}]
  %s1 = inlined_call_operand.vmem [shape: bf16[8,512], index: 1, kind: input, shape index: {}]
  %s2 = inlined_call_operand.vmem [shape: f32[1,512], index: 2, kind: input, shape index: {}]
  %s3 = inlined_call_operand.vmem [shape: f32[16,512], index: 3, kind: output, shape index: {}]
  %s4 = sld [smem:[#allocation0]]
  $region22: #{rnn_two_crf_seq_forward.11} parent=0
    _
  %s6 = ssub.s32 1, %s4
  %s7 = scalar_select 0, %s6, %s4
  // Predicated region
  $region2: #{rnn_two_crf_seq_forward.11} parent=0 // pred_check
    _
  $region3: #{rnn_two_crf_seq_forward.11} parent=0 // pred_check_branch
    %9 = sbr.rel (0) target = $region5
  $region4: #{rnn_two_crf_seq_forward.11} parent=0 // pred_region
    _
  $region5: #{rnn_two_crf_seq_forward.11} parent=0 // pred_fallthru
    _
  // Predicated region
  $region6: #{rnn_two_crf_seq_forward.11} parent=0 // pred_check
    _
  $region7: #{rnn_two_crf_seq_forward.11} parent=0 // pred_check_branch
    %11 = sbr.rel (0) target = $region9
  $region8: #{rnn_two_crf_seq_forward.11} parent=0 // pred_region
    _
  $region9: #{rnn_two_crf_seq_forward.11} parent=0 // pred_fallthru
    _
  // Predicated region
  $region10: #{rnn_two_crf_seq_forward.11} parent=0 // pred_check
    _
  $region11: #{rnn_two_crf_seq_forward.11} parent=0 // pred_check_branch
    %13 = sbr.rel (0) target = $region13
  $region12: #{rnn_two_crf_seq_forward.11} parent=0 // pred_region
    _
  $region13: #{rnn_two_crf_seq_forward.11} parent=0 // pred_fallthru
    _
  %v15 = vld [vmem:[%s0] sm:$0xf]
  %v16 = vld [vmem:[%s0 + $0x4] sm:$0xf]
  %v17 = vld [vmem:[%s1] sm:$0xff]
  %v18 = vld [vmem:[%s1 + $0x8] sm:$0xff]
  %v19 = vld [vmem:[%s2] sm:$0xf]
  %v21 = vperm.slane %v19, 0
  %v22 = vperm.slane %v19, 1
  %v23 = vperm.slane %v19, 2
  %v24 = vperm.slane %v19, 3
  %v31 = vunpack.c.l.b16 %v15
  %v32 = vunpack.c.l.b16 %v16
  %v33 = vpack.c.b16 %v32, %v31
  %v36 = vunpack.c.l.b16 %v17
  %v37 = vunpack.c.h.b16 %v17
  %v38 = vunpack.c.l.b16 %v18
  %v39 = vunpack.c.h.b16 %v18
  %v40 = vpack.c.b16 %v36, %v36
  %v41 = vpack.c.b16 %v37, %v37
  %v42 = vpack.c.b16 %v38, %v38
  %v43 = vpack.c.b16 %v39, %v39
  %vm44 = vcmask 64512
  %v46 = vsel %vm44, %v33, 0
  %vm48 = vcmask 1043456
  %v50 = vsel %vm48, %v40, 0
  %v53 = vsel %vm48, %v41, 0
  %v56 = vsel %vm48, %v42, 0
  %v59 = vsel %vm48, %v43, 0
  %61 = vmatpush.bf16.msra.mxu0 0
  %62 = vmatpush.bf16.msra.mxu0 0
  %63 = vmatpush.bf16.msra.mxu0 0
  %64 = vmatpush.bf16.msra.mxu0 0
  %65 = vmatpush.bf16.msra.mxu0 0
  %66 = vmatpush.bf16.msra.mxu0 0
  %67 = vmatpush.bf16.msra.mxu0 0
  %68 = vmatpush.bf16.msra.mxu0 %v50
  %69 = vmatmul.bf16.gmra.mxu0 %v46
  %v70 = vpop.f32.mrf.mxu0
  %v71 = vadd.f32 %v21, %v70
  %v72 = vpop.f32.mrf.mxu0
  %v73 = vadd.f32 %v21, %v72
  %74 = vdwg.mxu0
  %75 = vmatpush.bf16.msra.mxu0 0
  %76 = vmatpush.bf16.msra.mxu0 0
  %77 = vmatpush.bf16.msra.mxu0 0
  %78 = vmatpush.bf16.msra.mxu0 0
  %79 = vmatpush.bf16.msra.mxu0 0
  %80 = vmatpush.bf16.msra.mxu0 0
  %81 = vmatpush.bf16.msra.mxu0 0
  %82 = vmatpush.bf16.msra.mxu0 %v53
  %83 = vmatmul.bf16.gmra.mxu0 %v46
  %v84 = vpop.f32.mrf.mxu0
  %v85 = vadd.f32 %v22, %v84
  %v86 = vpop.f32.mrf.mxu0
  %v87 = vadd.f32 %v22, %v86
  %88 = vdwg.mxu0
  %89 = vmatpush.bf16.msra.mxu0 0
  %90 = vmatpush.bf16.msra.mxu0 0
  %91 = vmatpush.bf16.msra.mxu0 0
  %92 = vmatpush.bf16.msra.mxu0 0
  %93 = vmatpush.bf16.msra.mxu0 0
  %94 = vmatpush.bf16.msra.mxu0 0
  %95 = vmatpush.bf16.msra.mxu0 0
  %96 = vmatpush.bf16.msra.mxu0 %v56
  %97 = vmatmul.bf16.gmra.mxu0 %v46
  %v98 = vpop.f32.mrf.mxu0
  %v99 = vadd.f32 %v23, %v98
  %v100 = vpop.f32.mrf.mxu0
  %v101 = vadd.f32 %v23, %v100
  %102 = vdwg.mxu0
  %103 = vmatpush.bf16.msra.mxu0 0
  %104 = vmatpush.bf16.msra.mxu0 0
  %105 = vmatpush.bf16.msra.mxu0 0
  %106 = vmatpush.bf16.msra.mxu0 0
  %107 = vmatpush.bf16.msra.mxu0 0
  %108 = vmatpush.bf16.msra.mxu0 0
  %109 = vmatpush.bf16.msra.mxu0 0
  %110 = vmatpush.bf16.msra.mxu0 %v59
  %111 = vmatmul.bf16.gmra.mxu0 %v46
  %v112 = vpop.f32.mrf.mxu0
  %v113 = vadd.f32 %v24, %v112
  %v114 = vpop.f32.mrf.mxu0
  %v115 = vadd.f32 %v24, %v114
  %116 = vdwg.mxu0
  %117 = vst [vmem:[%s3] sm:$0xff] %v71
  %118 = vst [vmem:[%s3 + $0x8] sm:$0xff] %v85
  %119 = vst [vmem:[%s3 + $0x10] sm:$0xff] %v99
  %120 = vst [vmem:[%s3 + $0x18] sm:$0xff] %v113
  %121 = vst [vmem:[%s3 + $0x20] sm:$0xff] %v73
  %122 = vst [vmem:[%s3 + $0x28] sm:$0xff] %v87
  %123 = vst [vmem:[%s3 + $0x30] sm:$0xff] %v101
  %124 = vst [vmem:[%s3 + $0x38] sm:$0xff] %v115
  // Predicated region
  $region14: #{rnn_two_crf_seq_forward.11} parent=0 // pred_check
    _
  $region15: #{rnn_two_crf_seq_forward.11} parent=0 // pred_check_branch
    %126 = sbr.rel (0) target = $region17
  $region16: #{rnn_two_crf_seq_forward.11} parent=0 // pred_region
    _
  $region17: #{rnn_two_crf_seq_forward.11} parent=0 // pred_fallthru
    _
  // Predicated region
  $region18: #{rnn_two_crf_seq_forward.11} parent=0 // pred_check
    _
  $region19: #{rnn_two_crf_seq_forward.11} parent=0 // pred_check_branch
    %128 = sbr.rel (0) target = $region21
  $region20: #{rnn_two_crf_seq_forward.11} parent=0 // pred_region
    _
  $region21: #{rnn_two_crf_seq_forward.11} parent=0 // pred_fallthru
    _

// kernel: rnn_two_crf_seq_forward.9
$region0: #{rnn_two_crf_seq_forward.9}
  #allocation0 [shape = 'u32[]', space=smem, size = 0x4, offset = 0x4, fixed_abs, tag = 'smem constant byte address 0x4 - core index']
  #allocation1 [shape = 'u32[72,128]{1,0:T(1,128)}', space=vmem, size = 0x9000, scoped, tag = 'internal scratch']
  #allocation2 [shape = 'f32[2,128]{1,0:T(2,128)}', space=vmem, size = 0x400, scoped, tag = 'scratch operand']
  #allocation3 [shape = 'f32[2,128]{1,0:T(2,128)}', space=vmem, size = 0x400, scoped, tag = 'scratch operand']
  %s0 = inlined_call_operand.vmem [shape: f32[8,2,512], index: 0, kind: input, shape index: {}]
  %s1 = inlined_call_operand.vmem [shape: bf16[128,512], index: 1, kind: input, shape index: {}]
  %s2 = inlined_call_operand.vmem [shape: bf16[128,8], index: 2, kind: input, shape index: {}]
  %s3 = inlined_call_operand.vmem [shape: f32[1,8], index: 3, kind: input, shape index: {}]
  %s4 = inlined_call_operand.vmem [shape: s32[2,1], index: 4, kind: input, shape index: {}]
  %s5 = inlined_call_operand.vmem [shape: f32[8,2,8], index: 5, kind: output, shape index: {}]
  %s6 = sld [smem:[#allocation0]]
  $region34: #{rnn_two_crf_seq_forward.9} parent=0
    _
  %s8 = ssub.s32 1, %s6
  %s9 = scalar_select 0, %s8, %s6
  // Predicated region
  $region2: #{rnn_two_crf_seq_forward.9} parent=0 // pred_check
    _
  $region3: #{rnn_two_crf_seq_forward.9} parent=0 // pred_check_branch
    %11 = sbr.rel (0) target = $region5
  $region4: #{rnn_two_crf_seq_forward.9} parent=0 // pred_region
    _
  $region5: #{rnn_two_crf_seq_forward.9} parent=0 // pred_fallthru
    _
  // Predicated region
  $region6: #{rnn_two_crf_seq_forward.9} parent=0 // pred_check
    _
  $region7: #{rnn_two_crf_seq_forward.9} parent=0 // pred_check_branch
    %13 = sbr.rel (0) target = $region9
  $region8: #{rnn_two_crf_seq_forward.9} parent=0 // pred_region
    _
  $region9: #{rnn_two_crf_seq_forward.9} parent=0 // pred_fallthru
    _
  // Predicated region
  $region10: #{rnn_two_crf_seq_forward.9} parent=0 // pred_check
    _
  $region11: #{rnn_two_crf_seq_forward.9} parent=0 // pred_check_branch
    %15 = sbr.rel (0) target = $region13
  $region12: #{rnn_two_crf_seq_forward.9} parent=0 // pred_region
    _
  $region13: #{rnn_two_crf_seq_forward.9} parent=0 // pred_fallthru
    _
  // Predicated region
  $region14: #{rnn_two_crf_seq_forward.9} parent=0 // pred_check
    _
  $region15: #{rnn_two_crf_seq_forward.9} parent=0 // pred_check_branch
    %17 = sbr.rel (0) target = $region17
  $region16: #{rnn_two_crf_seq_forward.9} parent=0 // pred_region
    _
  $region17: #{rnn_two_crf_seq_forward.9} parent=0 // pred_fallthru
    _
  // Predicated region
  $region18: #{rnn_two_crf_seq_forward.9} parent=0 // pred_check
    _
  $region19: #{rnn_two_crf_seq_forward.9} parent=0 // pred_check_branch
    %19 = sbr.rel (0) target = $region21
  $region20: #{rnn_two_crf_seq_forward.9} parent=0 // pred_region
    _
  $region21: #{rnn_two_crf_seq_forward.9} parent=0 // pred_fallthru
    _
  %p20 = scmp.eq.s32.totalorder 0, 0
  // Predicated region
  $region22: #{rnn_two_crf_seq_forward.9} parent=0 // pred_check
    %p21 = pneg %p20
  $region23: #{rnn_two_crf_seq_forward.9} parent=0 // pred_check_branch
    %23 = sbr.rel (%p21) target = $region25
  $region24: #{rnn_two_crf_seq_forward.9} parent=0 // pred_region
    %24 = vst [vmem:[#allocation2] sm:$0x3] 0.0
    %25 = vst [vmem:[#allocation3] sm:$0x3] 0.0
  $region25: #{rnn_two_crf_seq_forward.9} parent=0 // pred_fallthru
    _
  %v26 = vld [vmem:[%s1] sm:$0xff]
  %v27 = vld [vmem:[%s1 + $0x8] sm:$0xff]
  %v28 = vld [vmem:[%s1 + $0x10] sm:$0xff]
  %v29 = vld [vmem:[%s1 + $0x18] sm:$0xff]
  %v30 = vld [vmem:[%s1 + $0x20] sm:$0xff]
  %v31 = vld [vmem:[%s1 + $0x28] sm:$0xff]
  %v32 = vld [vmem:[%s1 + $0x30] sm:$0xff]
  %v33 = vld [vmem:[%s1 + $0x38] sm:$0xff]
  %v34 = vld [vmem:[%s1 + $0x40] sm:$0xff]
  %v35 = vld [vmem:[%s1 + $0x48] sm:$0xff]
  %v36 = vld [vmem:[%s1 + $0x50] sm:$0xff]
  %v37 = vld [vmem:[%s1 + $0x58] sm:$0xff]
  %v38 = vld [vmem:[%s1 + $0x60] sm:$0xff]
  %v39 = vld [vmem:[%s1 + $0x68] sm:$0xff]
  %v40 = vld [vmem:[%s1 + $0x70] sm:$0xff]
  %v41 = vld [vmem:[%s1 + $0x78] sm:$0xff]
  %v42 = vld [vmem:[%s1 + $0x80] sm:$0xff]
  %v43 = vld [vmem:[%s1 + $0x88] sm:$0xff]
  %v44 = vld [vmem:[%s1 + $0x90] sm:$0xff]
  %v45 = vld [vmem:[%s1 + $0x98] sm:$0xff]
  %v46 = vld [vmem:[%s1 + $0xa0] sm:$0xff]
  %v47 = vld [vmem:[%s1 + $0xa8] sm:$0xff]
  %v48 = vld [vmem:[%s1 + $0xb0] sm:$0xff]
  %v49 = vld [vmem:[%s1 + $0xb8] sm:$0xff]
  %v50 = vld [vmem:[%s1 + $0xc0] sm:$0xff]
  %v51 = vld [vmem:[%s1 + $0xc8] sm:$0xff]
  %v52 = vld [vmem:[%s1 + $0xd0] sm:$0xff]
  %v53 = vld [vmem:[%s1 + $0xd8] sm:$0xff]
  %v54 = vld [vmem:[%s1 + $0xe0] sm:$0xff]
  %v55 = vld [vmem:[%s1 + $0xe8] sm:$0xff]
  %v56 = vld [vmem:[%s1 + $0xf0] sm:$0xff]
  %v57 = vld [vmem:[%s1 + $0xf8] sm:$0xff]
  %v58 = vld [vmem:[%s2] sm:$0xf]
  %v59 = vld [vmem:[%s2 + $0x4] sm:$0xf]
  %v60 = vld [vmem:[%s2 + $0x8] sm:$0xf]
  %v61 = vld [vmem:[%s2 + $0xc] sm:$0xf]
  %v62 = vld [vmem:[%s2 + $0x10] sm:$0xf]
  %v63 = vld [vmem:[%s2 + $0x14] sm:$0xf]
  %v64 = vld [vmem:[%s2 + $0x18] sm:$0xf]
  %v65 = vld [vmem:[%s2 + $0x1c] sm:$0xf]
  %v66 = vld [vmem:[%s2 + $0x20] sm:$0xf]
  %v67 = vld [vmem:[%s2 + $0x24] sm:$0xf]
  %v68 = vld [vmem:[%s2 + $0x28] sm:$0xf]
  %v69 = vld [vmem:[%s2 + $0x2c] sm:$0xf]
  %v70 = vld [vmem:[%s2 + $0x30] sm:$0xf]
  %v71 = vld [vmem:[%s2 + $0x34] sm:$0xf]
  %v72 = vld [vmem:[%s2 + $0x38] sm:$0xf]
  %v73 = vld [vmem:[%s2 + $0x3c] sm:$0xf]
  %v74 = vld [vmem:[%s3] sm:$0x1]
  %v75 = vld [vmem:[%s4] sm:$0x3]
  %v76 = vld [vmem:[#allocation2] sm:$0x3]
  %v77 = vld [vmem:[#allocation3] sm:$0x3]
  %v78 = vld [vmem:[%s0] sm:$0xff]
  %v79 = vpack.c.bf16 %v76, %v76
  %v112 = vunpack.c.l.b16 %v26
  %v113 = vunpack.c.h.b16 %v26
  %v114 = vunpack.c.l.b16 %v27
  %v115 = vunpack.c.h.b16 %v27
  %v116 = vunpack.c.l.b16 %v28
  %v117 = vunpack.c.h.b16 %v28
  %v118 = vunpack.c.l.b16 %v29
  %v119 = vunpack.c.h.b16 %v29
  %v120 = vunpack.c.l.b16 %v30
  %v121 = vunpack.c.h.b16 %v30
  %v122 = vunpack.c.l.b16 %v31
  %v123 = vunpack.c.h.b16 %v31
  %v124 = vunpack.c.l.b16 %v32
  %v125 = vunpack.c.h.b16 %v32
  %v126 = vunpack.c.l.b16 %v33
  %v127 = vunpack.c.h.b16 %v33
  %v128 = vunpack.c.l.b16 %v34
  %v129 = vunpack.c.h.b16 %v34
  %v130 = vunpack.c.l.b16 %v35
  %v131 = vunpack.c.h.b16 %v35
  %v132 = vunpack.c.l.b16 %v36
  %v133 = vunpack.c.h.b16 %v36
  %v134 = vunpack.c.l.b16 %v37
  %v135 = vunpack.c.h.b16 %v37
  %v136 = vunpack.c.l.b16 %v38
  %v137 = vunpack.c.h.b16 %v38
  %v138 = vunpack.c.l.b16 %v39
  %v139 = vunpack.c.h.b16 %v39
  %v140 = vunpack.c.l.b16 %v40
  %v141 = vunpack.c.h.b16 %v40
  %v142 = vunpack.c.l.b16 %v41
  %v143 = vunpack.c.h.b16 %v41
  %v144 = vunpack.c.l.b16 %v42
  %v145 = vunpack.c.h.b16 %v42
  %v146 = vunpack.c.l.b16 %v43
  %v147 = vunpack.c.h.b16 %v43
  %v148 = vunpack.c.l.b16 %v44
  %v149 = vunpack.c.h.b16 %v44
  %v150 = vunpack.c.l.b16 %v45
  %v151 = vunpack.c.h.b16 %v45
  %v152 = vunpack.c.l.b16 %v46
  %v153 = vunpack.c.h.b16 %v46
  %v154 = vunpack.c.l.b16 %v47
  %v155 = vunpack.c.h.b16 %v47
  %v156 = vunpack.c.l.b16 %v48
  %v157 = vunpack.c.h.b16 %v48
  %v158 = vunpack.c.l.b16 %v49
  %v159 = vunpack.c.h.b16 %v49
  %v160 = vunpack.c.l.b16 %v50
  %v161 = vunpack.c.h.b16 %v50
  %v162 = vunpack.c.l.b16 %v51
  %v163 = vunpack.c.h.b16 %v51
  %v164 = vunpack.c.l.b16 %v52
  %v165 = vunpack.c.h.b16 %v52
  %v166 = vunpack.c.l.b16 %v53
  %v167 = vunpack.c.h.b16 %v53
  %v168 = vunpack.c.l.b16 %v54
  %v169 = vunpack.c.h.b16 %v54
  %v170 = vunpack.c.l.b16 %v55
  %v171 = vunpack.c.h.b16 %v55
  %v172 = vunpack.c.l.b16 %v56
  %v173 = vunpack.c.h.b16 %v56
  %v174 = vunpack.c.l.b16 %v57
  %v175 = vunpack.c.h.b16 %v57
  %v176 = vpack.c.b16 %v116, %v112
  %v177 = vpack.c.b16 %v117, %v113
  %v178 = vpack.c.b16 %v118, %v114
  %v179 = vpack.c.b16 %v119, %v115
  %v180 = vpack.c.b16 %v124, %v120
  %v181 = vpack.c.b16 %v125, %v121
  %v182 = vpack.c.b16 %v126, %v122
  %v183 = vpack.c.b16 %v127, %v123
  %v184 = vpack.c.b16 %v132, %v128
  %v185 = vpack.c.b16 %v133, %v129
  %v186 = vpack.c.b16 %v134, %v130
  %v187 = vpack.c.b16 %v135, %v131
  %v188 = vpack.c.b16 %v140, %v136
  %v189 = vpack.c.b16 %v141, %v137
  %v190 = vpack.c.b16 %v142, %v138
  %v191 = vpack.c.b16 %v143, %v139
  %v192 = vpack.c.b16 %v148, %v144
  %v193 = vpack.c.b16 %v149, %v145
  %v194 = vpack.c.b16 %v150, %v146
  %v195 = vpack.c.b16 %v151, %v147
  %v196 = vpack.c.b16 %v156, %v152
  %v197 = vpack.c.b16 %v157, %v153
  %v198 = vpack.c.b16 %v158, %v154
  %v199 = vpack.c.b16 %v159, %v155
  %v200 = vpack.c.b16 %v164, %v160
  %v201 = vpack.c.b16 %v165, %v161
  %v202 = vpack.c.b16 %v166, %v162
  %v203 = vpack.c.b16 %v167, %v163
  %v204 = vpack.c.b16 %v172, %v168
  %v205 = vpack.c.b16 %v173, %v169
  %v206 = vpack.c.b16 %v174, %v170
  %v207 = vpack.c.b16 %v175, %v171
  %240 = vmatpush.bf16.msra.mxu0 %v204
  %241 = vmatpush.bf16.msra.mxu0 %v200
  %242 = vmatpush.bf16.msra.mxu0 %v196
  %243 = vmatpush.bf16.msra.mxu0 %v192
  %244 = vmatpush.bf16.msra.mxu0 %v188
  %245 = vmatpush.bf16.msra.mxu0 %v184
  %246 = vmatpush.bf16.msra.mxu0 %v180
  %247 = vmatpush.bf16.msra.mxu0 %v176
  %248 = vmatmul.bf16.gmra.mxu0 %v79
  %v249 = vpop.f32.mrf.mxu0
  %v250 = vadd.f32 0.0, %v249
  %v251 = vpop.f32.mrf.mxu0
  %252 = vdwg.mxu0
  %253 = vmatpush.bf16.msra.mxu0 %v205
  %254 = vmatpush.bf16.msra.mxu0 %v201
  %255 = vmatpush.bf16.msra.mxu0 %v197
  %256 = vmatpush.bf16.msra.mxu0 %v193
  %257 = vmatpush.bf16.msra.mxu0 %v189
  %258 = vmatpush.bf16.msra.mxu0 %v185
  %259 = vmatpush.bf16.msra.mxu0 %v181
  %260 = vmatpush.bf16.msra.mxu0 %v177
  %261 = vmatmul.bf16.gmra.mxu0 %v79
  %v262 = vpop.f32.mrf.mxu0
  %v263 = vadd.f32 0.0, %v262
  %v264 = vpop.f32.mrf.mxu0
  %265 = vdwg.mxu0
  %266 = vmatpush.bf16.msra.mxu0 %v206
  %267 = vmatpush.bf16.msra.mxu0 %v202
  %268 = vmatpush.bf16.msra.mxu0 %v198
  %269 = vmatpush.bf16.msra.mxu0 %v194
  %270 = vmatpush.bf16.msra.mxu0 %v190
  %271 = vmatpush.bf16.msra.mxu0 %v186
  %272 = vmatpush.bf16.msra.mxu0 %v182
  %273 = vmatpush.bf16.msra.mxu0 %v178
  %274 = vmatmul.bf16.gmra.mxu0 %v79
  %v275 = vpop.f32.mrf.mxu0
  %v276 = vadd.f32 0.0, %v275
  %v277 = vpop.f32.mrf.mxu0
  %278 = vdwg.mxu0
  %279 = vmatpush.bf16.msra.mxu0 %v207
  %280 = vmatpush.bf16.msra.mxu0 %v203
  %281 = vmatpush.bf16.msra.mxu0 %v199
  %282 = vmatpush.bf16.msra.mxu0 %v195
  %283 = vmatpush.bf16.msra.mxu0 %v191
  %284 = vmatpush.bf16.msra.mxu0 %v187
  %285 = vmatpush.bf16.msra.mxu0 %v183
  %286 = vmatpush.bf16.msra.mxu0 %v179
  %287 = vmatmul.bf16.gmra.mxu0 %v79
  %v288 = vpop.f32.mrf.mxu0
  %v289 = vadd.f32 0.0, %v288
  %v290 = vpop.f32.mrf.mxu0
  %291 = vdwg.mxu0
  %v296 = vrot.slane %v263, 6
  %v297 = vrot.slane %v276, 4
  %v298 = vrot.slane %v289, 2
  %vm299 = vcmask 1041408
  %v300 = vsel %vm299, %v250, %v296
  %vm301 = vcmask 1045508
  %v302 = vsel %vm301, %v297, %v298
  %vm303 = vcmask 1043456
  %v304 = vsel %vm303, %v300, %v302
  %v306 = vadd.f32 %v78, %v304
  %v307 = vxor.u32 %v306, 2147483648
  %v308 = vmul.f32 %v307, 1.442695
  %v309 = vpow.pop %v308
  %v310 = vadd.f32 %v309, 1.0
  %v311 = vrcp.pop %v310
  %v312 = vmul.f32 %v310, %v311
  %v313 = vsub.f32 1.0, %v312
  %v314 = vmul.f32 %v311, %v313
  %v315 = vadd.f32 %v311, %v314
  %vm316 = vweird.f32 %v310
  %vm317 = vweird.f32 %v311
  %vm318 = vmor %vm316, %vm317
  %v319 = vsel %vm318, %v311, %v315
  %v320 = vand.u32 2147483647, %v310
  %vm321 = vcmp.eq.f32.partialorder %v320, 8.507059e+37
  %v322 = vand.u32 %v310, 2147483648
  %v323 = vor.u32 1.1754944e-38, %v322
  %v324 = vsel %vm321, %v323, %v319
  %v325 = vmul.f32 1.0, %v324
  %v327 = vrot.slane %v306, 2
  %v329 = vxor.u32 %v327, 2147483648
  %v330 = vmul.f32 %v329, 1.442695
  %v331 = vpow.pop %v330
  %v332 = vadd.f32 %v331, 1.0
  %v333 = vrcp.pop %v332
  %v334 = vmul.f32 %v332, %v333
  %v335 = vsub.f32 1.0, %v334
  %v336 = vmul.f32 %v333, %v335
  %v337 = vadd.f32 %v333, %v336
  %vm338 = vweird.f32 %v332
  %vm339 = vweird.f32 %v333
  %vm340 = vmor %vm338, %vm339
  %v341 = vsel %vm340, %v333, %v337
  %v342 = vand.u32 2147483647, %v332
  %vm343 = vcmp.eq.f32.partialorder %v342, 8.507059e+37
  %v344 = vand.u32 %v332, 2147483648
  %v345 = vor.u32 1.1754944e-38, %v344
  %v346 = vsel %vm343, %v345, %v341
  %v347 = vmul.f32 1.0, %v346
  %v348 = vrot.slane %v306, 4
  %v350 = vtanh.pop %v348
  %v351 = vrot.slane %v306, 6
  %v353 = vxor.u32 %v351, 2147483648
  %v354 = vmul.f32 %v353, 1.442695
  %v355 = vpow.pop %v354
  %v356 = vadd.f32 %v355, 1.0
  %v357 = vrcp.pop %v356
  %v358 = vmul.f32 %v356, %v357
  %v359 = vsub.f32 1.0, %v358
  %v360 = vmul.f32 %v357, %v359
  %v361 = vadd.f32 %v357, %v360
  %vm362 = vweird.f32 %v356
  %vm363 = vweird.f32 %v357
  %vm364 = vmor %vm362, %vm363
  %v365 = vsel %vm364, %v357, %v361
  %v366 = vand.u32 2147483647, %v356
  %vm367 = vcmp.eq.f32.partialorder %v366, 8.507059e+37
  %v368 = vand.u32 %v356, 2147483648
  %v369 = vor.u32 1.1754944e-38, %v368
  %v370 = vsel %vm367, %v369, %v365
  %v371 = vmul.f32 1.0, %v370
  %v372 = vmul.f32 %v347, %v77
  %v373 = vmul.f32 %v325, %v350
  %v374 = vadd.f32 %v372, %v373
  %v375 = vtanh.pop %v374
  %v376 = vmul.f32 %v371, %v375
  %v377 = vpack.c.bf16 %v376, %v376
  %v379 = vperm.slane %v74, 0
  %v397 = vunpack.c.l.b16 %v58
  %v398 = vunpack.c.l.b16 %v59
  %v399 = vunpack.c.l.b16 %v60
  %v400 = vunpack.c.l.b16 %v61
  %v401 = vunpack.c.l.b16 %v62
  %v402 = vunpack.c.l.b16 %v63
  %v403 = vunpack.c.l.b16 %v64
  %v404 = vunpack.c.l.b16 %v65
  %v405 = vunpack.c.l.b16 %v66
  %v406 = vunpack.c.l.b16 %v67
  %v407 = vunpack.c.l.b16 %v68
  %v408 = vunpack.c.l.b16 %v69
  %v409 = vunpack.c.l.b16 %v70
  %v410 = vunpack.c.l.b16 %v71
  %v411 = vunpack.c.l.b16 %v72
  %v412 = vunpack.c.l.b16 %v73
  %v413 = vpack.c.b16 %v398, %v397
  %v414 = vpack.c.b16 %v400, %v399
  %v415 = vpack.c.b16 %v402, %v401
  %v416 = vpack.c.b16 %v404, %v403
  %v417 = vpack.c.b16 %v406, %v405
  %v418 = vpack.c.b16 %v408, %v407
  %v419 = vpack.c.b16 %v410, %v409
  %v420 = vpack.c.b16 %v412, %v411
  %429 = vmatpush.bf16.msra.mxu0 %v420
  %430 = vmatpush.bf16.msra.mxu0 %v419
  %431 = vmatpush.bf16.msra.mxu0 %v418
  %432 = vmatpush.bf16.msra.mxu0 %v417
  %433 = vmatpush.bf16.msra.mxu0 %v416
  %434 = vmatpush.bf16.msra.mxu0 %v415
  %435 = vmatpush.bf16.msra.mxu0 %v414
  %436 = vmatpush.bf16.msra.mxu0 %v413
  %437 = vmatmul.bf16.gmra.mxu0 %v377
  %v438 = vpop.f32.mrf.mxu0
  %v439 = vadd.f32 %v379, %v438
  %v440 = vpop.f32.mrf.mxu0
  %441 = vdwg.mxu0
  %s442 = smul.u32 0, 8
  %v443 = vstv %s442
  %vm444 = vcmp.lt.s32.totalorder %v443, %v75
  %v445 = vsel %vm444, 1, 0
  %446 = vset.pattern.permute.xlu0 0
  %447 = vperm.xlu0 %446, %v445
  %v448 = vpop.permute.xlu0 %447
  %vm449 = vcmp.eq.s32.totalorder %v448, 1
  %v450 = vsel %vm449, %v439, 0.0
  %vm451 = vcmask 58368
  %452 = vst.msk [vmem:[%s5] sm:$0x3] %vm451, %v450
  %s453 = scalar_lea.vmem %s0, 8
  %v454 = vld [vmem:[%s453] sm:$0xff]
  %455 = vmatpush.bf16.msra.mxu0 %v204
  %456 = vmatpush.bf16.msra.mxu0 %v200
  %457 = vmatpush.bf16.msra.mxu0 %v196
  %458 = vmatpush.bf16.msra.mxu0 %v192
  %459 = vmatpush.bf16.msra.mxu0 %v188
  %460 = vmatpush.bf16.msra.mxu0 %v184
  %461 = vmatpush.bf16.msra.mxu0 %v180
  %462 = vmatpush.bf16.msra.mxu0 %v176
  %463 = vmatmul.bf16.gmra.mxu0 %v377
  %v464 = vpop.f32.mrf.mxu0
  %v465 = vadd.f32 0.0, %v464
  %v466 = vpop.f32.mrf.mxu0
  %467 = vdwg.mxu0
  %468 = vmatpush.bf16.msra.mxu0 %v205
  %469 = vmatpush.bf16.msra.mxu0 %v201
  %470 = vmatpush.bf16.msra.mxu0 %v197
  %471 = vmatpush.bf16.msra.mxu0 %v193
  %472 = vmatpush.bf16.msra.mxu0 %v189
  %473 = vmatpush.bf16.msra.mxu0 %v185
  %474 = vmatpush.bf16.msra.mxu0 %v181
  %475 = vmatpush.bf16.msra.mxu0 %v177
  %476 = vmatmul.bf16.gmra.mxu0 %v377
  %v477 = vpop.f32.mrf.mxu0
  %v478 = vadd.f32 0.0, %v477
  %v479 = vpop.f32.mrf.mxu0
  %480 = vdwg.mxu0
  %481 = vmatpush.bf16.msra.mxu0 %v206
  %482 = vmatpush.bf16.msra.mxu0 %v202
  %483 = vmatpush.bf16.msra.mxu0 %v198
  %484 = vmatpush.bf16.msra.mxu0 %v194
  %485 = vmatpush.bf16.msra.mxu0 %v190
  %486 = vmatpush.bf16.msra.mxu0 %v186
  %487 = vmatpush.bf16.msra.mxu0 %v182
  %488 = vmatpush.bf16.msra.mxu0 %v178
  %489 = vmatmul.bf16.gmra.mxu0 %v377
  %v490 = vpop.f32.mrf.mxu0
  %v491 = vadd.f32 0.0, %v490
  %v492 = vpop.f32.mrf.mxu0
  %493 = vdwg.mxu0
  %494 = vmatpush.bf16.msra.mxu0 %v207
  %495 = vmatpush.bf16.msra.mxu0 %v203
  %496 = vmatpush.bf16.msra.mxu0 %v199
  %497 = vmatpush.bf16.msra.mxu0 %v195
  %498 = vmatpush.bf16.msra.mxu0 %v191
  %499 = vmatpush.bf16.msra.mxu0 %v187
  %500 = vmatpush.bf16.msra.mxu0 %v183
  %501 = vmatpush.bf16.msra.mxu0 %v179
  %502 = vmatmul.bf16.gmra.mxu0 %v377
  %v503 = vpop.f32.mrf.mxu0
  %v504 = vadd.f32 0.0, %v503
  %v505 = vpop.f32.mrf.mxu0
  %506 = vdwg.mxu0
  %v511 = vrot.slane %v478, 6
  %v512 = vrot.slane %v491, 4
  %v513 = vrot.slane %v504, 2
  %v514 = vsel %vm299, %v465, %v511
  %v515 = vsel %vm301, %v512, %v513
  %v516 = vsel %vm303, %v514, %v515
  %v518 = vadd.f32 %v454, %v516
  %v519 = vxor.u32 %v518, 2147483648
  %v520 = vmul.f32 %v519, 1.442695
  %v521 = vpow.pop %v520
  %v522 = vadd.f32 %v521, 1.0
  %v523 = vrcp.pop %v522
  %v524 = vmul.f32 %v522, %v523
  %v525 = vsub.f32 1.0, %v524
  %v526 = vmul.f32 %v523, %v525
  %v527 = vadd.f32 %v523, %v526
  %vm528 = vweird.f32 %v522
  %vm529 = vweird.f32 %v523
  %vm530 = vmor %vm528, %vm529
  %v531 = vsel %vm530, %v523, %v527
  %v532 = vand.u32 2147483647, %v522
  %vm533 = vcmp.eq.f32.partialorder %v532, 8.507059e+37
  %v534 = vand.u32 %v522, 2147483648
  %v535 = vor.u32 1.1754944e-38, %v534
  %v536 = vsel %vm533, %v535, %v531
  %v537 = vmul.f32 1.0, %v536
  %v539 = vrot.slane %v518, 2
  %v541 = vxor.u32 %v539, 2147483648
  %v542 = vmul.f32 %v541, 1.442695
  %v543 = vpow.pop %v542
  %v544 = vadd.f32 %v543, 1.0
  %v545 = vrcp.pop %v544
  %v546 = vmul.f32 %v544, %v545
  %v547 = vsub.f32 1.0, %v546
  %v548 = vmul.f32 %v545, %v547
  %v549 = vadd.f32 %v545, %v548
  %vm550 = vweird.f32 %v544
  %vm551 = vweird.f32 %v545
  %vm552 = vmor %vm550, %vm551
  %v553 = vsel %vm552, %v545, %v549
  %v554 = vand.u32 2147483647, %v544
  %vm555 = vcmp.eq.f32.partialorder %v554, 8.507059e+37
  %v556 = vand.u32 %v544, 2147483648
  %v557 = vor.u32 1.1754944e-38, %v556
  %v558 = vsel %vm555, %v557, %v553
  %v559 = vmul.f32 1.0, %v558
  %v560 = vrot.slane %v518, 4
  %v562 = vtanh.pop %v560
  %v563 = vrot.slane %v518, 6
  %v565 = vxor.u32 %v563, 2147483648
  %v566 = vmul.f32 %v565, 1.442695
  %v567 = vpow.pop %v566
  %v568 = vadd.f32 %v567, 1.0
  %v569 = vrcp.pop %v568
  %v570 = vmul.f32 %v568, %v569
  %v571 = vsub.f32 1.0, %v570
  %v572 = vmul.f32 %v569, %v571
  %v573 = vadd.f32 %v569, %v572
  %vm574 = vweird.f32 %v568
  %vm575 = vweird.f32 %v569
  %vm576 = vmor %vm574, %vm575
  %v577 = vsel %vm576, %v569, %v573
  %v578 = vand.u32 2147483647, %v568
  %vm579 = vcmp.eq.f32.partialorder %v578, 8.507059e+37
  %v580 = vand.u32 %v568, 2147483648
  %v581 = vor.u32 1.1754944e-38, %v580
  %v582 = vsel %vm579, %v581, %v577
  %v583 = vmul.f32 1.0, %v582
  %v584 = vmul.f32 %v559, %v374
  %v585 = vmul.f32 %v537, %v562
  %v586 = vadd.f32 %v584, %v585
  %v587 = vtanh.pop %v586
  %v588 = vmul.f32 %v583, %v587
  %v589 = vpack.c.bf16 %v588, %v588
  %590 = vmatpush.bf16.msra.mxu0 %v420
  %591 = vmatpush.bf16.msra.mxu0 %v419
  %592 = vmatpush.bf16.msra.mxu0 %v418
  %593 = vmatpush.bf16.msra.mxu0 %v417
  %594 = vmatpush.bf16.msra.mxu0 %v416
  %595 = vmatpush.bf16.msra.mxu0 %v415
  %596 = vmatpush.bf16.msra.mxu0 %v414
  %597 = vmatpush.bf16.msra.mxu0 %v413
  %598 = vmatmul.bf16.gmra.mxu0 %v589
  %v599 = vpop.f32.mrf.mxu0
  %v600 = vadd.f32 %v379, %v599
  %v601 = vpop.f32.mrf.mxu0
  %602 = vdwg.mxu0
  %s603 = sadd.s32 %s442, 1
  %v604 = vstv %s603
  %vm605 = vcmp.lt.s32.totalorder %v604, %v75
  %v606 = vsel %vm605, 1, 0
  %607 = vset.pattern.permute.xlu0 0
  %608 = vperm.xlu0 %607, %v606
  %v609 = vpop.permute.xlu0 %608
  %vm610 = vcmp.eq.s32.totalorder %v609, 1
  %v611 = vsel %vm610, %v600, 0.0
  %s612 = scalar_lea.vmem %s5, 2
  %613 = vst.msk [vmem:[%s612] sm:$0x3] %vm451, %v611
  %s614 = scalar_lea.vmem %s0, 16
  %v615 = vld [vmem:[%s614] sm:$0xff]
  %616 = vmatpush.bf16.msra.mxu0 %v204
  %617 = vmatpush.bf16.msra.mxu0 %v200
  %618 = vmatpush.bf16.msra.mxu0 %v196
  %619 = vmatpush.bf16.msra.mxu0 %v192
  %620 = vmatpush.bf16.msra.mxu0 %v188
  %621 = vmatpush.bf16.msra.mxu0 %v184
  %622 = vmatpush.bf16.msra.mxu0 %v180
  %623 = vmatpush.bf16.msra.mxu0 %v176
  %624 = vmatmul.bf16.gmra.mxu0 %v589
  %v625 = vpop.f32.mrf.mxu0
  %v626 = vadd.f32 0.0, %v625
  %v627 = vpop.f32.mrf.mxu0
  %628 = vdwg.mxu0
  %629 = vmatpush.bf16.msra.mxu0 %v205
  %630 = vmatpush.bf16.msra.mxu0 %v201
  %631 = vmatpush.bf16.msra.mxu0 %v197
  %632 = vmatpush.bf16.msra.mxu0 %v193
  %633 = vmatpush.bf16.msra.mxu0 %v189
  %634 = vmatpush.bf16.msra.mxu0 %v185
  %635 = vmatpush.bf16.msra.mxu0 %v181
  %636 = vmatpush.bf16.msra.mxu0 %v177
  %637 = vmatmul.bf16.gmra.mxu0 %v589
  %v638 = vpop.f32.mrf.mxu0
  %v639 = vadd.f32 0.0, %v638
  %v640 = vpop.f32.mrf.mxu0
  %641 = vdwg.mxu0
  %642 = vmatpush.bf16.msra.mxu0 %v206
  %643 = vmatpush.bf16.msra.mxu0 %v202
  %644 = vmatpush.bf16.msra.mxu0 %v198
  %645 = vmatpush.bf16.msra.mxu0 %v194
  %646 = vmatpush.bf16.msra.mxu0 %v190
  %647 = vmatpush.bf16.msra.mxu0 %v186
  %648 = vmatpush.bf16.msra.mxu0 %v182
  %649 = vmatpush.bf16.msra.mxu0 %v178
  %650 = vmatmul.bf16.gmra.mxu0 %v589
  %v651 = vpop.f32.mrf.mxu0
  %v652 = vadd.f32 0.0, %v651
  %v653 = vpop.f32.mrf.mxu0
  %654 = vdwg.mxu0
  %655 = vmatpush.bf16.msra.mxu0 %v207
  %656 = vmatpush.bf16.msra.mxu0 %v203
  %657 = vmatpush.bf16.msra.mxu0 %v199
  %658 = vmatpush.bf16.msra.mxu0 %v195
  %659 = vmatpush.bf16.msra.mxu0 %v191
  %660 = vmatpush.bf16.msra.mxu0 %v187
  %661 = vmatpush.bf16.msra.mxu0 %v183
  %662 = vmatpush.bf16.msra.mxu0 %v179
  %663 = vmatmul.bf16.gmra.mxu0 %v589
  %v664 = vpop.f32.mrf.mxu0
  %v665 = vadd.f32 0.0, %v664
  %v666 = vpop.f32.mrf.mxu0
  %667 = vdwg.mxu0
  %v672 = vrot.slane %v639, 6
  %v673 = vrot.slane %v652, 4
  %v674 = vrot.slane %v665, 2
  %v675 = vsel %vm299, %v626, %v672
  %v676 = vsel %vm301, %v673, %v674
  %v677 = vsel %vm303, %v675, %v676
  %v679 = vadd.f32 %v615, %v677
  %v680 = vxor.u32 %v679, 2147483648
  %v681 = vmul.f32 %v680, 1.442695
  %v682 = vpow.pop %v681
  %v683 = vadd.f32 %v682, 1.0
  %v684 = vrcp.pop %v683
  %v685 = vmul.f32 %v683, %v684
  %v686 = vsub.f32 1.0, %v685
  %v687 = vmul.f32 %v684, %v686
  %v688 = vadd.f32 %v684, %v687
  %vm689 = vweird.f32 %v683
  %vm690 = vweird.f32 %v684
  %vm691 = vmor %vm689, %vm690
  %v692 = vsel %vm691, %v684, %v688
  %v693 = vand.u32 2147483647, %v683
  %vm694 = vcmp.eq.f32.partialorder %v693, 8.507059e+37
  %v695 = vand.u32 %v683, 2147483648
  %v696 = vor.u32 1.1754944e-38, %v695
  %v697 = vsel %vm694, %v696, %v692
  %v698 = vmul.f32 1.0, %v697
  %v700 = vrot.slane %v679, 2
  %v702 = vxor.u32 %v700, 2147483648
  %v703 = vmul.f32 %v702, 1.442695
  %v704 = vpow.pop %v703
  %v705 = vadd.f32 %v704, 1.0
  %v706 = vrcp.pop %v705
  %v707 = vmul.f32 %v705, %v706
  %v708 = vsub.f32 1.0, %v707
  %v709 = vmul.f32 %v706, %v708
  %v710 = vadd.f32 %v706, %v709
  %vm711 = vweird.f32 %v705
  %vm712 = vweird.f32 %v706
  %vm713 = vmor %vm711, %vm712
  %v714 = vsel %vm713, %v706, %v710
  %v715 = vand.u32 2147483647, %v705
  %vm716 = vcmp.eq.f32.partialorder %v715, 8.507059e+37
  %v717 = vand.u32 %v705, 2147483648
  %v718 = vor.u32 1.1754944e-38, %v717
  %v719 = vsel %vm716, %v718, %v714
  %v720 = vmul.f32 1.0, %v719
  %v721 = vrot.slane %v679, 4
  %v723 = vtanh.pop %v721
  %v724 = vrot.slane %v679, 6
  %v726 = vxor.u32 %v724, 2147483648
  %v727 = vmul.f32 %v726, 1.442695
  %v728 = vpow.pop %v727
  %v729 = vadd.f32 %v728, 1.0
  %v730 = vrcp.pop %v729
  %v731 = vmul.f32 %v729, %v730
  %v732 = vsub.f32 1.0, %v731
  %v733 = vmul.f32 %v730, %v732
  %v734 = vadd.f32 %v730, %v733
  %vm735 = vweird.f32 %v729
  %vm736 = vweird.f32 %v730
  %vm737 = vmor %vm735, %vm736
  %v738 = vsel %vm737, %v730, %v734
  %v739 = vand.u32 2147483647, %v729
  %vm740 = vcmp.eq.f32.partialorder %v739, 8.507059e+37
  %v741 = vand.u32 %v729, 2147483648
  %v742 = vor.u32 1.1754944e-38, %v741
  %v743 = vsel %vm740, %v742, %v738
  %v744 = vmul.f32 1.0, %v743
  %v745 = vmul.f32 %v720, %v586
  %v746 = vmul.f32 %v698, %v723
  %v747 = vadd.f32 %v745, %v746
  %v748 = vtanh.pop %v747
  %v749 = vmul.f32 %v744, %v748
  %v750 = vpack.c.bf16 %v749, %v749
  %751 = vmatpush.bf16.msra.mxu0 %v420
  %752 = vmatpush.bf16.msra.mxu0 %v419
  %753 = vmatpush.bf16.msra.mxu0 %v418
  %754 = vmatpush.bf16.msra.mxu0 %v417
  %755 = vmatpush.bf16.msra.mxu0 %v416
  %756 = vmatpush.bf16.msra.mxu0 %v415
  %757 = vmatpush.bf16.msra.mxu0 %v414
  %758 = vmatpush.bf16.msra.mxu0 %v413
  %759 = vmatmul.bf16.gmra.mxu0 %v750
  %v760 = vpop.f32.mrf.mxu0
  %v761 = vadd.f32 %v379, %v760
  %v762 = vpop.f32.mrf.mxu0
  %763 = vdwg.mxu0
  %s764 = sadd.s32 %s442, 2
  %v765 = vstv %s764
  %vm766 = vcmp.lt.s32.totalorder %v765, %v75
  %v767 = vsel %vm766, 1, 0
  %768 = vset.pattern.permute.xlu0 0
  %769 = vperm.xlu0 %768, %v767
  %v770 = vpop.permute.xlu0 %769
  %vm771 = vcmp.eq.s32.totalorder %v770, 1
  %v772 = vsel %vm771, %v761, 0.0
  %s773 = scalar_lea.vmem %s5, 4
  %774 = vst.msk [vmem:[%s773] sm:$0x3] %vm451, %v772
  %s775 = scalar_lea.vmem %s0, 24
  %v776 = vld [vmem:[%s775] sm:$0xff]
  %777 = vmatpush.bf16.msra.mxu0 %v204
  %778 = vmatpush.bf16.msra.mxu0 %v200
  %779 = vmatpush.bf16.msra.mxu0 %v196
  %780 = vmatpush.bf16.msra.mxu0 %v192
  %781 = vmatpush.bf16.msra.mxu0 %v188
  %782 = vmatpush.bf16.msra.mxu0 %v184
  %783 = vmatpush.bf16.msra.mxu0 %v180
  %784 = vmatpush.bf16.msra.mxu0 %v176
  %785 = vmatmul.bf16.gmra.mxu0 %v750
  %v786 = vpop.f32.mrf.mxu0
  %v787 = vadd.f32 0.0, %v786
  %v788 = vpop.f32.mrf.mxu0
  %789 = vdwg.mxu0
  %790 = vmatpush.bf16.msra.mxu0 %v205
  %791 = vmatpush.bf16.msra.mxu0 %v201
  %792 = vmatpush.bf16.msra.mxu0 %v197
  %793 = vmatpush.bf16.msra.mxu0 %v193
  %794 = vmatpush.bf16.msra.mxu0 %v189
  %795 = vmatpush.bf16.msra.mxu0 %v185
  %796 = vmatpush.bf16.msra.mxu0 %v181
  %797 = vmatpush.bf16.msra.mxu0 %v177
  %798 = vmatmul.bf16.gmra.mxu0 %v750
  %v799 = vpop.f32.mrf.mxu0
  %v800 = vadd.f32 0.0, %v799
  %v801 = vpop.f32.mrf.mxu0
  %802 = vdwg.mxu0
  %803 = vmatpush.bf16.msra.mxu0 %v206
  %804 = vmatpush.bf16.msra.mxu0 %v202
  %805 = vmatpush.bf16.msra.mxu0 %v198
  %806 = vmatpush.bf16.msra.mxu0 %v194
  %807 = vmatpush.bf16.msra.mxu0 %v190
  %808 = vmatpush.bf16.msra.mxu0 %v186
  %809 = vmatpush.bf16.msra.mxu0 %v182
  %810 = vmatpush.bf16.msra.mxu0 %v178
  %811 = vmatmul.bf16.gmra.mxu0 %v750
  %v812 = vpop.f32.mrf.mxu0
  %v813 = vadd.f32 0.0, %v812
  %v814 = vpop.f32.mrf.mxu0
  %815 = vdwg.mxu0
  %816 = vmatpush.bf16.msra.mxu0 %v207
  %817 = vmatpush.bf16.msra.mxu0 %v203
  %818 = vmatpush.bf16.msra.mxu0 %v199
  %819 = vmatpush.bf16.msra.mxu0 %v195
  %820 = vmatpush.bf16.msra.mxu0 %v191
  %821 = vmatpush.bf16.msra.mxu0 %v187
  %822 = vmatpush.bf16.msra.mxu0 %v183
  %823 = vmatpush.bf16.msra.mxu0 %v179
  %824 = vmatmul.bf16.gmra.mxu0 %v750
  %v825 = vpop.f32.mrf.mxu0
  %v826 = vadd.f32 0.0, %v825
  %v827 = vpop.f32.mrf.mxu0
  %828 = vdwg.mxu0
  %v833 = vrot.slane %v800, 6
  %v834 = vrot.slane %v813, 4
  %v835 = vrot.slane %v826, 2
  %v836 = vsel %vm299, %v787, %v833
  %v837 = vsel %vm301, %v834, %v835
  %v838 = vsel %vm303, %v836, %v837
  %v840 = vadd.f32 %v776, %v838
  %v841 = vxor.u32 %v840, 2147483648
  %v842 = vmul.f32 %v841, 1.442695
  %v843 = vpow.pop %v842
  %v844 = vadd.f32 %v843, 1.0
  %v845 = vrcp.pop %v844
  %v846 = vmul.f32 %v844, %v845
  %v847 = vsub.f32 1.0, %v846
  %v848 = vmul.f32 %v845, %v847
  %v849 = vadd.f32 %v845, %v848
  %vm850 = vweird.f32 %v844
  %vm851 = vweird.f32 %v845
  %vm852 = vmor %vm850, %vm851
  %v853 = vsel %vm852, %v845, %v849
  %v854 = vand.u32 2147483647, %v844
  %vm855 = vcmp.eq.f32.partialorder %v854, 8.507059e+37
  %v856 = vand.u32 %v844, 2147483648
  %v857 = vor.u32 1.1754944e-38, %v856
  %v858 = vsel %vm855, %v857, %v853
  %v859 = vmul.f32 1.0, %v858
  %v861 = vrot.slane %v840, 2
  %v863 = vxor.u32 %v861, 2147483648
  %v864 = vmul.f32 %v863, 1.442695
  %v865 = vpow.pop %v864
  %v866 = vadd.f32 %v865, 1.0
  %v867 = vrcp.pop %v866
  %v868 = vmul.f32 %v866, %v867
  %v869 = vsub.f32 1.0, %v868
  %v870 = vmul.f32 %v867, %v869
  %v871 = vadd.f32 %v867, %v870
  %vm872 = vweird.f32 %v866
  %vm873 = vweird.f32 %v867
  %vm874 = vmor %vm872, %vm873
  %v875 = vsel %vm874, %v867, %v871
  %v876 = vand.u32 2147483647, %v866
  %vm877 = vcmp.eq.f32.partialorder %v876, 8.507059e+37
  %v878 = vand.u32 %v866, 2147483648
  %v879 = vor.u32 1.1754944e-38, %v878
  %v880 = vsel %vm877, %v879, %v875
  %v881 = vmul.f32 1.0, %v880
  %v882 = vrot.slane %v840, 4
  %v884 = vtanh.pop %v882
  %v885 = vrot.slane %v840, 6
  %v887 = vxor.u32 %v885, 2147483648
  %v888 = vmul.f32 %v887, 1.442695
  %v889 = vpow.pop %v888
  %v890 = vadd.f32 %v889, 1.0
  %v891 = vrcp.pop %v890
  %v892 = vmul.f32 %v890, %v891
  %v893 = vsub.f32 1.0, %v892
  %v894 = vmul.f32 %v891, %v893
  %v895 = vadd.f32 %v891, %v894
  %vm896 = vweird.f32 %v890
  %vm897 = vweird.f32 %v891
  %vm898 = vmor %vm896, %vm897
  %v899 = vsel %vm898, %v891, %v895
  %v900 = vand.u32 2147483647, %v890
  %vm901 = vcmp.eq.f32.partialorder %v900, 8.507059e+37
  %v902 = vand.u32 %v890, 2147483648
  %v903 = vor.u32 1.1754944e-38, %v902
  %v904 = vsel %vm901, %v903, %v899
  %v905 = vmul.f32 1.0, %v904
  %v906 = vmul.f32 %v881, %v747
  %v907 = vmul.f32 %v859, %v884
  %v908 = vadd.f32 %v906, %v907
  %v909 = vtanh.pop %v908
  %v910 = vmul.f32 %v905, %v909
  %v911 = vpack.c.bf16 %v910, %v910
  %912 = vmatpush.bf16.msra.mxu0 %v420
  %913 = vmatpush.bf16.msra.mxu0 %v419
  %914 = vmatpush.bf16.msra.mxu0 %v418
  %915 = vmatpush.bf16.msra.mxu0 %v417
  %916 = vmatpush.bf16.msra.mxu0 %v416
  %917 = vmatpush.bf16.msra.mxu0 %v415
  %918 = vmatpush.bf16.msra.mxu0 %v414
  %919 = vmatpush.bf16.msra.mxu0 %v413
  %920 = vmatmul.bf16.gmra.mxu0 %v911
  %v921 = vpop.f32.mrf.mxu0
  %v922 = vadd.f32 %v379, %v921
  %v923 = vpop.f32.mrf.mxu0
  %924 = vdwg.mxu0
  %s925 = sadd.s32 %s442, 3
  %v926 = vstv %s925
  %vm927 = vcmp.lt.s32.totalorder %v926, %v75
  %v928 = vsel %vm927, 1, 0
  %929 = vset.pattern.permute.xlu0 0
  %930 = vperm.xlu0 %929, %v928
  %v931 = vpop.permute.xlu0 %930
  %vm932 = vcmp.eq.s32.totalorder %v931, 1
  %v933 = vsel %vm932, %v922, 0.0
  %s934 = scalar_lea.vmem %s5, 6
  %935 = vst.msk [vmem:[%s934] sm:$0x3] %vm451, %v933
  %s936 = scalar_lea.vmem %s0, 32
  %v937 = vld [vmem:[%s936] sm:$0xff]
  %938 = vmatpush.bf16.msra.mxu0 %v204
  %939 = vmatpush.bf16.msra.mxu0 %v200
  %940 = vmatpush.bf16.msra.mxu0 %v196
  %941 = vmatpush.bf16.msra.mxu0 %v192
  %942 = vmatpush.bf16.msra.mxu0 %v188
  %943 = vmatpush.bf16.msra.mxu0 %v184
  %944 = vmatpush.bf16.msra.mxu0 %v180
  %945 = vmatpush.bf16.msra.mxu0 %v176
  %946 = vmatmul.bf16.gmra.mxu0 %v911
  %v947 = vpop.f32.mrf.mxu0
  %v948 = vadd.f32 0.0, %v947
  %v949 = vpop.f32.mrf.mxu0
  %950 = vdwg.mxu0
  %951 = vmatpush.bf16.msra.mxu0 %v205
  %952 = vmatpush.bf16.msra.mxu0 %v201
  %953 = vmatpush.bf16.msra.mxu0 %v197
  %954 = vmatpush.bf16.msra.mxu0 %v193
  %955 = vmatpush.bf16.msra.mxu0 %v189
  %956 = vmatpush.bf16.msra.mxu0 %v185
  %957 = vmatpush.bf16.msra.mxu0 %v181
  %958 = vmatpush.bf16.msra.mxu0 %v177
  %959 = vmatmul.bf16.gmra.mxu0 %v911
  %v960 = vpop.f32.mrf.mxu0
  %v961 = vadd.f32 0.0, %v960
  %v962 = vpop.f32.mrf.mxu0
  %963 = vdwg.mxu0
  %964 = vmatpush.bf16.msra.mxu0 %v206
  %965 = vmatpush.bf16.msra.mxu0 %v202
  %966 = vmatpush.bf16.msra.mxu0 %v198
  %967 = vmatpush.bf16.msra.mxu0 %v194
  %968 = vmatpush.bf16.msra.mxu0 %v190
  %969 = vmatpush.bf16.msra.mxu0 %v186
  %970 = vmatpush.bf16.msra.mxu0 %v182
  %971 = vmatpush.bf16.msra.mxu0 %v178
  %972 = vmatmul.bf16.gmra.mxu0 %v911
  %v973 = vpop.f32.mrf.mxu0
  %v974 = vadd.f32 0.0, %v973
  %v975 = vpop.f32.mrf.mxu0
  %976 = vdwg.mxu0
  %977 = vmatpush.bf16.msra.mxu0 %v207
  %978 = vmatpush.bf16.msra.mxu0 %v203
  %979 = vmatpush.bf16.msra.mxu0 %v199
  %980 = vmatpush.bf16.msra.mxu0 %v195
  %981 = vmatpush.bf16.msra.mxu0 %v191
  %982 = vmatpush.bf16.msra.mxu0 %v187
  %983 = vmatpush.bf16.msra.mxu0 %v183
  %984 = vmatpush.bf16.msra.mxu0 %v179
  %985 = vmatmul.bf16.gmra.mxu0 %v911
  %v986 = vpop.f32.mrf.mxu0
  %v987 = vadd.f32 0.0, %v986
  %v988 = vpop.f32.mrf.mxu0
  %989 = vdwg.mxu0
  %v994 = vrot.slane %v961, 6
  %v995 = vrot.slane %v974, 4
  %v996 = vrot.slane %v987, 2
  %v997 = vsel %vm299, %v948, %v994
  %v998 = vsel %vm301, %v995, %v996
  %v999 = vsel %vm303, %v997, %v998
  %v1001 = vadd.f32 %v937, %v999
  %v1002 = vxor.u32 %v1001, 2147483648
  %v1003 = vmul.f32 %v1002, 1.442695
  %v1004 = vpow.pop %v1003
  %v1005 = vadd.f32 %v1004, 1.0
  %v1006 = vrcp.pop %v1005
  %v1007 = vmul.f32 %v1005, %v1006
  %v1008 = vsub.f32 1.0, %v1007
  %v1009 = vmul.f32 %v1006, %v1008
  %v1010 = vadd.f32 %v1006, %v1009
  %vm1011 = vweird.f32 %v1005
  %vm1012 = vweird.f32 %v1006
  %vm1013 = vmor %vm1011, %vm1012
  %v1014 = vsel %vm1013, %v1006, %v1010
  %v1015 = vand.u32 2147483647, %v1005
  %vm1016 = vcmp.eq.f32.partialorder %v1015, 8.507059e+37
  %v1017 = vand.u32 %v1005, 2147483648
  %v1018 = vor.u32 1.1754944e-38, %v1017
  %v1019 = vsel %vm1016, %v1018, %v1014
  %v1020 = vmul.f32 1.0, %v1019
  %v1022 = vrot.slane %v1001, 2
  %v1024 = vxor.u32 %v1022, 2147483648
  %v1025 = vmul.f32 %v1024, 1.442695
  %v1026 = vpow.pop %v1025
  %v1027 = vadd.f32 %v1026, 1.0
  %v1028 = vrcp.pop %v1027
  %v1029 = vmul.f32 %v1027, %v1028
  %v1030 = vsub.f32 1.0, %v1029
  %v1031 = vmul.f32 %v1028, %v1030
  %v1032 = vadd.f32 %v1028, %v1031
  %vm1033 = vweird.f32 %v1027
  %vm1034 = vweird.f32 %v1028
  %vm1035 = vmor %vm1033, %vm1034
  %v1036 = vsel %vm1035, %v1028, %v1032
  %v1037 = vand.u32 2147483647, %v1027
  %vm1038 = vcmp.eq.f32.partialorder %v1037, 8.507059e+37
  %v1039 = vand.u32 %v1027, 2147483648
  %v1040 = vor.u32 1.1754944e-38, %v1039
  %v1041 = vsel %vm1038, %v1040, %v1036
  %v1042 = vmul.f32 1.0, %v1041
  %v1043 = vrot.slane %v1001, 4
  %v1045 = vtanh.pop %v1043
  %v1046 = vrot.slane %v1001, 6
  %v1048 = vxor.u32 %v1046, 2147483648
  %v1049 = vmul.f32 %v1048, 1.442695
  %v1050 = vpow.pop %v1049
  %v1051 = vadd.f32 %v1050, 1.0
  %v1052 = vrcp.pop %v1051
  %v1053 = vmul.f32 %v1051, %v1052
  %v1054 = vsub.f32 1.0, %v1053
  %v1055 = vmul.f32 %v1052, %v1054
  %v1056 = vadd.f32 %v1052, %v1055
  %vm1057 = vweird.f32 %v1051
  %vm1058 = vweird.f32 %v1052
  %vm1059 = vmor %vm1057, %vm1058
  %v1060 = vsel %vm1059, %v1052, %v1056
  %v1061 = vand.u32 2147483647, %v1051
  %vm1062 = vcmp.eq.f32.partialorder %v1061, 8.507059e+37
  %v1063 = vand.u32 %v1051, 2147483648
  %v1064 = vor.u32 1.1754944e-38, %v1063
  %v1065 = vsel %vm1062, %v1064, %v1060
  %v1066 = vmul.f32 1.0, %v1065
  %v1067 = vmul.f32 %v1042, %v908
  %v1068 = vmul.f32 %v1020, %v1045
  %v1069 = vadd.f32 %v1067, %v1068
  %v1070 = vtanh.pop %v1069
  %v1071 = vmul.f32 %v1066, %v1070
  %v1072 = vpack.c.bf16 %v1071, %v1071
  %1073 = vmatpush.bf16.msra.mxu0 %v420
  %1074 = vmatpush.bf16.msra.mxu0 %v419
  %1075 = vmatpush.bf16.msra.mxu0 %v418
  %1076 = vmatpush.bf16.msra.mxu0 %v417
  %1077 = vmatpush.bf16.msra.mxu0 %v416
  %1078 = vmatpush.bf16.msra.mxu0 %v415
  %1079 = vmatpush.bf16.msra.mxu0 %v414
  %1080 = vmatpush.bf16.msra.mxu0 %v413
  %1081 = vmatmul.bf16.gmra.mxu0 %v1072
  %v1082 = vpop.f32.mrf.mxu0
  %v1083 = vadd.f32 %v379, %v1082
  %v1084 = vpop.f32.mrf.mxu0
  %1085 = vdwg.mxu0
  %s1086 = sadd.s32 %s442, 4
  %v1087 = vstv %s1086
  %vm1088 = vcmp.lt.s32.totalorder %v1087, %v75
  %v1089 = vsel %vm1088, 1, 0
  %1090 = vset.pattern.permute.xlu0 0
  %1091 = vperm.xlu0 %1090, %v1089
  %v1092 = vpop.permute.xlu0 %1091
  %vm1093 = vcmp.eq.s32.totalorder %v1092, 1
  %v1094 = vsel %vm1093, %v1083, 0.0
  %s1095 = scalar_lea.vmem %s5, 8
  %1096 = vst.msk [vmem:[%s1095] sm:$0x3] %vm451, %v1094
  %s1097 = scalar_lea.vmem %s0, 40
  %v1098 = vld [vmem:[%s1097] sm:$0xff]
  %1099 = vmatpush.bf16.msra.mxu0 %v204
  %1100 = vmatpush.bf16.msra.mxu0 %v200
  %1101 = vmatpush.bf16.msra.mxu0 %v196
  %1102 = vmatpush.bf16.msra.mxu0 %v192
  %1103 = vmatpush.bf16.msra.mxu0 %v188
  %1104 = vmatpush.bf16.msra.mxu0 %v184
  %1105 = vmatpush.bf16.msra.mxu0 %v180
  %1106 = vmatpush.bf16.msra.mxu0 %v176
  %1107 = vmatmul.bf16.gmra.mxu0 %v1072
  %v1108 = vpop.f32.mrf.mxu0
  %v1109 = vadd.f32 0.0, %v1108
  %v1110 = vpop.f32.mrf.mxu0
  %1111 = vdwg.mxu0
  %1112 = vmatpush.bf16.msra.mxu0 %v205
  %1113 = vmatpush.bf16.msra.mxu0 %v201
  %1114 = vmatpush.bf16.msra.mxu0 %v197
  %1115 = vmatpush.bf16.msra.mxu0 %v193
  %1116 = vmatpush.bf16.msra.mxu0 %v189
  %1117 = vmatpush.bf16.msra.mxu0 %v185
  %1118 = vmatpush.bf16.msra.mxu0 %v181
  %1119 = vmatpush.bf16.msra.mxu0 %v177
  %1120 = vmatmul.bf16.gmra.mxu0 %v1072
  %v1121 = vpop.f32.mrf.mxu0
  %v1122 = vadd.f32 0.0, %v1121
  %v1123 = vpop.f32.mrf.mxu0
  %1124 = vdwg.mxu0
  %1125 = vmatpush.bf16.msra.mxu0 %v206
  %1126 = vmatpush.bf16.msra.mxu0 %v202
  %1127 = vmatpush.bf16.msra.mxu0 %v198
  %1128 = vmatpush.bf16.msra.mxu0 %v194
  %1129 = vmatpush.bf16.msra.mxu0 %v190
  %1130 = vmatpush.bf16.msra.mxu0 %v186
  %1131 = vmatpush.bf16.msra.mxu0 %v182
  %1132 = vmatpush.bf16.msra.mxu0 %v178
  %1133 = vmatmul.bf16.gmra.mxu0 %v1072
  %v1134 = vpop.f32.mrf.mxu0
  %v1135 = vadd.f32 0.0, %v1134
  %v1136 = vpop.f32.mrf.mxu0
  %1137 = vdwg.mxu0
  %1138 = vmatpush.bf16.msra.mxu0 %v207
  %1139 = vmatpush.bf16.msra.mxu0 %v203
  %1140 = vmatpush.bf16.msra.mxu0 %v199
  %1141 = vmatpush.bf16.msra.mxu0 %v195
  %1142 = vmatpush.bf16.msra.mxu0 %v191
  %1143 = vmatpush.bf16.msra.mxu0 %v187
  %1144 = vmatpush.bf16.msra.mxu0 %v183
  %1145 = vmatpush.bf16.msra.mxu0 %v179
  %1146 = vmatmul.bf16.gmra.mxu0 %v1072
  %v1147 = vpop.f32.mrf.mxu0
  %v1148 = vadd.f32 0.0, %v1147
  %v1149 = vpop.f32.mrf.mxu0
  %1150 = vdwg.mxu0
  %v1155 = vrot.slane %v1122, 6
  %v1156 = vrot.slane %v1135, 4
  %v1157 = vrot.slane %v1148, 2
  %v1158 = vsel %vm299, %v1109, %v1155
  %v1159 = vsel %vm301, %v1156, %v1157
  %v1160 = vsel %vm303, %v1158, %v1159
  %v1162 = vadd.f32 %v1098, %v1160
  %v1163 = vxor.u32 %v1162, 2147483648
  %v1164 = vmul.f32 %v1163, 1.442695
  %v1165 = vpow.pop %v1164
  %v1166 = vadd.f32 %v1165, 1.0
  %v1167 = vrcp.pop %v1166
  %v1168 = vmul.f32 %v1166, %v1167
  %v1169 = vsub.f32 1.0, %v1168
  %v1170 = vmul.f32 %v1167, %v1169
  %v1171 = vadd.f32 %v1167, %v1170
  %vm1172 = vweird.f32 %v1166
  %vm1173 = vweird.f32 %v1167
  %vm1174 = vmor %vm1172, %vm1173
  %v1175 = vsel %vm1174, %v1167, %v1171
  %v1176 = vand.u32 2147483647, %v1166
  %vm1177 = vcmp.eq.f32.partialorder %v1176, 8.507059e+37
  %v1178 = vand.u32 %v1166, 2147483648
  %v1179 = vor.u32 1.1754944e-38, %v1178
  %v1180 = vsel %vm1177, %v1179, %v1175
  %v1181 = vmul.f32 1.0, %v1180
  %v1183 = vrot.slane %v1162, 2
  %v1185 = vxor.u32 %v1183, 2147483648
  %v1186 = vmul.f32 %v1185, 1.442695
  %v1187 = vpow.pop %v1186
  %v1188 = vadd.f32 %v1187, 1.0
  %v1189 = vrcp.pop %v1188
  %v1190 = vmul.f32 %v1188, %v1189
  %v1191 = vsub.f32 1.0, %v1190
  %v1192 = vmul.f32 %v1189, %v1191
  %v1193 = vadd.f32 %v1189, %v1192
  %vm1194 = vweird.f32 %v1188
  %vm1195 = vweird.f32 %v1189
  %vm1196 = vmor %vm1194, %vm1195
  %v1197 = vsel %vm1196, %v1189, %v1193
  %v1198 = vand.u32 2147483647, %v1188
  %vm1199 = vcmp.eq.f32.partialorder %v1198, 8.507059e+37
  %v1200 = vand.u32 %v1188, 2147483648
  %v1201 = vor.u32 1.1754944e-38, %v1200
  %v1202 = vsel %vm1199, %v1201, %v1197
  %v1203 = vmul.f32 1.0, %v1202
  %v1204 = vrot.slane %v1162, 4
  %v1206 = vtanh.pop %v1204
  %v1207 = vrot.slane %v1162, 6
  %v1209 = vxor.u32 %v1207, 2147483648
  %v1210 = vmul.f32 %v1209, 1.442695
  %v1211 = vpow.pop %v1210
  %v1212 = vadd.f32 %v1211, 1.0
  %v1213 = vrcp.pop %v1212
  %v1214 = vmul.f32 %v1212, %v1213
  %v1215 = vsub.f32 1.0, %v1214
  %v1216 = vmul.f32 %v1213, %v1215
  %v1217 = vadd.f32 %v1213, %v1216
  %vm1218 = vweird.f32 %v1212
  %vm1219 = vweird.f32 %v1213
  %vm1220 = vmor %vm1218, %vm1219
  %v1221 = vsel %vm1220, %v1213, %v1217
  %v1222 = vand.u32 2147483647, %v1212
  %vm1223 = vcmp.eq.f32.partialorder %v1222, 8.507059e+37
  %v1224 = vand.u32 %v1212, 2147483648
  %v1225 = vor.u32 1.1754944e-38, %v1224
  %v1226 = vsel %vm1223, %v1225, %v1221
  %v1227 = vmul.f32 1.0, %v1226
  %v1228 = vmul.f32 %v1203, %v1069
  %v1229 = vmul.f32 %v1181, %v1206
  %v1230 = vadd.f32 %v1228, %v1229
  %v1231 = vtanh.pop %v1230
  %v1232 = vmul.f32 %v1227, %v1231
  %v1233 = vpack.c.bf16 %v1232, %v1232
  %1234 = vmatpush.bf16.msra.mxu0 %v420
  %1235 = vmatpush.bf16.msra.mxu0 %v419
  %1236 = vmatpush.bf16.msra.mxu0 %v418
  %1237 = vmatpush.bf16.msra.mxu0 %v417
  %1238 = vmatpush.bf16.msra.mxu0 %v416
  %1239 = vmatpush.bf16.msra.mxu0 %v415
  %1240 = vmatpush.bf16.msra.mxu0 %v414
  %1241 = vmatpush.bf16.msra.mxu0 %v413
  %1242 = vmatmul.bf16.gmra.mxu0 %v1233
  %v1243 = vpop.f32.mrf.mxu0
  %v1244 = vadd.f32 %v379, %v1243
  %v1245 = vpop.f32.mrf.mxu0
  %1246 = vdwg.mxu0
  %s1247 = sadd.s32 %s442, 5
  %v1248 = vstv %s1247
  %vm1249 = vcmp.lt.s32.totalorder %v1248, %v75
  %v1250 = vsel %vm1249, 1, 0
  %1251 = vset.pattern.permute.xlu0 0
  %1252 = vperm.xlu0 %1251, %v1250
  %v1253 = vpop.permute.xlu0 %1252
  %vm1254 = vcmp.eq.s32.totalorder %v1253, 1
  %v1255 = vsel %vm1254, %v1244, 0.0
  %s1256 = scalar_lea.vmem %s5, 10
  %1257 = vst.msk [vmem:[%s1256] sm:$0x3] %vm451, %v1255
  %s1258 = scalar_lea.vmem %s0, 48
  %v1259 = vld [vmem:[%s1258] sm:$0xff]
  %1260 = vmatpush.bf16.msra.mxu0 %v204
  %1261 = vmatpush.bf16.msra.mxu0 %v200
  %1262 = vmatpush.bf16.msra.mxu0 %v196
  %1263 = vmatpush.bf16.msra.mxu0 %v192
  %1264 = vmatpush.bf16.msra.mxu0 %v188
  %1265 = vmatpush.bf16.msra.mxu0 %v184
  %1266 = vmatpush.bf16.msra.mxu0 %v180
  %1267 = vmatpush.bf16.msra.mxu0 %v176
  %1268 = vmatmul.bf16.gmra.mxu0 %v1233
  %v1269 = vpop.f32.mrf.mxu0
  %v1270 = vadd.f32 0.0, %v1269
  %v1271 = vpop.f32.mrf.mxu0
  %1272 = vdwg.mxu0
  %1273 = vmatpush.bf16.msra.mxu0 %v205
  %1274 = vmatpush.bf16.msra.mxu0 %v201
  %1275 = vmatpush.bf16.msra.mxu0 %v197
  %1276 = vmatpush.bf16.msra.mxu0 %v193
  %1277 = vmatpush.bf16.msra.mxu0 %v189
  %1278 = vmatpush.bf16.msra.mxu0 %v185
  %1279 = vmatpush.bf16.msra.mxu0 %v181
  %1280 = vmatpush.bf16.msra.mxu0 %v177
  %1281 = vmatmul.bf16.gmra.mxu0 %v1233
  %v1282 = vpop.f32.mrf.mxu0
  %v1283 = vadd.f32 0.0, %v1282
  %v1284 = vpop.f32.mrf.mxu0
  %1285 = vdwg.mxu0
  %1286 = vmatpush.bf16.msra.mxu0 %v206
  %1287 = vmatpush.bf16.msra.mxu0 %v202
  %1288 = vmatpush.bf16.msra.mxu0 %v198
  %1289 = vmatpush.bf16.msra.mxu0 %v194
  %1290 = vmatpush.bf16.msra.mxu0 %v190
  %1291 = vmatpush.bf16.msra.mxu0 %v186
  %1292 = vmatpush.bf16.msra.mxu0 %v182
  %1293 = vmatpush.bf16.msra.mxu0 %v178
  %1294 = vmatmul.bf16.gmra.mxu0 %v1233
  %v1295 = vpop.f32.mrf.mxu0
  %v1296 = vadd.f32 0.0, %v1295
  %v1297 = vpop.f32.mrf.mxu0
  %1298 = vdwg.mxu0
  %1299 = vmatpush.bf16.msra.mxu0 %v207
  %1300 = vmatpush.bf16.msra.mxu0 %v203
  %1301 = vmatpush.bf16.msra.mxu0 %v199
  %1302 = vmatpush.bf16.msra.mxu0 %v195
  %1303 = vmatpush.bf16.msra.mxu0 %v191
  %1304 = vmatpush.bf16.msra.mxu0 %v187
  %1305 = vmatpush.bf16.msra.mxu0 %v183
  %1306 = vmatpush.bf16.msra.mxu0 %v179
  %1307 = vmatmul.bf16.gmra.mxu0 %v1233
  %v1308 = vpop.f32.mrf.mxu0
  %v1309 = vadd.f32 0.0, %v1308
  %v1310 = vpop.f32.mrf.mxu0
  %1311 = vdwg.mxu0
  %v1316 = vrot.slane %v1283, 6
  %v1317 = vrot.slane %v1296, 4
  %v1318 = vrot.slane %v1309, 2
  %v1319 = vsel %vm299, %v1270, %v1316
  %v1320 = vsel %vm301, %v1317, %v1318
  %v1321 = vsel %vm303, %v1319, %v1320
  %v1323 = vadd.f32 %v1259, %v1321
  %v1324 = vxor.u32 %v1323, 2147483648
  %v1325 = vmul.f32 %v1324, 1.442695
  %v1326 = vpow.pop %v1325
  %v1327 = vadd.f32 %v1326, 1.0
  %v1328 = vrcp.pop %v1327
  %v1329 = vmul.f32 %v1327, %v1328
  %v1330 = vsub.f32 1.0, %v1329
  %v1331 = vmul.f32 %v1328, %v1330
  %v1332 = vadd.f32 %v1328, %v1331
  %vm1333 = vweird.f32 %v1327
  %vm1334 = vweird.f32 %v1328
  %vm1335 = vmor %vm1333, %vm1334
  %v1336 = vsel %vm1335, %v1328, %v1332
  %v1337 = vand.u32 2147483647, %v1327
  %vm1338 = vcmp.eq.f32.partialorder %v1337, 8.507059e+37
  %v1339 = vand.u32 %v1327, 2147483648
  %v1340 = vor.u32 1.1754944e-38, %v1339
  %v1341 = vsel %vm1338, %v1340, %v1336
  %v1342 = vmul.f32 1.0, %v1341
  %v1344 = vrot.slane %v1323, 2
  %v1346 = vxor.u32 %v1344, 2147483648
  %v1347 = vmul.f32 %v1346, 1.442695
  %v1348 = vpow.pop %v1347
  %v1349 = vadd.f32 %v1348, 1.0
  %v1350 = vrcp.pop %v1349
  %v1351 = vmul.f32 %v1349, %v1350
  %v1352 = vsub.f32 1.0, %v1351
  %v1353 = vmul.f32 %v1350, %v1352
  %v1354 = vadd.f32 %v1350, %v1353
  %vm1355 = vweird.f32 %v1349
  %vm1356 = vweird.f32 %v1350
  %vm1357 = vmor %vm1355, %vm1356
  %v1358 = vsel %vm1357, %v1350, %v1354
  %v1359 = vand.u32 2147483647, %v1349
  %vm1360 = vcmp.eq.f32.partialorder %v1359, 8.507059e+37
  %v1361 = vand.u32 %v1349, 2147483648
  %v1362 = vor.u32 1.1754944e-38, %v1361
  %v1363 = vsel %vm1360, %v1362, %v1358
  %v1364 = vmul.f32 1.0, %v1363
  %v1365 = vrot.slane %v1323, 4
  %v1367 = vtanh.pop %v1365
  %v1368 = vrot.slane %v1323, 6
  %v1370 = vxor.u32 %v1368, 2147483648
  %v1371 = vmul.f32 %v1370, 1.442695
  %v1372 = vpow.pop %v1371
  %v1373 = vadd.f32 %v1372, 1.0
  %v1374 = vrcp.pop %v1373
  %v1375 = vmul.f32 %v1373, %v1374
  %v1376 = vsub.f32 1.0, %v1375
  %v1377 = vmul.f32 %v1374, %v1376
  %v1378 = vadd.f32 %v1374, %v1377
  %vm1379 = vweird.f32 %v1373
  %vm1380 = vweird.f32 %v1374
  %vm1381 = vmor %vm1379, %vm1380
  %v1382 = vsel %vm1381, %v1374, %v1378
  %v1383 = vand.u32 2147483647, %v1373
  %vm1384 = vcmp.eq.f32.partialorder %v1383, 8.507059e+37
  %v1385 = vand.u32 %v1373, 2147483648
  %v1386 = vor.u32 1.1754944e-38, %v1385
  %v1387 = vsel %vm1384, %v1386, %v1382
  %v1388 = vmul.f32 1.0, %v1387
  %v1389 = vmul.f32 %v1364, %v1230
  %v1390 = vmul.f32 %v1342, %v1367
  %v1391 = vadd.f32 %v1389, %v1390
  %v1392 = vtanh.pop %v1391
  %v1393 = vmul.f32 %v1388, %v1392
  %v1394 = vpack.c.bf16 %v1393, %v1393
  %1395 = vmatpush.bf16.msra.mxu0 %v420
  %1396 = vmatpush.bf16.msra.mxu0 %v419
  %1397 = vmatpush.bf16.msra.mxu0 %v418
  %1398 = vmatpush.bf16.msra.mxu0 %v417
  %1399 = vmatpush.bf16.msra.mxu0 %v416
  %1400 = vmatpush.bf16.msra.mxu0 %v415
  %1401 = vmatpush.bf16.msra.mxu0 %v414
  %1402 = vmatpush.bf16.msra.mxu0 %v413
  %1403 = vmatmul.bf16.gmra.mxu0 %v1394
  %v1404 = vpop.f32.mrf.mxu0
  %v1405 = vadd.f32 %v379, %v1404
  %v1406 = vpop.f32.mrf.mxu0
  %1407 = vdwg.mxu0
  %s1408 = sadd.s32 %s442, 6
  %v1409 = vstv %s1408
  %vm1410 = vcmp.lt.s32.totalorder %v1409, %v75
  %v1411 = vsel %vm1410, 1, 0
  %1412 = vset.pattern.permute.xlu0 0
  %1413 = vperm.xlu0 %1412, %v1411
  %v1414 = vpop.permute.xlu0 %1413
  %vm1415 = vcmp.eq.s32.totalorder %v1414, 1
  %v1416 = vsel %vm1415, %v1405, 0.0
  %s1417 = scalar_lea.vmem %s5, 12
  %1418 = vst.msk [vmem:[%s1417] sm:$0x3] %vm451, %v1416
  %s1419 = scalar_lea.vmem %s0, 56
  %v1420 = vld [vmem:[%s1419] sm:$0xff]
  %1421 = vmatpush.bf16.msra.mxu0 %v204
  %1422 = vmatpush.bf16.msra.mxu0 %v200
  %1423 = vmatpush.bf16.msra.mxu0 %v196
  %1424 = vmatpush.bf16.msra.mxu0 %v192
  %1425 = vmatpush.bf16.msra.mxu0 %v188
  %1426 = vmatpush.bf16.msra.mxu0 %v184
  %1427 = vmatpush.bf16.msra.mxu0 %v180
  %1428 = vmatpush.bf16.msra.mxu0 %v176
  %1429 = vmatmul.bf16.gmra.mxu0 %v1394
  %v1430 = vpop.f32.mrf.mxu0
  %v1431 = vadd.f32 0.0, %v1430
  %v1432 = vpop.f32.mrf.mxu0
  %1433 = vdwg.mxu0
  %1434 = vmatpush.bf16.msra.mxu0 %v205
  %1435 = vmatpush.bf16.msra.mxu0 %v201
  %1436 = vmatpush.bf16.msra.mxu0 %v197
  %1437 = vmatpush.bf16.msra.mxu0 %v193
  %1438 = vmatpush.bf16.msra.mxu0 %v189
  %1439 = vmatpush.bf16.msra.mxu0 %v185
  %1440 = vmatpush.bf16.msra.mxu0 %v181
  %1441 = vmatpush.bf16.msra.mxu0 %v177
  %1442 = vmatmul.bf16.gmra.mxu0 %v1394
  %v1443 = vpop.f32.mrf.mxu0
  %v1444 = vadd.f32 0.0, %v1443
  %v1445 = vpop.f32.mrf.mxu0
  %1446 = vdwg.mxu0
  %1447 = vmatpush.bf16.msra.mxu0 %v206
  %1448 = vmatpush.bf16.msra.mxu0 %v202
  %1449 = vmatpush.bf16.msra.mxu0 %v198
  %1450 = vmatpush.bf16.msra.mxu0 %v194
  %1451 = vmatpush.bf16.msra.mxu0 %v190
  %1452 = vmatpush.bf16.msra.mxu0 %v186
  %1453 = vmatpush.bf16.msra.mxu0 %v182
  %1454 = vmatpush.bf16.msra.mxu0 %v178
  %1455 = vmatmul.bf16.gmra.mxu0 %v1394
  %v1456 = vpop.f32.mrf.mxu0
  %v1457 = vadd.f32 0.0, %v1456
  %v1458 = vpop.f32.mrf.mxu0
  %1459 = vdwg.mxu0
  %1460 = vmatpush.bf16.msra.mxu0 %v207
  %1461 = vmatpush.bf16.msra.mxu0 %v203
  %1462 = vmatpush.bf16.msra.mxu0 %v199
  %1463 = vmatpush.bf16.msra.mxu0 %v195
  %1464 = vmatpush.bf16.msra.mxu0 %v191
  %1465 = vmatpush.bf16.msra.mxu0 %v187
  %1466 = vmatpush.bf16.msra.mxu0 %v183
  %1467 = vmatpush.bf16.msra.mxu0 %v179
  %1468 = vmatmul.bf16.gmra.mxu0 %v1394
  %v1469 = vpop.f32.mrf.mxu0
  %v1470 = vadd.f32 0.0, %v1469
  %v1471 = vpop.f32.mrf.mxu0
  %1472 = vdwg.mxu0
  %v1477 = vrot.slane %v1444, 6
  %v1478 = vrot.slane %v1457, 4
  %v1479 = vrot.slane %v1470, 2
  %v1480 = vsel %vm299, %v1431, %v1477
  %v1481 = vsel %vm301, %v1478, %v1479
  %v1482 = vsel %vm303, %v1480, %v1481
  %v1484 = vadd.f32 %v1420, %v1482
  %v1485 = vxor.u32 %v1484, 2147483648
  %v1486 = vmul.f32 %v1485, 1.442695
  %v1487 = vpow.pop %v1486
  %v1488 = vadd.f32 %v1487, 1.0
  %v1489 = vrcp.pop %v1488
  %v1490 = vmul.f32 %v1488, %v1489
  %v1491 = vsub.f32 1.0, %v1490
  %v1492 = vmul.f32 %v1489, %v1491
  %v1493 = vadd.f32 %v1489, %v1492
  %vm1494 = vweird.f32 %v1488
  %vm1495 = vweird.f32 %v1489
  %vm1496 = vmor %vm1494, %vm1495
  %v1497 = vsel %vm1496, %v1489, %v1493
  %v1498 = vand.u32 2147483647, %v1488
  %vm1499 = vcmp.eq.f32.partialorder %v1498, 8.507059e+37
  %v1500 = vand.u32 %v1488, 2147483648
  %v1501 = vor.u32 1.1754944e-38, %v1500
  %v1502 = vsel %vm1499, %v1501, %v1497
  %v1503 = vmul.f32 1.0, %v1502
  %v1505 = vrot.slane %v1484, 2
  %v1507 = vxor.u32 %v1505, 2147483648
  %v1508 = vmul.f32 %v1507, 1.442695
  %v1509 = vpow.pop %v1508
  %v1510 = vadd.f32 %v1509, 1.0
  %v1511 = vrcp.pop %v1510
  %v1512 = vmul.f32 %v1510, %v1511
  %v1513 = vsub.f32 1.0, %v1512
  %v1514 = vmul.f32 %v1511, %v1513
  %v1515 = vadd.f32 %v1511, %v1514
  %vm1516 = vweird.f32 %v1510
  %vm1517 = vweird.f32 %v1511
  %vm1518 = vmor %vm1516, %vm1517
  %v1519 = vsel %vm1518, %v1511, %v1515
  %v1520 = vand.u32 2147483647, %v1510
  %vm1521 = vcmp.eq.f32.partialorder %v1520, 8.507059e+37
  %v1522 = vand.u32 %v1510, 2147483648
  %v1523 = vor.u32 1.1754944e-38, %v1522
  %v1524 = vsel %vm1521, %v1523, %v1519
  %v1525 = vmul.f32 1.0, %v1524
  %v1526 = vrot.slane %v1484, 4
  %v1528 = vtanh.pop %v1526
  %v1529 = vrot.slane %v1484, 6
  %v1531 = vxor.u32 %v1529, 2147483648
  %v1532 = vmul.f32 %v1531, 1.442695
  %v1533 = vpow.pop %v1532
  %v1534 = vadd.f32 %v1533, 1.0
  %v1535 = vrcp.pop %v1534
  %v1536 = vmul.f32 %v1534, %v1535
  %v1537 = vsub.f32 1.0, %v1536
  %v1538 = vmul.f32 %v1535, %v1537
  %v1539 = vadd.f32 %v1535, %v1538
  %vm1540 = vweird.f32 %v1534
  %vm1541 = vweird.f32 %v1535
  %vm1542 = vmor %vm1540, %vm1541
  %v1543 = vsel %vm1542, %v1535, %v1539
  %v1544 = vand.u32 2147483647, %v1534
  %vm1545 = vcmp.eq.f32.partialorder %v1544, 8.507059e+37
  %v1546 = vand.u32 %v1534, 2147483648
  %v1547 = vor.u32 1.1754944e-38, %v1546
  %v1548 = vsel %vm1545, %v1547, %v1543
  %v1549 = vmul.f32 1.0, %v1548
  %v1550 = vmul.f32 %v1525, %v1391
  %v1551 = vmul.f32 %v1503, %v1528
  %v1552 = vadd.f32 %v1550, %v1551
  %v1553 = vtanh.pop %v1552
  %v1554 = vmul.f32 %v1549, %v1553
  %v1555 = vpack.c.bf16 %v1554, %v1554
  %1556 = vmatpush.bf16.msra.mxu0 %v420
  %1557 = vmatpush.bf16.msra.mxu0 %v419
  %1558 = vmatpush.bf16.msra.mxu0 %v418
  %1559 = vmatpush.bf16.msra.mxu0 %v417
  %1560 = vmatpush.bf16.msra.mxu0 %v416
  %1561 = vmatpush.bf16.msra.mxu0 %v415
  %1562 = vmatpush.bf16.msra.mxu0 %v414
  %1563 = vmatpush.bf16.msra.mxu0 %v413
  %1564 = vmatmul.bf16.gmra.mxu0 %v1555
  %v1565 = vpop.f32.mrf.mxu0
  %v1566 = vadd.f32 %v379, %v1565
  %v1567 = vpop.f32.mrf.mxu0
  %1568 = vdwg.mxu0
  %s1569 = sadd.s32 %s442, 7
  %v1570 = vstv %s1569
  %vm1571 = vcmp.lt.s32.totalorder %v1570, %v75
  %v1572 = vsel %vm1571, 1, 0
  %1573 = vset.pattern.permute.xlu0 0
  %1574 = vperm.xlu0 %1573, %v1572
  %v1575 = vpop.permute.xlu0 %1574
  %vm1576 = vcmp.eq.s32.totalorder %v1575, 1
  %v1577 = vsel %vm1576, %v1566, 0.0
  %s1578 = scalar_lea.vmem %s5, 14
  %1579 = vst.msk [vmem:[%s1578] sm:$0x3] %vm451, %v1577
  %1580 = vst [vmem:[#allocation2] sm:$0x3] %v1554
  %1581 = vst [vmem:[#allocation3] sm:$0x3] %v1552
  // Predicated region
  $region26: #{rnn_two_crf_seq_forward.9} parent=0 // pred_check
    _
  $region27: #{rnn_two_crf_seq_forward.9} parent=0 // pred_check_branch
    %1583 = sbr.rel (0) target = $region29
  $region28: #{rnn_two_crf_seq_forward.9} parent=0 // pred_region
    _
  $region29: #{rnn_two_crf_seq_forward.9} parent=0 // pred_fallthru
    _
  // Predicated region
  $region30: #{rnn_two_crf_seq_forward.9} parent=0 // pred_check
    _
  $region31: #{rnn_two_crf_seq_forward.9} parent=0 // pred_check_branch
    %1585 = sbr.rel (0) target = $region33
  $region32: #{rnn_two_crf_seq_forward.9} parent=0 // pred_region
    _
  $region33: #{rnn_two_crf_seq_forward.9} parent=0 // pred_fallthru
    _

// kernel: rnn_two_crf_seq_forward.12
$region0: #{rnn_two_crf_seq_forward.12}
  #allocation0 [shape = 'u32[]', space=smem, size = 0x4, offset = 0x4, fixed_abs, tag = 'smem constant byte address 0x4 - core index']
  #allocation1 [shape = 'u32[72,128]{1,0:T(1,128)}', space=vmem, size = 0x9000, scoped, tag = 'internal scratch']
  #allocation2 [shape = 'f32[2,128]{1,0:T(2,128)}', space=vmem, size = 0x400, scoped, tag = 'scratch operand']
  #allocation3 [shape = 'f32[2,128]{1,0:T(2,128)}', space=vmem, size = 0x400, scoped, tag = 'scratch operand']
  %s0 = inlined_call_operand.vmem [shape: f32[8,2,512], index: 0, kind: input, shape index: {}]
  %s1 = inlined_call_operand.hbm [shape: bf16[128,512], index: 1, kind: input, shape index: {}]
  %s2 = inlined_call_operand.vmem [shape: bf16[128,8], index: 2, kind: input, shape index: {}]
  %s3 = inlined_call_operand.vmem [shape: f32[1,8], index: 3, kind: input, shape index: {}]
  %s4 = inlined_call_operand.vmem [shape: s32[2,1], index: 4, kind: input, shape index: {}]
  %s5 = inlined_call_operand.vmem [shape: f32[8,2,8], index: 5, kind: output, shape index: {}]
  %s6 = sld [smem:[#allocation0]]
  $region38: #{rnn_two_crf_seq_forward.12} parent=0
    _
  %s8 = ssub.s32 1, %s6
  %s9 = scalar_select 0, %s8, %s6
  $region1: #{rnn_two_crf_seq_forward.12} parent=0
    #allocation4 [shape = 'u8[131072]{0}', space=vmem, size = 0x20000, scoped, tag = 'input window, operand 1, single buffered']
    #allocation5 [shape = 's32[1]{0}', space=sflag, size = 0x4, scoped, tag = 'scoped memory for rnn_two_crf_seq_forward.12']
    %10 = vsyncpa [#allocation5], 0
    // Predicated region
    $region2: #{rnn_two_crf_seq_forward.12} parent=1 // pred_check
      _
    $region3: #{rnn_two_crf_seq_forward.12} parent=1 // pred_check_branch
      %12 = sbr.rel (0) target = $region5
    $region4: #{rnn_two_crf_seq_forward.12} parent=1 // pred_region
      _
    $region5: #{rnn_two_crf_seq_forward.12} parent=1 // pred_fallthru
      _
    // Predicated region
    $region6: #{rnn_two_crf_seq_forward.12} parent=1 // pred_check
      _
    $region7: #{rnn_two_crf_seq_forward.12} parent=1 // pred_check_branch
      %14 = sbr.rel (0) target = $region9
    $region8: #{rnn_two_crf_seq_forward.12} parent=1 // pred_region
      %16 = vsyncadd [#allocation5], 0
      %s17 = sshll.u32 %s1, 4
      %s18 = int_to_ptr.hbm [resolvable:$true] %s17
      %s19 = sshll.u32 [#allocation4], 4
      %s20 = int_to_ptr.vmem [resolvable:$true] %s19
      %25 = dma.hbm_to_vmem [thread:$0]  %s18, 4096, %s20, [#allocation5], 256, 256, 16
    $region9: #{rnn_two_crf_seq_forward.12} parent=1 // pred_fallthru
      _
    // Predicated region
    $region10: #{rnn_two_crf_seq_forward.12} parent=1 // pred_check
      _
    $region11: #{rnn_two_crf_seq_forward.12} parent=1 // pred_check_branch
      %27 = sbr.rel (0) target = $region13
    $region12: #{rnn_two_crf_seq_forward.12} parent=1 // pred_region
      _
    $region13: #{rnn_two_crf_seq_forward.12} parent=1 // pred_fallthru
      _
    // Predicated region
    $region14: #{rnn_two_crf_seq_forward.12} parent=1 // pred_check
      _
    $region15: #{rnn_two_crf_seq_forward.12} parent=1 // pred_check_branch
      %29 = sbr.rel (0) target = $region17
    $region16: #{rnn_two_crf_seq_forward.12} parent=1 // pred_region
      _
    $region17: #{rnn_two_crf_seq_forward.12} parent=1 // pred_fallthru
      _
    // Predicated region
    $region18: #{rnn_two_crf_seq_forward.12} parent=1 // pred_check
      _
    $region19: #{rnn_two_crf_seq_forward.12} parent=1 // pred_check_branch
      %31 = sbr.rel (0) target = $region21
    $region20: #{rnn_two_crf_seq_forward.12} parent=1 // pred_region
      _
    $region21: #{rnn_two_crf_seq_forward.12} parent=1 // pred_fallthru
      _
    // Predicated region
    $region22: #{rnn_two_crf_seq_forward.12} parent=1 // pred_check
      _
    $region23: #{rnn_two_crf_seq_forward.12} parent=1 // pred_check_branch
      %33 = sbr.rel (0) target = $region25
    $region24: #{rnn_two_crf_seq_forward.12} parent=1 // pred_region
      %35 = dma.done [#allocation5], 4096
    $region25: #{rnn_two_crf_seq_forward.12} parent=1 // pred_fallthru
      _
    %p36 = scmp.eq.s32.totalorder 0, 0
    // Predicated region
    $region26: #{rnn_two_crf_seq_forward.12} parent=1 // pred_check
      %p37 = pneg %p36
    $region27: #{rnn_two_crf_seq_forward.12} parent=1 // pred_check_branch
      %39 = sbr.rel (%p37) target = $region29
    $region28: #{rnn_two_crf_seq_forward.12} parent=1 // pred_region
      %40 = vst [vmem:[#allocation2] sm:$0x3] 0.0
      %41 = vst [vmem:[#allocation3] sm:$0x3] 0.0
    $region29: #{rnn_two_crf_seq_forward.12} parent=1 // pred_fallthru
      _
    %v42 = vld [vmem:[#allocation4] sm:$0xff]
    %v43 = vld [vmem:[#allocation4 + $0x8] sm:$0xff]
    %v44 = vld [vmem:[#allocation4 + $0x10] sm:$0xff]
    %v45 = vld [vmem:[#allocation4 + $0x18] sm:$0xff]
    %v46 = vld [vmem:[#allocation4 + $0x20] sm:$0xff]
    %v47 = vld [vmem:[#allocation4 + $0x28] sm:$0xff]
    %v48 = vld [vmem:[#allocation4 + $0x30] sm:$0xff]
    %v49 = vld [vmem:[#allocation4 + $0x38] sm:$0xff]
    %v50 = vld [vmem:[#allocation4 + $0x40] sm:$0xff]
    %v51 = vld [vmem:[#allocation4 + $0x48] sm:$0xff]
    %v52 = vld [vmem:[#allocation4 + $0x50] sm:$0xff]
    %v53 = vld [vmem:[#allocation4 + $0x58] sm:$0xff]
    %v54 = vld [vmem:[#allocation4 + $0x60] sm:$0xff]
    %v55 = vld [vmem:[#allocation4 + $0x68] sm:$0xff]
    %v56 = vld [vmem:[#allocation4 + $0x70] sm:$0xff]
    %v57 = vld [vmem:[#allocation4 + $0x78] sm:$0xff]
    %v58 = vld [vmem:[#allocation4 + $0x80] sm:$0xff]
    %v59 = vld [vmem:[#allocation4 + $0x88] sm:$0xff]
    %v60 = vld [vmem:[#allocation4 + $0x90] sm:$0xff]
    %v61 = vld [vmem:[#allocation4 + $0x98] sm:$0xff]
    %v62 = vld [vmem:[#allocation4 + $0xa0] sm:$0xff]
    %v63 = vld [vmem:[#allocation4 + $0xa8] sm:$0xff]
    %v64 = vld [vmem:[#allocation4 + $0xb0] sm:$0xff]
    %v65 = vld [vmem:[#allocation4 + $0xb8] sm:$0xff]
    %v66 = vld [vmem:[#allocation4 + $0xc0] sm:$0xff]
    %v67 = vld [vmem:[#allocation4 + $0xc8] sm:$0xff]
    %v68 = vld [vmem:[#allocation4 + $0xd0] sm:$0xff]
    %v69 = vld [vmem:[#allocation4 + $0xd8] sm:$0xff]
    %v70 = vld [vmem:[#allocation4 + $0xe0] sm:$0xff]
    %v71 = vld [vmem:[#allocation4 + $0xe8] sm:$0xff]
    %v72 = vld [vmem:[#allocation4 + $0xf0] sm:$0xff]
    %v73 = vld [vmem:[#allocation4 + $0xf8] sm:$0xff]
    %v74 = vld [vmem:[%s2] sm:$0xf]
    %v75 = vld [vmem:[%s2 + $0x4] sm:$0xf]
    %v76 = vld [vmem:[%s2 + $0x8] sm:$0xf]
    %v77 = vld [vmem:[%s2 + $0xc] sm:$0xf]
    %v78 = vld [vmem:[%s2 + $0x10] sm:$0xf]
    %v79 = vld [vmem:[%s2 + $0x14] sm:$0xf]
    %v80 = vld [vmem:[%s2 + $0x18] sm:$0xf]
    %v81 = vld [vmem:[%s2 + $0x1c] sm:$0xf]
    %v82 = vld [vmem:[%s2 + $0x20] sm:$0xf]
    %v83 = vld [vmem:[%s2 + $0x24] sm:$0xf]
    %v84 = vld [vmem:[%s2 + $0x28] sm:$0xf]
    %v85 = vld [vmem:[%s2 + $0x2c] sm:$0xf]
    %v86 = vld [vmem:[%s2 + $0x30] sm:$0xf]
    %v87 = vld [vmem:[%s2 + $0x34] sm:$0xf]
    %v88 = vld [vmem:[%s2 + $0x38] sm:$0xf]
    %v89 = vld [vmem:[%s2 + $0x3c] sm:$0xf]
    %v90 = vld [vmem:[%s3] sm:$0x1]
    %v91 = vld [vmem:[#allocation2] sm:$0x3]
    %v92 = vld [vmem:[#allocation3] sm:$0x3]
    %v93 = vld [vmem:[%s0] sm:$0xff]
    %v94 = vpack.c.bf16 %v91, %v91
    %v127 = vunpack.c.l.b16 %v42
    %v128 = vunpack.c.h.b16 %v42
    %v129 = vunpack.c.l.b16 %v43
    %v130 = vunpack.c.h.b16 %v43
    %v131 = vunpack.c.l.b16 %v44
    %v132 = vunpack.c.h.b16 %v44
    %v133 = vunpack.c.l.b16 %v45
    %v134 = vunpack.c.h.b16 %v45
    %v135 = vunpack.c.l.b16 %v46
    %v136 = vunpack.c.h.b16 %v46
    %v137 = vunpack.c.l.b16 %v47
    %v138 = vunpack.c.h.b16 %v47
    %v139 = vunpack.c.l.b16 %v48
    %v140 = vunpack.c.h.b16 %v48
    %v141 = vunpack.c.l.b16 %v49
    %v142 = vunpack.c.h.b16 %v49
    %v143 = vunpack.c.l.b16 %v50
    %v144 = vunpack.c.h.b16 %v50
    %v145 = vunpack.c.l.b16 %v51
    %v146 = vunpack.c.h.b16 %v51
    %v147 = vunpack.c.l.b16 %v52
    %v148 = vunpack.c.h.b16 %v52
    %v149 = vunpack.c.l.b16 %v53
    %v150 = vunpack.c.h.b16 %v53
    %v151 = vunpack.c.l.b16 %v54
    %v152 = vunpack.c.h.b16 %v54
    %v153 = vunpack.c.l.b16 %v55
    %v154 = vunpack.c.h.b16 %v55
    %v155 = vunpack.c.l.b16 %v56
    %v156 = vunpack.c.h.b16 %v56
    %v157 = vunpack.c.l.b16 %v57
    %v158 = vunpack.c.h.b16 %v57
    %v159 = vunpack.c.l.b16 %v58
    %v160 = vunpack.c.h.b16 %v58
    %v161 = vunpack.c.l.b16 %v59
    %v162 = vunpack.c.h.b16 %v59
    %v163 = vunpack.c.l.b16 %v60
    %v164 = vunpack.c.h.b16 %v60
    %v165 = vunpack.c.l.b16 %v61
    %v166 = vunpack.c.h.b16 %v61
    %v167 = vunpack.c.l.b16 %v62
    %v168 = vunpack.c.h.b16 %v62
    %v169 = vunpack.c.l.b16 %v63
    %v170 = vunpack.c.h.b16 %v63
    %v171 = vunpack.c.l.b16 %v64
    %v172 = vunpack.c.h.b16 %v64
    %v173 = vunpack.c.l.b16 %v65
    %v174 = vunpack.c.h.b16 %v65
    %v175 = vunpack.c.l.b16 %v66
    %v176 = vunpack.c.h.b16 %v66
    %v177 = vunpack.c.l.b16 %v67
    %v178 = vunpack.c.h.b16 %v67
    %v179 = vunpack.c.l.b16 %v68
    %v180 = vunpack.c.h.b16 %v68
    %v181 = vunpack.c.l.b16 %v69
    %v182 = vunpack.c.h.b16 %v69
    %v183 = vunpack.c.l.b16 %v70
    %v184 = vunpack.c.h.b16 %v70
    %v185 = vunpack.c.l.b16 %v71
    %v186 = vunpack.c.h.b16 %v71
    %v187 = vunpack.c.l.b16 %v72
    %v188 = vunpack.c.h.b16 %v72
    %v189 = vunpack.c.l.b16 %v73
    %v190 = vunpack.c.h.b16 %v73
    %v191 = vpack.c.b16 %v131, %v127
    %v192 = vpack.c.b16 %v132, %v128
    %v193 = vpack.c.b16 %v133, %v129
    %v194 = vpack.c.b16 %v134, %v130
    %v195 = vpack.c.b16 %v139, %v135
    %v196 = vpack.c.b16 %v140, %v136
    %v197 = vpack.c.b16 %v141, %v137
    %v198 = vpack.c.b16 %v142, %v138
    %v199 = vpack.c.b16 %v147, %v143
    %v200 = vpack.c.b16 %v148, %v144
    %v201 = vpack.c.b16 %v149, %v145
    %v202 = vpack.c.b16 %v150, %v146
    %v203 = vpack.c.b16 %v155, %v151
    %v204 = vpack.c.b16 %v156, %v152
    %v205 = vpack.c.b16 %v157, %v153
    %v206 = vpack.c.b16 %v158, %v154
    %v207 = vpack.c.b16 %v163, %v159
    %v208 = vpack.c.b16 %v164, %v160
    %v209 = vpack.c.b16 %v165, %v161
    %v210 = vpack.c.b16 %v166, %v162
    %v211 = vpack.c.b16 %v171, %v167
    %v212 = vpack.c.b16 %v172, %v168
    %v213 = vpack.c.b16 %v173, %v169
    %v214 = vpack.c.b16 %v174, %v170
    %v215 = vpack.c.b16 %v179, %v175
    %v216 = vpack.c.b16 %v180, %v176
    %v217 = vpack.c.b16 %v181, %v177
    %v218 = vpack.c.b16 %v182, %v178
    %v219 = vpack.c.b16 %v187, %v183
    %v220 = vpack.c.b16 %v188, %v184
    %v221 = vpack.c.b16 %v189, %v185
    %v222 = vpack.c.b16 %v190, %v186
    %255 = vmatpush.bf16.msra.mxu0 %v219
    %256 = vmatpush.bf16.msra.mxu0 %v215
    %257 = vmatpush.bf16.msra.mxu0 %v211
    %258 = vmatpush.bf16.msra.mxu0 %v207
    %259 = vmatpush.bf16.msra.mxu0 %v203
    %260 = vmatpush.bf16.msra.mxu0 %v199
    %261 = vmatpush.bf16.msra.mxu0 %v195
    %262 = vmatpush.bf16.msra.mxu0 %v191
    %263 = vmatmul.bf16.gmra.mxu0 %v94
    %v264 = vpop.f32.mrf.mxu0
    %v265 = vadd.f32 0.0, %v264
    %v266 = vpop.f32.mrf.mxu0
    %267 = vdwg.mxu0
    %268 = vmatpush.bf16.msra.mxu0 %v220
    %269 = vmatpush.bf16.msra.mxu0 %v216
    %270 = vmatpush.bf16.msra.mxu0 %v212
    %271 = vmatpush.bf16.msra.mxu0 %v208
    %272 = vmatpush.bf16.msra.mxu0 %v204
    %273 = vmatpush.bf16.msra.mxu0 %v200
    %274 = vmatpush.bf16.msra.mxu0 %v196
    %275 = vmatpush.bf16.msra.mxu0 %v192
    %276 = vmatmul.bf16.gmra.mxu0 %v94
    %v277 = vpop.f32.mrf.mxu0
    %v278 = vadd.f32 0.0, %v277
    %v279 = vpop.f32.mrf.mxu0
    %280 = vdwg.mxu0
    %281 = vmatpush.bf16.msra.mxu0 %v221
    %282 = vmatpush.bf16.msra.mxu0 %v217
    %283 = vmatpush.bf16.msra.mxu0 %v213
    %284 = vmatpush.bf16.msra.mxu0 %v209
    %285 = vmatpush.bf16.msra.mxu0 %v205
    %286 = vmatpush.bf16.msra.mxu0 %v201
    %287 = vmatpush.bf16.msra.mxu0 %v197
    %288 = vmatpush.bf16.msra.mxu0 %v193
    %289 = vmatmul.bf16.gmra.mxu0 %v94
    %v290 = vpop.f32.mrf.mxu0
    %v291 = vadd.f32 0.0, %v290
    %v292 = vpop.f32.mrf.mxu0
    %293 = vdwg.mxu0
    %294 = vmatpush.bf16.msra.mxu0 %v222
    %295 = vmatpush.bf16.msra.mxu0 %v218
    %296 = vmatpush.bf16.msra.mxu0 %v214
    %297 = vmatpush.bf16.msra.mxu0 %v210
    %298 = vmatpush.bf16.msra.mxu0 %v206
    %299 = vmatpush.bf16.msra.mxu0 %v202
    %300 = vmatpush.bf16.msra.mxu0 %v198
    %301 = vmatpush.bf16.msra.mxu0 %v194
    %302 = vmatmul.bf16.gmra.mxu0 %v94
    %v303 = vpop.f32.mrf.mxu0
    %v304 = vadd.f32 0.0, %v303
    %v305 = vpop.f32.mrf.mxu0
    %306 = vdwg.mxu0
    %v311 = vrot.slane %v278, 6
    %v312 = vrot.slane %v291, 4
    %v313 = vrot.slane %v304, 2
    %vm314 = vcmask 1041408
    %v315 = vsel %vm314, %v265, %v311
    %vm316 = vcmask 1045508
    %v317 = vsel %vm316, %v312, %v313
    %vm318 = vcmask 1043456
    %v319 = vsel %vm318, %v315, %v317
    %v321 = vadd.f32 %v93, %v319
    %v322 = vxor.u32 %v321, 2147483648
    %v323 = vmul.f32 %v322, 1.442695
    %v324 = vpow.pop %v323
    %v325 = vadd.f32 %v324, 1.0
    %v326 = vrcp.pop %v325
    %v327 = vmul.f32 %v325, %v326
    %v328 = vsub.f32 1.0, %v327
    %v329 = vmul.f32 %v326, %v328
    %v330 = vadd.f32 %v326, %v329
    %vm331 = vweird.f32 %v325
    %vm332 = vweird.f32 %v326
    %vm333 = vmor %vm331, %vm332
    %v334 = vsel %vm333, %v326, %v330
    %v335 = vand.u32 2147483647, %v325
    %vm336 = vcmp.eq.f32.partialorder %v335, 8.507059e+37
    %v337 = vand.u32 %v325, 2147483648
    %v338 = vor.u32 1.1754944e-38, %v337
    %v339 = vsel %vm336, %v338, %v334
    %v340 = vmul.f32 1.0, %v339
    %v342 = vrot.slane %v321, 2
    %v344 = vxor.u32 %v342, 2147483648
    %v345 = vmul.f32 %v344, 1.442695
    %v346 = vpow.pop %v345
    %v347 = vadd.f32 %v346, 1.0
    %v348 = vrcp.pop %v347
    %v349 = vmul.f32 %v347, %v348
    %v350 = vsub.f32 1.0, %v349
    %v351 = vmul.f32 %v348, %v350
    %v352 = vadd.f32 %v348, %v351
    %vm353 = vweird.f32 %v347
    %vm354 = vweird.f32 %v348
    %vm355 = vmor %vm353, %vm354
    %v356 = vsel %vm355, %v348, %v352
    %v357 = vand.u32 2147483647, %v347
    %vm358 = vcmp.eq.f32.partialorder %v357, 8.507059e+37
    %v359 = vand.u32 %v347, 2147483648
    %v360 = vor.u32 1.1754944e-38, %v359
    %v361 = vsel %vm358, %v360, %v356
    %v362 = vmul.f32 1.0, %v361
    %v363 = vrot.slane %v321, 4
    %v365 = vtanh.pop %v363
    %v366 = vrot.slane %v321, 6
    %v368 = vxor.u32 %v366, 2147483648
    %v369 = vmul.f32 %v368, 1.442695
    %v370 = vpow.pop %v369
    %v371 = vadd.f32 %v370, 1.0
    %v372 = vrcp.pop %v371
    %v373 = vmul.f32 %v371, %v372
    %v374 = vsub.f32 1.0, %v373
    %v375 = vmul.f32 %v372, %v374
    %v376 = vadd.f32 %v372, %v375
    %vm377 = vweird.f32 %v371
    %vm378 = vweird.f32 %v372
    %vm379 = vmor %vm377, %vm378
    %v380 = vsel %vm379, %v372, %v376
    %v381 = vand.u32 2147483647, %v371
    %vm382 = vcmp.eq.f32.partialorder %v381, 8.507059e+37
    %v383 = vand.u32 %v371, 2147483648
    %v384 = vor.u32 1.1754944e-38, %v383
    %v385 = vsel %vm382, %v384, %v380
    %v386 = vmul.f32 1.0, %v385
    %v387 = vmul.f32 %v362, %v92
    %v388 = vmul.f32 %v340, %v365
    %v389 = vadd.f32 %v387, %v388
    %v390 = vtanh.pop %v389
    %v391 = vmul.f32 %v386, %v390
    %v392 = vpack.c.bf16 %v391, %v391
    %v394 = vperm.slane %v90, 0
    %v412 = vunpack.c.l.b16 %v74
    %v413 = vunpack.c.l.b16 %v75
    %v414 = vunpack.c.l.b16 %v76
    %v415 = vunpack.c.l.b16 %v77
    %v416 = vunpack.c.l.b16 %v78
    %v417 = vunpack.c.l.b16 %v79
    %v418 = vunpack.c.l.b16 %v80
    %v419 = vunpack.c.l.b16 %v81
    %v420 = vunpack.c.l.b16 %v82
    %v421 = vunpack.c.l.b16 %v83
    %v422 = vunpack.c.l.b16 %v84
    %v423 = vunpack.c.l.b16 %v85
    %v424 = vunpack.c.l.b16 %v86
    %v425 = vunpack.c.l.b16 %v87
    %v426 = vunpack.c.l.b16 %v88
    %v427 = vunpack.c.l.b16 %v89
    %v428 = vpack.c.b16 %v413, %v412
    %v429 = vpack.c.b16 %v415, %v414
    %v430 = vpack.c.b16 %v417, %v416
    %v431 = vpack.c.b16 %v419, %v418
    %v432 = vpack.c.b16 %v421, %v420
    %v433 = vpack.c.b16 %v423, %v422
    %v434 = vpack.c.b16 %v425, %v424
    %v435 = vpack.c.b16 %v427, %v426
    %444 = vmatpush.bf16.msra.mxu0 %v435
    %445 = vmatpush.bf16.msra.mxu0 %v434
    %446 = vmatpush.bf16.msra.mxu0 %v433
    %447 = vmatpush.bf16.msra.mxu0 %v432
    %448 = vmatpush.bf16.msra.mxu0 %v431
    %449 = vmatpush.bf16.msra.mxu0 %v430
    %450 = vmatpush.bf16.msra.mxu0 %v429
    %451 = vmatpush.bf16.msra.mxu0 %v428
    %452 = vmatmul.bf16.gmra.mxu0 %v392
    %v453 = vpop.f32.mrf.mxu0
    %v454 = vadd.f32 %v394, %v453
    %v455 = vpop.f32.mrf.mxu0
    %456 = vdwg.mxu0
    %vm457 = vcmask 58368
    %458 = vst.msk [vmem:[%s5] sm:$0x3] %vm457, %v454
    %s459 = scalar_lea.vmem %s0, 8
    %v460 = vld [vmem:[%s459] sm:$0xff]
    %461 = vmatpush.bf16.msra.mxu0 %v219
    %462 = vmatpush.bf16.msra.mxu0 %v215
    %463 = vmatpush.bf16.msra.mxu0 %v211
    %464 = vmatpush.bf16.msra.mxu0 %v207
    %465 = vmatpush.bf16.msra.mxu0 %v203
    %466 = vmatpush.bf16.msra.mxu0 %v199
    %467 = vmatpush.bf16.msra.mxu0 %v195
    %468 = vmatpush.bf16.msra.mxu0 %v191
    %469 = vmatmul.bf16.gmra.mxu0 %v392
    %v470 = vpop.f32.mrf.mxu0
    %v471 = vadd.f32 0.0, %v470
    %v472 = vpop.f32.mrf.mxu0
    %473 = vdwg.mxu0
    %474 = vmatpush.bf16.msra.mxu0 %v220
    %475 = vmatpush.bf16.msra.mxu0 %v216
    %476 = vmatpush.bf16.msra.mxu0 %v212
    %477 = vmatpush.bf16.msra.mxu0 %v208
    %478 = vmatpush.bf16.msra.mxu0 %v204
    %479 = vmatpush.bf16.msra.mxu0 %v200
    %480 = vmatpush.bf16.msra.mxu0 %v196
    %481 = vmatpush.bf16.msra.mxu0 %v192
    %482 = vmatmul.bf16.gmra.mxu0 %v392
    %v483 = vpop.f32.mrf.mxu0
    %v484 = vadd.f32 0.0, %v483
    %v485 = vpop.f32.mrf.mxu0
    %486 = vdwg.mxu0
    %487 = vmatpush.bf16.msra.mxu0 %v221
    %488 = vmatpush.bf16.msra.mxu0 %v217
    %489 = vmatpush.bf16.msra.mxu0 %v213
    %490 = vmatpush.bf16.msra.mxu0 %v209
    %491 = vmatpush.bf16.msra.mxu0 %v205
    %492 = vmatpush.bf16.msra.mxu0 %v201
    %493 = vmatpush.bf16.msra.mxu0 %v197
    %494 = vmatpush.bf16.msra.mxu0 %v193
    %495 = vmatmul.bf16.gmra.mxu0 %v392
    %v496 = vpop.f32.mrf.mxu0
    %v497 = vadd.f32 0.0, %v496
    %v498 = vpop.f32.mrf.mxu0
    %499 = vdwg.mxu0
    %500 = vmatpush.bf16.msra.mxu0 %v222
    %501 = vmatpush.bf16.msra.mxu0 %v218
    %502 = vmatpush.bf16.msra.mxu0 %v214
    %503 = vmatpush.bf16.msra.mxu0 %v210
    %504 = vmatpush.bf16.msra.mxu0 %v206
    %505 = vmatpush.bf16.msra.mxu0 %v202
    %506 = vmatpush.bf16.msra.mxu0 %v198
    %507 = vmatpush.bf16.msra.mxu0 %v194
    %508 = vmatmul.bf16.gmra.mxu0 %v392
    %v509 = vpop.f32.mrf.mxu0
    %v510 = vadd.f32 0.0, %v509
    %v511 = vpop.f32.mrf.mxu0
    %512 = vdwg.mxu0
    %v517 = vrot.slane %v484, 6
    %v518 = vrot.slane %v497, 4
    %v519 = vrot.slane %v510, 2
    %v520 = vsel %vm314, %v471, %v517
    %v521 = vsel %vm316, %v518, %v519
    %v522 = vsel %vm318, %v520, %v521
    %v524 = vadd.f32 %v460, %v522
    %v525 = vxor.u32 %v524, 2147483648
    %v526 = vmul.f32 %v525, 1.442695
    %v527 = vpow.pop %v526
    %v528 = vadd.f32 %v527, 1.0
    %v529 = vrcp.pop %v528
    %v530 = vmul.f32 %v528, %v529
    %v531 = vsub.f32 1.0, %v530
    %v532 = vmul.f32 %v529, %v531
    %v533 = vadd.f32 %v529, %v532
    %vm534 = vweird.f32 %v528
    %vm535 = vweird.f32 %v529
    %vm536 = vmor %vm534, %vm535
    %v537 = vsel %vm536, %v529, %v533
    %v538 = vand.u32 2147483647, %v528
    %vm539 = vcmp.eq.f32.partialorder %v538, 8.507059e+37
    %v540 = vand.u32 %v528, 2147483648
    %v541 = vor.u32 1.1754944e-38, %v540
    %v542 = vsel %vm539, %v541, %v537
    %v543 = vmul.f32 1.0, %v542
    %v545 = vrot.slane %v524, 2
    %v547 = vxor.u32 %v545, 2147483648
    %v548 = vmul.f32 %v547, 1.442695
    %v549 = vpow.pop %v548
    %v550 = vadd.f32 %v549, 1.0
    %v551 = vrcp.pop %v550
    %v552 = vmul.f32 %v550, %v551
    %v553 = vsub.f32 1.0, %v552
    %v554 = vmul.f32 %v551, %v553
    %v555 = vadd.f32 %v551, %v554
    %vm556 = vweird.f32 %v550
    %vm557 = vweird.f32 %v551
    %vm558 = vmor %vm556, %vm557
    %v559 = vsel %vm558, %v551, %v555
    %v560 = vand.u32 2147483647, %v550
    %vm561 = vcmp.eq.f32.partialorder %v560, 8.507059e+37
    %v562 = vand.u32 %v550, 2147483648
    %v563 = vor.u32 1.1754944e-38, %v562
    %v564 = vsel %vm561, %v563, %v559
    %v565 = vmul.f32 1.0, %v564
    %v566 = vrot.slane %v524, 4
    %v568 = vtanh.pop %v566
    %v569 = vrot.slane %v524, 6
    %v571 = vxor.u32 %v569, 2147483648
    %v572 = vmul.f32 %v571, 1.442695
    %v573 = vpow.pop %v572
    %v574 = vadd.f32 %v573, 1.0
    %v575 = vrcp.pop %v574
    %v576 = vmul.f32 %v574, %v575
    %v577 = vsub.f32 1.0, %v576
    %v578 = vmul.f32 %v575, %v577
    %v579 = vadd.f32 %v575, %v578
    %vm580 = vweird.f32 %v574
    %vm581 = vweird.f32 %v575
    %vm582 = vmor %vm580, %vm581
    %v583 = vsel %vm582, %v575, %v579
    %v584 = vand.u32 2147483647, %v574
    %vm585 = vcmp.eq.f32.partialorder %v584, 8.507059e+37
    %v586 = vand.u32 %v574, 2147483648
    %v587 = vor.u32 1.1754944e-38, %v586
    %v588 = vsel %vm585, %v587, %v583
    %v589 = vmul.f32 1.0, %v588
    %v590 = vmul.f32 %v565, %v389
    %v591 = vmul.f32 %v543, %v568
    %v592 = vadd.f32 %v590, %v591
    %v593 = vtanh.pop %v592
    %v594 = vmul.f32 %v589, %v593
    %v595 = vpack.c.bf16 %v594, %v594
    %596 = vmatpush.bf16.msra.mxu0 %v435
    %597 = vmatpush.bf16.msra.mxu0 %v434
    %598 = vmatpush.bf16.msra.mxu0 %v433
    %599 = vmatpush.bf16.msra.mxu0 %v432
    %600 = vmatpush.bf16.msra.mxu0 %v431
    %601 = vmatpush.bf16.msra.mxu0 %v430
    %602 = vmatpush.bf16.msra.mxu0 %v429
    %603 = vmatpush.bf16.msra.mxu0 %v428
    %604 = vmatmul.bf16.gmra.mxu0 %v595
    %v605 = vpop.f32.mrf.mxu0
    %v606 = vadd.f32 %v394, %v605
    %v607 = vpop.f32.mrf.mxu0
    %608 = vdwg.mxu0
    %s609 = scalar_lea.vmem %s5, 2
    %610 = vst.msk [vmem:[%s609] sm:$0x3] %vm457, %v606
    %s611 = scalar_lea.vmem %s0, 16
    %v612 = vld [vmem:[%s611] sm:$0xff]
    %613 = vmatpush.bf16.msra.mxu0 %v219
    %614 = vmatpush.bf16.msra.mxu0 %v215
    %615 = vmatpush.bf16.msra.mxu0 %v211
    %616 = vmatpush.bf16.msra.mxu0 %v207
    %617 = vmatpush.bf16.msra.mxu0 %v203
    %618 = vmatpush.bf16.msra.mxu0 %v199
    %619 = vmatpush.bf16.msra.mxu0 %v195
    %620 = vmatpush.bf16.msra.mxu0 %v191
    %621 = vmatmul.bf16.gmra.mxu0 %v595
    %v622 = vpop.f32.mrf.mxu0
    %v623 = vadd.f32 0.0, %v622
    %v624 = vpop.f32.mrf.mxu0
    %625 = vdwg.mxu0
    %626 = vmatpush.bf16.msra.mxu0 %v220
    %627 = vmatpush.bf16.msra.mxu0 %v216
    %628 = vmatpush.bf16.msra.mxu0 %v212
    %629 = vmatpush.bf16.msra.mxu0 %v208
    %630 = vmatpush.bf16.msra.mxu0 %v204
    %631 = vmatpush.bf16.msra.mxu0 %v200
    %632 = vmatpush.bf16.msra.mxu0 %v196
    %633 = vmatpush.bf16.msra.mxu0 %v192
    %634 = vmatmul.bf16.gmra.mxu0 %v595
    %v635 = vpop.f32.mrf.mxu0
    %v636 = vadd.f32 0.0, %v635
    %v637 = vpop.f32.mrf.mxu0
    %638 = vdwg.mxu0
    %639 = vmatpush.bf16.msra.mxu0 %v221
    %640 = vmatpush.bf16.msra.mxu0 %v217
    %641 = vmatpush.bf16.msra.mxu0 %v213
    %642 = vmatpush.bf16.msra.mxu0 %v209
    %643 = vmatpush.bf16.msra.mxu0 %v205
    %644 = vmatpush.bf16.msra.mxu0 %v201
    %645 = vmatpush.bf16.msra.mxu0 %v197
    %646 = vmatpush.bf16.msra.mxu0 %v193
    %647 = vmatmul.bf16.gmra.mxu0 %v595
    %v648 = vpop.f32.mrf.mxu0
    %v649 = vadd.f32 0.0, %v648
    %v650 = vpop.f32.mrf.mxu0
    %651 = vdwg.mxu0
    %652 = vmatpush.bf16.msra.mxu0 %v222
    %653 = vmatpush.bf16.msra.mxu0 %v218
    %654 = vmatpush.bf16.msra.mxu0 %v214
    %655 = vmatpush.bf16.msra.mxu0 %v210
    %656 = vmatpush.bf16.msra.mxu0 %v206
    %657 = vmatpush.bf16.msra.mxu0 %v202
    %658 = vmatpush.bf16.msra.mxu0 %v198
    %659 = vmatpush.bf16.msra.mxu0 %v194
    %660 = vmatmul.bf16.gmra.mxu0 %v595
    %v661 = vpop.f32.mrf.mxu0
    %v662 = vadd.f32 0.0, %v661
    %v663 = vpop.f32.mrf.mxu0
    %664 = vdwg.mxu0
    %v669 = vrot.slane %v636, 6
    %v670 = vrot.slane %v649, 4
    %v671 = vrot.slane %v662, 2
    %v672 = vsel %vm314, %v623, %v669
    %v673 = vsel %vm316, %v670, %v671
    %v674 = vsel %vm318, %v672, %v673
    %v676 = vadd.f32 %v612, %v674
    %v677 = vxor.u32 %v676, 2147483648
    %v678 = vmul.f32 %v677, 1.442695
    %v679 = vpow.pop %v678
    %v680 = vadd.f32 %v679, 1.0
    %v681 = vrcp.pop %v680
    %v682 = vmul.f32 %v680, %v681
    %v683 = vsub.f32 1.0, %v682
    %v684 = vmul.f32 %v681, %v683
    %v685 = vadd.f32 %v681, %v684
    %vm686 = vweird.f32 %v680
    %vm687 = vweird.f32 %v681
    %vm688 = vmor %vm686, %vm687
    %v689 = vsel %vm688, %v681, %v685
    %v690 = vand.u32 2147483647, %v680
    %vm691 = vcmp.eq.f32.partialorder %v690, 8.507059e+37
    %v692 = vand.u32 %v680, 2147483648
    %v693 = vor.u32 1.1754944e-38, %v692
    %v694 = vsel %vm691, %v693, %v689
    %v695 = vmul.f32 1.0, %v694
    %v697 = vrot.slane %v676, 2
    %v699 = vxor.u32 %v697, 2147483648
    %v700 = vmul.f32 %v699, 1.442695
    %v701 = vpow.pop %v700
    %v702 = vadd.f32 %v701, 1.0
    %v703 = vrcp.pop %v702
    %v704 = vmul.f32 %v702, %v703
    %v705 = vsub.f32 1.0, %v704
    %v706 = vmul.f32 %v703, %v705
    %v707 = vadd.f32 %v703, %v706
    %vm708 = vweird.f32 %v702
    %vm709 = vweird.f32 %v703
    %vm710 = vmor %vm708, %vm709
    %v711 = vsel %vm710, %v703, %v707
    %v712 = vand.u32 2147483647, %v702
    %vm713 = vcmp.eq.f32.partialorder %v712, 8.507059e+37
    %v714 = vand.u32 %v702, 2147483648
    %v715 = vor.u32 1.1754944e-38, %v714
    %v716 = vsel %vm713, %v715, %v711
    %v717 = vmul.f32 1.0, %v716
    %v718 = vrot.slane %v676, 4
    %v720 = vtanh.pop %v718
    %v721 = vrot.slane %v676, 6
    %v723 = vxor.u32 %v721, 2147483648
    %v724 = vmul.f32 %v723, 1.442695
    %v725 = vpow.pop %v724
    %v726 = vadd.f32 %v725, 1.0
    %v727 = vrcp.pop %v726
    %v728 = vmul.f32 %v726, %v727
    %v729 = vsub.f32 1.0, %v728
    %v730 = vmul.f32 %v727, %v729
    %v731 = vadd.f32 %v727, %v730
    %vm732 = vweird.f32 %v726
    %vm733 = vweird.f32 %v727
    %vm734 = vmor %vm732, %vm733
    %v735 = vsel %vm734, %v727, %v731
    %v736 = vand.u32 2147483647, %v726
    %vm737 = vcmp.eq.f32.partialorder %v736, 8.507059e+37
    %v738 = vand.u32 %v726, 2147483648
    %v739 = vor.u32 1.1754944e-38, %v738
    %v740 = vsel %vm737, %v739, %v735
    %v741 = vmul.f32 1.0, %v740
    %v742 = vmul.f32 %v717, %v592
    %v743 = vmul.f32 %v695, %v720
    %v744 = vadd.f32 %v742, %v743
    %v745 = vtanh.pop %v744
    %v746 = vmul.f32 %v741, %v745
    %v747 = vpack.c.bf16 %v746, %v746
    %748 = vmatpush.bf16.msra.mxu0 %v435
    %749 = vmatpush.bf16.msra.mxu0 %v434
    %750 = vmatpush.bf16.msra.mxu0 %v433
    %751 = vmatpush.bf16.msra.mxu0 %v432
    %752 = vmatpush.bf16.msra.mxu0 %v431
    %753 = vmatpush.bf16.msra.mxu0 %v430
    %754 = vmatpush.bf16.msra.mxu0 %v429
    %755 = vmatpush.bf16.msra.mxu0 %v428
    %756 = vmatmul.bf16.gmra.mxu0 %v747
    %v757 = vpop.f32.mrf.mxu0
    %v758 = vadd.f32 %v394, %v757
    %v759 = vpop.f32.mrf.mxu0
    %760 = vdwg.mxu0
    %s761 = scalar_lea.vmem %s5, 4
    %762 = vst.msk [vmem:[%s761] sm:$0x3] %vm457, %v758
    %s763 = scalar_lea.vmem %s0, 24
    %v764 = vld [vmem:[%s763] sm:$0xff]
    %765 = vmatpush.bf16.msra.mxu0 %v219
    %766 = vmatpush.bf16.msra.mxu0 %v215
    %767 = vmatpush.bf16.msra.mxu0 %v211
    %768 = vmatpush.bf16.msra.mxu0 %v207
    %769 = vmatpush.bf16.msra.mxu0 %v203
    %770 = vmatpush.bf16.msra.mxu0 %v199
    %771 = vmatpush.bf16.msra.mxu0 %v195
    %772 = vmatpush.bf16.msra.mxu0 %v191
    %773 = vmatmul.bf16.gmra.mxu0 %v747
    %v774 = vpop.f32.mrf.mxu0
    %v775 = vadd.f32 0.0, %v774
    %v776 = vpop.f32.mrf.mxu0
    %777 = vdwg.mxu0
    %778 = vmatpush.bf16.msra.mxu0 %v220
    %779 = vmatpush.bf16.msra.mxu0 %v216
    %780 = vmatpush.bf16.msra.mxu0 %v212
    %781 = vmatpush.bf16.msra.mxu0 %v208
    %782 = vmatpush.bf16.msra.mxu0 %v204
    %783 = vmatpush.bf16.msra.mxu0 %v200
    %784 = vmatpush.bf16.msra.mxu0 %v196
    %785 = vmatpush.bf16.msra.mxu0 %v192
    %786 = vmatmul.bf16.gmra.mxu0 %v747
    %v787 = vpop.f32.mrf.mxu0
    %v788 = vadd.f32 0.0, %v787
    %v789 = vpop.f32.mrf.mxu0
    %790 = vdwg.mxu0
    %791 = vmatpush.bf16.msra.mxu0 %v221
    %792 = vmatpush.bf16.msra.mxu0 %v217
    %793 = vmatpush.bf16.msra.mxu0 %v213
    %794 = vmatpush.bf16.msra.mxu0 %v209
    %795 = vmatpush.bf16.msra.mxu0 %v205
    %796 = vmatpush.bf16.msra.mxu0 %v201
    %797 = vmatpush.bf16.msra.mxu0 %v197
    %798 = vmatpush.bf16.msra.mxu0 %v193
    %799 = vmatmul.bf16.gmra.mxu0 %v747
    %v800 = vpop.f32.mrf.mxu0
    %v801 = vadd.f32 0.0, %v800
    %v802 = vpop.f32.mrf.mxu0
    %803 = vdwg.mxu0
    %804 = vmatpush.bf16.msra.mxu0 %v222
    %805 = vmatpush.bf16.msra.mxu0 %v218
    %806 = vmatpush.bf16.msra.mxu0 %v214
    %807 = vmatpush.bf16.msra.mxu0 %v210
    %808 = vmatpush.bf16.msra.mxu0 %v206
    %809 = vmatpush.bf16.msra.mxu0 %v202
    %810 = vmatpush.bf16.msra.mxu0 %v198
    %811 = vmatpush.bf16.msra.mxu0 %v194
    %812 = vmatmul.bf16.gmra.mxu0 %v747
    %v813 = vpop.f32.mrf.mxu0
    %v814 = vadd.f32 0.0, %v813
    %v815 = vpop.f32.mrf.mxu0
    %816 = vdwg.mxu0
    %v821 = vrot.slane %v788, 6
    %v822 = vrot.slane %v801, 4
    %v823 = vrot.slane %v814, 2
    %v824 = vsel %vm314, %v775, %v821
    %v825 = vsel %vm316, %v822, %v823
    %v826 = vsel %vm318, %v824, %v825
    %v828 = vadd.f32 %v764, %v826
    %v829 = vxor.u32 %v828, 2147483648
    %v830 = vmul.f32 %v829, 1.442695
    %v831 = vpow.pop %v830
    %v832 = vadd.f32 %v831, 1.0
    %v833 = vrcp.pop %v832
    %v834 = vmul.f32 %v832, %v833
    %v835 = vsub.f32 1.0, %v834
    %v836 = vmul.f32 %v833, %v835
    %v837 = vadd.f32 %v833, %v836
    %vm838 = vweird.f32 %v832
    %vm839 = vweird.f32 %v833
    %vm840 = vmor %vm838, %vm839
    %v841 = vsel %vm840, %v833, %v837
    %v842 = vand.u32 2147483647, %v832
    %vm843 = vcmp.eq.f32.partialorder %v842, 8.507059e+37
    %v844 = vand.u32 %v832, 2147483648
    %v845 = vor.u32 1.1754944e-38, %v844
    %v846 = vsel %vm843, %v845, %v841
    %v847 = vmul.f32 1.0, %v846
    %v849 = vrot.slane %v828, 2
    %v851 = vxor.u32 %v849, 2147483648
    %v852 = vmul.f32 %v851, 1.442695
    %v853 = vpow.pop %v852
    %v854 = vadd.f32 %v853, 1.0
    %v855 = vrcp.pop %v854
    %v856 = vmul.f32 %v854, %v855
    %v857 = vsub.f32 1.0, %v856
    %v858 = vmul.f32 %v855, %v857
    %v859 = vadd.f32 %v855, %v858
    %vm860 = vweird.f32 %v854
    %vm861 = vweird.f32 %v855
    %vm862 = vmor %vm860, %vm861
    %v863 = vsel %vm862, %v855, %v859
    %v864 = vand.u32 2147483647, %v854
    %vm865 = vcmp.eq.f32.partialorder %v864, 8.507059e+37
    %v866 = vand.u32 %v854, 2147483648
    %v867 = vor.u32 1.1754944e-38, %v866
    %v868 = vsel %vm865, %v867, %v863
    %v869 = vmul.f32 1.0, %v868
    %v870 = vrot.slane %v828, 4
    %v872 = vtanh.pop %v870
    %v873 = vrot.slane %v828, 6
    %v875 = vxor.u32 %v873, 2147483648
    %v876 = vmul.f32 %v875, 1.442695
    %v877 = vpow.pop %v876
    %v878 = vadd.f32 %v877, 1.0
    %v879 = vrcp.pop %v878
    %v880 = vmul.f32 %v878, %v879
    %v881 = vsub.f32 1.0, %v880
    %v882 = vmul.f32 %v879, %v881
    %v883 = vadd.f32 %v879, %v882
    %vm884 = vweird.f32 %v878
    %vm885 = vweird.f32 %v879
    %vm886 = vmor %vm884, %vm885
    %v887 = vsel %vm886, %v879, %v883
    %v888 = vand.u32 2147483647, %v878
    %vm889 = vcmp.eq.f32.partialorder %v888, 8.507059e+37
    %v890 = vand.u32 %v878, 2147483648
    %v891 = vor.u32 1.1754944e-38, %v890
    %v892 = vsel %vm889, %v891, %v887
    %v893 = vmul.f32 1.0, %v892
    %v894 = vmul.f32 %v869, %v744
    %v895 = vmul.f32 %v847, %v872
    %v896 = vadd.f32 %v894, %v895
    %v897 = vtanh.pop %v896
    %v898 = vmul.f32 %v893, %v897
    %v899 = vpack.c.bf16 %v898, %v898
    %900 = vmatpush.bf16.msra.mxu0 %v435
    %901 = vmatpush.bf16.msra.mxu0 %v434
    %902 = vmatpush.bf16.msra.mxu0 %v433
    %903 = vmatpush.bf16.msra.mxu0 %v432
    %904 = vmatpush.bf16.msra.mxu0 %v431
    %905 = vmatpush.bf16.msra.mxu0 %v430
    %906 = vmatpush.bf16.msra.mxu0 %v429
    %907 = vmatpush.bf16.msra.mxu0 %v428
    %908 = vmatmul.bf16.gmra.mxu0 %v899
    %v909 = vpop.f32.mrf.mxu0
    %v910 = vadd.f32 %v394, %v909
    %v911 = vpop.f32.mrf.mxu0
    %912 = vdwg.mxu0
    %s913 = scalar_lea.vmem %s5, 6
    %914 = vst.msk [vmem:[%s913] sm:$0x3] %vm457, %v910
    %s915 = scalar_lea.vmem %s0, 32
    %v916 = vld [vmem:[%s915] sm:$0xff]
    %917 = vmatpush.bf16.msra.mxu0 %v219
    %918 = vmatpush.bf16.msra.mxu0 %v215
    %919 = vmatpush.bf16.msra.mxu0 %v211
    %920 = vmatpush.bf16.msra.mxu0 %v207
    %921 = vmatpush.bf16.msra.mxu0 %v203
    %922 = vmatpush.bf16.msra.mxu0 %v199
    %923 = vmatpush.bf16.msra.mxu0 %v195
    %924 = vmatpush.bf16.msra.mxu0 %v191
    %925 = vmatmul.bf16.gmra.mxu0 %v899
    %v926 = vpop.f32.mrf.mxu0
    %v927 = vadd.f32 0.0, %v926
    %v928 = vpop.f32.mrf.mxu0
    %929 = vdwg.mxu0
    %930 = vmatpush.bf16.msra.mxu0 %v220
    %931 = vmatpush.bf16.msra.mxu0 %v216
    %932 = vmatpush.bf16.msra.mxu0 %v212
    %933 = vmatpush.bf16.msra.mxu0 %v208
    %934 = vmatpush.bf16.msra.mxu0 %v204
    %935 = vmatpush.bf16.msra.mxu0 %v200
    %936 = vmatpush.bf16.msra.mxu0 %v196
    %937 = vmatpush.bf16.msra.mxu0 %v192
    %938 = vmatmul.bf16.gmra.mxu0 %v899
    %v939 = vpop.f32.mrf.mxu0
    %v940 = vadd.f32 0.0, %v939
    %v941 = vpop.f32.mrf.mxu0
    %942 = vdwg.mxu0
    %943 = vmatpush.bf16.msra.mxu0 %v221
    %944 = vmatpush.bf16.msra.mxu0 %v217
    %945 = vmatpush.bf16.msra.mxu0 %v213
    %946 = vmatpush.bf16.msra.mxu0 %v209
    %947 = vmatpush.bf16.msra.mxu0 %v205
    %948 = vmatpush.bf16.msra.mxu0 %v201
    %949 = vmatpush.bf16.msra.mxu0 %v197
    %950 = vmatpush.bf16.msra.mxu0 %v193
    %951 = vmatmul.bf16.gmra.mxu0 %v899
    %v952 = vpop.f32.mrf.mxu0
    %v953 = vadd.f32 0.0, %v952
    %v954 = vpop.f32.mrf.mxu0
    %955 = vdwg.mxu0
    %956 = vmatpush.bf16.msra.mxu0 %v222
    %957 = vmatpush.bf16.msra.mxu0 %v218
    %958 = vmatpush.bf16.msra.mxu0 %v214
    %959 = vmatpush.bf16.msra.mxu0 %v210
    %960 = vmatpush.bf16.msra.mxu0 %v206
    %961 = vmatpush.bf16.msra.mxu0 %v202
    %962 = vmatpush.bf16.msra.mxu0 %v198
    %963 = vmatpush.bf16.msra.mxu0 %v194
    %964 = vmatmul.bf16.gmra.mxu0 %v899
    %v965 = vpop.f32.mrf.mxu0
    %v966 = vadd.f32 0.0, %v965
    %v967 = vpop.f32.mrf.mxu0
    %968 = vdwg.mxu0
    %v973 = vrot.slane %v940, 6
    %v974 = vrot.slane %v953, 4
    %v975 = vrot.slane %v966, 2
    %v976 = vsel %vm314, %v927, %v973
    %v977 = vsel %vm316, %v974, %v975
    %v978 = vsel %vm318, %v976, %v977
    %v980 = vadd.f32 %v916, %v978
    %v981 = vxor.u32 %v980, 2147483648
    %v982 = vmul.f32 %v981, 1.442695
    %v983 = vpow.pop %v982
    %v984 = vadd.f32 %v983, 1.0
    %v985 = vrcp.pop %v984
    %v986 = vmul.f32 %v984, %v985
    %v987 = vsub.f32 1.0, %v986
    %v988 = vmul.f32 %v985, %v987
    %v989 = vadd.f32 %v985, %v988
    %vm990 = vweird.f32 %v984
    %vm991 = vweird.f32 %v985
    %vm992 = vmor %vm990, %vm991
    %v993 = vsel %vm992, %v985, %v989
    %v994 = vand.u32 2147483647, %v984
    %vm995 = vcmp.eq.f32.partialorder %v994, 8.507059e+37
    %v996 = vand.u32 %v984, 2147483648
    %v997 = vor.u32 1.1754944e-38, %v996
    %v998 = vsel %vm995, %v997, %v993
    %v999 = vmul.f32 1.0, %v998
    %v1001 = vrot.slane %v980, 2
    %v1003 = vxor.u32 %v1001, 2147483648
    %v1004 = vmul.f32 %v1003, 1.442695
    %v1005 = vpow.pop %v1004
    %v1006 = vadd.f32 %v1005, 1.0
    %v1007 = vrcp.pop %v1006
    %v1008 = vmul.f32 %v1006, %v1007
    %v1009 = vsub.f32 1.0, %v1008
    %v1010 = vmul.f32 %v1007, %v1009
    %v1011 = vadd.f32 %v1007, %v1010
    %vm1012 = vweird.f32 %v1006
    %vm1013 = vweird.f32 %v1007
    %vm1014 = vmor %vm1012, %vm1013
    %v1015 = vsel %vm1014, %v1007, %v1011
    %v1016 = vand.u32 2147483647, %v1006
    %vm1017 = vcmp.eq.f32.partialorder %v1016, 8.507059e+37
    %v1018 = vand.u32 %v1006, 2147483648
    %v1019 = vor.u32 1.1754944e-38, %v1018
    %v1020 = vsel %vm1017, %v1019, %v1015
    %v1021 = vmul.f32 1.0, %v1020
    %v1022 = vrot.slane %v980, 4
    %v1024 = vtanh.pop %v1022
    %v1025 = vrot.slane %v980, 6
    %v1027 = vxor.u32 %v1025, 2147483648
    %v1028 = vmul.f32 %v1027, 1.442695
    %v1029 = vpow.pop %v1028
    %v1030 = vadd.f32 %v1029, 1.0
    %v1031 = vrcp.pop %v1030
    %v1032 = vmul.f32 %v1030, %v1031
    %v1033 = vsub.f32 1.0, %v1032
    %v1034 = vmul.f32 %v1031, %v1033
    %v1035 = vadd.f32 %v1031, %v1034
    %vm1036 = vweird.f32 %v1030
    %vm1037 = vweird.f32 %v1031
    %vm1038 = vmor %vm1036, %vm1037
    %v1039 = vsel %vm1038, %v1031, %v1035
    %v1040 = vand.u32 2147483647, %v1030
    %vm1041 = vcmp.eq.f32.partialorder %v1040, 8.507059e+37
    %v1042 = vand.u32 %v1030, 2147483648
    %v1043 = vor.u32 1.1754944e-38, %v1042
    %v1044 = vsel %vm1041, %v1043, %v1039
    %v1045 = vmul.f32 1.0, %v1044
    %v1046 = vmul.f32 %v1021, %v896
    %v1047 = vmul.f32 %v999, %v1024
    %v1048 = vadd.f32 %v1046, %v1047
    %v1049 = vtanh.pop %v1048
    %v1050 = vmul.f32 %v1045, %v1049
    %v1051 = vpack.c.bf16 %v1050, %v1050
    %1052 = vmatpush.bf16.msra.mxu0 %v435
    %1053 = vmatpush.bf16.msra.mxu0 %v434
    %1054 = vmatpush.bf16.msra.mxu0 %v433
    %1055 = vmatpush.bf16.msra.mxu0 %v432
    %1056 = vmatpush.bf16.msra.mxu0 %v431
    %1057 = vmatpush.bf16.msra.mxu0 %v430
    %1058 = vmatpush.bf16.msra.mxu0 %v429
    %1059 = vmatpush.bf16.msra.mxu0 %v428
    %1060 = vmatmul.bf16.gmra.mxu0 %v1051
    %v1061 = vpop.f32.mrf.mxu0
    %v1062 = vadd.f32 %v394, %v1061
    %v1063 = vpop.f32.mrf.mxu0
    %1064 = vdwg.mxu0
    %s1065 = scalar_lea.vmem %s5, 8
    %1066 = vst.msk [vmem:[%s1065] sm:$0x3] %vm457, %v1062
    %s1067 = scalar_lea.vmem %s0, 40
    %v1068 = vld [vmem:[%s1067] sm:$0xff]
    %1069 = vmatpush.bf16.msra.mxu0 %v219
    %1070 = vmatpush.bf16.msra.mxu0 %v215
    %1071 = vmatpush.bf16.msra.mxu0 %v211
    %1072 = vmatpush.bf16.msra.mxu0 %v207
    %1073 = vmatpush.bf16.msra.mxu0 %v203
    %1074 = vmatpush.bf16.msra.mxu0 %v199
    %1075 = vmatpush.bf16.msra.mxu0 %v195
    %1076 = vmatpush.bf16.msra.mxu0 %v191
    %1077 = vmatmul.bf16.gmra.mxu0 %v1051
    %v1078 = vpop.f32.mrf.mxu0
    %v1079 = vadd.f32 0.0, %v1078
    %v1080 = vpop.f32.mrf.mxu0
    %1081 = vdwg.mxu0
    %1082 = vmatpush.bf16.msra.mxu0 %v220
    %1083 = vmatpush.bf16.msra.mxu0 %v216
    %1084 = vmatpush.bf16.msra.mxu0 %v212
    %1085 = vmatpush.bf16.msra.mxu0 %v208
    %1086 = vmatpush.bf16.msra.mxu0 %v204
    %1087 = vmatpush.bf16.msra.mxu0 %v200
    %1088 = vmatpush.bf16.msra.mxu0 %v196
    %1089 = vmatpush.bf16.msra.mxu0 %v192
    %1090 = vmatmul.bf16.gmra.mxu0 %v1051
    %v1091 = vpop.f32.mrf.mxu0
    %v1092 = vadd.f32 0.0, %v1091
    %v1093 = vpop.f32.mrf.mxu0
    %1094 = vdwg.mxu0
    %1095 = vmatpush.bf16.msra.mxu0 %v221
    %1096 = vmatpush.bf16.msra.mxu0 %v217
    %1097 = vmatpush.bf16.msra.mxu0 %v213
    %1098 = vmatpush.bf16.msra.mxu0 %v209
    %1099 = vmatpush.bf16.msra.mxu0 %v205
    %1100 = vmatpush.bf16.msra.mxu0 %v201
    %1101 = vmatpush.bf16.msra.mxu0 %v197
    %1102 = vmatpush.bf16.msra.mxu0 %v193
    %1103 = vmatmul.bf16.gmra.mxu0 %v1051
    %v1104 = vpop.f32.mrf.mxu0
    %v1105 = vadd.f32 0.0, %v1104
    %v1106 = vpop.f32.mrf.mxu0
    %1107 = vdwg.mxu0
    %1108 = vmatpush.bf16.msra.mxu0 %v222
    %1109 = vmatpush.bf16.msra.mxu0 %v218
    %1110 = vmatpush.bf16.msra.mxu0 %v214
    %1111 = vmatpush.bf16.msra.mxu0 %v210
    %1112 = vmatpush.bf16.msra.mxu0 %v206
    %1113 = vmatpush.bf16.msra.mxu0 %v202
    %1114 = vmatpush.bf16.msra.mxu0 %v198
    %1115 = vmatpush.bf16.msra.mxu0 %v194
    %1116 = vmatmul.bf16.gmra.mxu0 %v1051
    %v1117 = vpop.f32.mrf.mxu0
    %v1118 = vadd.f32 0.0, %v1117
    %v1119 = vpop.f32.mrf.mxu0
    %1120 = vdwg.mxu0
    %v1125 = vrot.slane %v1092, 6
    %v1126 = vrot.slane %v1105, 4
    %v1127 = vrot.slane %v1118, 2
    %v1128 = vsel %vm314, %v1079, %v1125
    %v1129 = vsel %vm316, %v1126, %v1127
    %v1130 = vsel %vm318, %v1128, %v1129
    %v1132 = vadd.f32 %v1068, %v1130
    %v1133 = vxor.u32 %v1132, 2147483648
    %v1134 = vmul.f32 %v1133, 1.442695
    %v1135 = vpow.pop %v1134
    %v1136 = vadd.f32 %v1135, 1.0
    %v1137 = vrcp.pop %v1136
    %v1138 = vmul.f32 %v1136, %v1137
    %v1139 = vsub.f32 1.0, %v1138
    %v1140 = vmul.f32 %v1137, %v1139
    %v1141 = vadd.f32 %v1137, %v1140
    %vm1142 = vweird.f32 %v1136
    %vm1143 = vweird.f32 %v1137
    %vm1144 = vmor %vm1142, %vm1143
    %v1145 = vsel %vm1144, %v1137, %v1141
    %v1146 = vand.u32 2147483647, %v1136
    %vm1147 = vcmp.eq.f32.partialorder %v1146, 8.507059e+37
    %v1148 = vand.u32 %v1136, 2147483648
    %v1149 = vor.u32 1.1754944e-38, %v1148
    %v1150 = vsel %vm1147, %v1149, %v1145
    %v1151 = vmul.f32 1.0, %v1150
    %v1153 = vrot.slane %v1132, 2
    %v1155 = vxor.u32 %v1153, 2147483648
    %v1156 = vmul.f32 %v1155, 1.442695
    %v1157 = vpow.pop %v1156
    %v1158 = vadd.f32 %v1157, 1.0
    %v1159 = vrcp.pop %v1158
    %v1160 = vmul.f32 %v1158, %v1159
    %v1161 = vsub.f32 1.0, %v1160
    %v1162 = vmul.f32 %v1159, %v1161
    %v1163 = vadd.f32 %v1159, %v1162
    %vm1164 = vweird.f32 %v1158
    %vm1165 = vweird.f32 %v1159
    %vm1166 = vmor %vm1164, %vm1165
    %v1167 = vsel %vm1166, %v1159, %v1163
    %v1168 = vand.u32 2147483647, %v1158
    %vm1169 = vcmp.eq.f32.partialorder %v1168, 8.507059e+37
    %v1170 = vand.u32 %v1158, 2147483648
    %v1171 = vor.u32 1.1754944e-38, %v1170
    %v1172 = vsel %vm1169, %v1171, %v1167
    %v1173 = vmul.f32 1.0, %v1172
    %v1174 = vrot.slane %v1132, 4
    %v1176 = vtanh.pop %v1174
    %v1177 = vrot.slane %v1132, 6
    %v1179 = vxor.u32 %v1177, 2147483648
    %v1180 = vmul.f32 %v1179, 1.442695
    %v1181 = vpow.pop %v1180
    %v1182 = vadd.f32 %v1181, 1.0
    %v1183 = vrcp.pop %v1182
    %v1184 = vmul.f32 %v1182, %v1183
    %v1185 = vsub.f32 1.0, %v1184
    %v1186 = vmul.f32 %v1183, %v1185
    %v1187 = vadd.f32 %v1183, %v1186
    %vm1188 = vweird.f32 %v1182
    %vm1189 = vweird.f32 %v1183
    %vm1190 = vmor %vm1188, %vm1189
    %v1191 = vsel %vm1190, %v1183, %v1187
    %v1192 = vand.u32 2147483647, %v1182
    %vm1193 = vcmp.eq.f32.partialorder %v1192, 8.507059e+37
    %v1194 = vand.u32 %v1182, 2147483648
    %v1195 = vor.u32 1.1754944e-38, %v1194
    %v1196 = vsel %vm1193, %v1195, %v1191
    %v1197 = vmul.f32 1.0, %v1196
    %v1198 = vmul.f32 %v1173, %v1048
    %v1199 = vmul.f32 %v1151, %v1176
    %v1200 = vadd.f32 %v1198, %v1199
    %v1201 = vtanh.pop %v1200
    %v1202 = vmul.f32 %v1197, %v1201
    %v1203 = vpack.c.bf16 %v1202, %v1202
    %1204 = vmatpush.bf16.msra.mxu0 %v435
    %1205 = vmatpush.bf16.msra.mxu0 %v434
    %1206 = vmatpush.bf16.msra.mxu0 %v433
    %1207 = vmatpush.bf16.msra.mxu0 %v432
    %1208 = vmatpush.bf16.msra.mxu0 %v431
    %1209 = vmatpush.bf16.msra.mxu0 %v430
    %1210 = vmatpush.bf16.msra.mxu0 %v429
    %1211 = vmatpush.bf16.msra.mxu0 %v428
    %1212 = vmatmul.bf16.gmra.mxu0 %v1203
    %v1213 = vpop.f32.mrf.mxu0
    %v1214 = vadd.f32 %v394, %v1213
    %v1215 = vpop.f32.mrf.mxu0
    %1216 = vdwg.mxu0
    %s1217 = scalar_lea.vmem %s5, 10
    %1218 = vst.msk [vmem:[%s1217] sm:$0x3] %vm457, %v1214
    %s1219 = scalar_lea.vmem %s0, 48
    %v1220 = vld [vmem:[%s1219] sm:$0xff]
    %1221 = vmatpush.bf16.msra.mxu0 %v219
    %1222 = vmatpush.bf16.msra.mxu0 %v215
    %1223 = vmatpush.bf16.msra.mxu0 %v211
    %1224 = vmatpush.bf16.msra.mxu0 %v207
    %1225 = vmatpush.bf16.msra.mxu0 %v203
    %1226 = vmatpush.bf16.msra.mxu0 %v199
    %1227 = vmatpush.bf16.msra.mxu0 %v195
    %1228 = vmatpush.bf16.msra.mxu0 %v191
    %1229 = vmatmul.bf16.gmra.mxu0 %v1203
    %v1230 = vpop.f32.mrf.mxu0
    %v1231 = vadd.f32 0.0, %v1230
    %v1232 = vpop.f32.mrf.mxu0
    %1233 = vdwg.mxu0
    %1234 = vmatpush.bf16.msra.mxu0 %v220
    %1235 = vmatpush.bf16.msra.mxu0 %v216
    %1236 = vmatpush.bf16.msra.mxu0 %v212
    %1237 = vmatpush.bf16.msra.mxu0 %v208
    %1238 = vmatpush.bf16.msra.mxu0 %v204
    %1239 = vmatpush.bf16.msra.mxu0 %v200
    %1240 = vmatpush.bf16.msra.mxu0 %v196
    %1241 = vmatpush.bf16.msra.mxu0 %v192
    %1242 = vmatmul.bf16.gmra.mxu0 %v1203
    %v1243 = vpop.f32.mrf.mxu0
    %v1244 = vadd.f32 0.0, %v1243
    %v1245 = vpop.f32.mrf.mxu0
    %1246 = vdwg.mxu0
    %1247 = vmatpush.bf16.msra.mxu0 %v221
    %1248 = vmatpush.bf16.msra.mxu0 %v217
    %1249 = vmatpush.bf16.msra.mxu0 %v213
    %1250 = vmatpush.bf16.msra.mxu0 %v209
    %1251 = vmatpush.bf16.msra.mxu0 %v205
    %1252 = vmatpush.bf16.msra.mxu0 %v201
    %1253 = vmatpush.bf16.msra.mxu0 %v197
    %1254 = vmatpush.bf16.msra.mxu0 %v193
    %1255 = vmatmul.bf16.gmra.mxu0 %v1203
    %v1256 = vpop.f32.mrf.mxu0
    %v1257 = vadd.f32 0.0, %v1256
    %v1258 = vpop.f32.mrf.mxu0
    %1259 = vdwg.mxu0
    %1260 = vmatpush.bf16.msra.mxu0 %v222
    %1261 = vmatpush.bf16.msra.mxu0 %v218
    %1262 = vmatpush.bf16.msra.mxu0 %v214
    %1263 = vmatpush.bf16.msra.mxu0 %v210
    %1264 = vmatpush.bf16.msra.mxu0 %v206
    %1265 = vmatpush.bf16.msra.mxu0 %v202
    %1266 = vmatpush.bf16.msra.mxu0 %v198
    %1267 = vmatpush.bf16.msra.mxu0 %v194
    %1268 = vmatmul.bf16.gmra.mxu0 %v1203
    %v1269 = vpop.f32.mrf.mxu0
    %v1270 = vadd.f32 0.0, %v1269
    %v1271 = vpop.f32.mrf.mxu0
    %1272 = vdwg.mxu0
    %v1277 = vrot.slane %v1244, 6
    %v1278 = vrot.slane %v1257, 4
    %v1279 = vrot.slane %v1270, 2
    %v1280 = vsel %vm314, %v1231, %v1277
    %v1281 = vsel %vm316, %v1278, %v1279
    %v1282 = vsel %vm318, %v1280, %v1281
    %v1284 = vadd.f32 %v1220, %v1282
    %v1285 = vxor.u32 %v1284, 2147483648
    %v1286 = vmul.f32 %v1285, 1.442695
    %v1287 = vpow.pop %v1286
    %v1288 = vadd.f32 %v1287, 1.0
    %v1289 = vrcp.pop %v1288
    %v1290 = vmul.f32 %v1288, %v1289
    %v1291 = vsub.f32 1.0, %v1290
    %v1292 = vmul.f32 %v1289, %v1291
    %v1293 = vadd.f32 %v1289, %v1292
    %vm1294 = vweird.f32 %v1288
    %vm1295 = vweird.f32 %v1289
    %vm1296 = vmor %vm1294, %vm1295
    %v1297 = vsel %vm1296, %v1289, %v1293
    %v1298 = vand.u32 2147483647, %v1288
    %vm1299 = vcmp.eq.f32.partialorder %v1298, 8.507059e+37
    %v1300 = vand.u32 %v1288, 2147483648
    %v1301 = vor.u32 1.1754944e-38, %v1300
    %v1302 = vsel %vm1299, %v1301, %v1297
    %v1303 = vmul.f32 1.0, %v1302
    %v1305 = vrot.slane %v1284, 2
    %v1307 = vxor.u32 %v1305, 2147483648
    %v1308 = vmul.f32 %v1307, 1.442695
    %v1309 = vpow.pop %v1308
    %v1310 = vadd.f32 %v1309, 1.0
    %v1311 = vrcp.pop %v1310
    %v1312 = vmul.f32 %v1310, %v1311
    %v1313 = vsub.f32 1.0, %v1312
    %v1314 = vmul.f32 %v1311, %v1313
    %v1315 = vadd.f32 %v1311, %v1314
    %vm1316 = vweird.f32 %v1310
    %vm1317 = vweird.f32 %v1311
    %vm1318 = vmor %vm1316, %vm1317
    %v1319 = vsel %vm1318, %v1311, %v1315
    %v1320 = vand.u32 2147483647, %v1310
    %vm1321 = vcmp.eq.f32.partialorder %v1320, 8.507059e+37
    %v1322 = vand.u32 %v1310, 2147483648
    %v1323 = vor.u32 1.1754944e-38, %v1322
    %v1324 = vsel %vm1321, %v1323, %v1319
    %v1325 = vmul.f32 1.0, %v1324
    %v1326 = vrot.slane %v1284, 4
    %v1328 = vtanh.pop %v1326
    %v1329 = vrot.slane %v1284, 6
    %v1331 = vxor.u32 %v1329, 2147483648
    %v1332 = vmul.f32 %v1331, 1.442695
    %v1333 = vpow.pop %v1332
    %v1334 = vadd.f32 %v1333, 1.0
    %v1335 = vrcp.pop %v1334
    %v1336 = vmul.f32 %v1334, %v1335
    %v1337 = vsub.f32 1.0, %v1336
    %v1338 = vmul.f32 %v1335, %v1337
    %v1339 = vadd.f32 %v1335, %v1338
    %vm1340 = vweird.f32 %v1334
    %vm1341 = vweird.f32 %v1335
    %vm1342 = vmor %vm1340, %vm1341
    %v1343 = vsel %vm1342, %v1335, %v1339
    %v1344 = vand.u32 2147483647, %v1334
    %vm1345 = vcmp.eq.f32.partialorder %v1344, 8.507059e+37
    %v1346 = vand.u32 %v1334, 2147483648
    %v1347 = vor.u32 1.1754944e-38, %v1346
    %v1348 = vsel %vm1345, %v1347, %v1343
    %v1349 = vmul.f32 1.0, %v1348
    %v1350 = vmul.f32 %v1325, %v1200
    %v1351 = vmul.f32 %v1303, %v1328
    %v1352 = vadd.f32 %v1350, %v1351
    %v1353 = vtanh.pop %v1352
    %v1354 = vmul.f32 %v1349, %v1353
    %v1355 = vpack.c.bf16 %v1354, %v1354
    %1356 = vmatpush.bf16.msra.mxu0 %v435
    %1357 = vmatpush.bf16.msra.mxu0 %v434
    %1358 = vmatpush.bf16.msra.mxu0 %v433
    %1359 = vmatpush.bf16.msra.mxu0 %v432
    %1360 = vmatpush.bf16.msra.mxu0 %v431
    %1361 = vmatpush.bf16.msra.mxu0 %v430
    %1362 = vmatpush.bf16.msra.mxu0 %v429
    %1363 = vmatpush.bf16.msra.mxu0 %v428
    %1364 = vmatmul.bf16.gmra.mxu0 %v1355
    %v1365 = vpop.f32.mrf.mxu0
    %v1366 = vadd.f32 %v394, %v1365
    %v1367 = vpop.f32.mrf.mxu0
    %1368 = vdwg.mxu0
    %s1369 = scalar_lea.vmem %s5, 12
    %1370 = vst.msk [vmem:[%s1369] sm:$0x3] %vm457, %v1366
    %s1371 = scalar_lea.vmem %s0, 56
    %v1372 = vld [vmem:[%s1371] sm:$0xff]
    %1373 = vmatpush.bf16.msra.mxu0 %v219
    %1374 = vmatpush.bf16.msra.mxu0 %v215
    %1375 = vmatpush.bf16.msra.mxu0 %v211
    %1376 = vmatpush.bf16.msra.mxu0 %v207
    %1377 = vmatpush.bf16.msra.mxu0 %v203
    %1378 = vmatpush.bf16.msra.mxu0 %v199
    %1379 = vmatpush.bf16.msra.mxu0 %v195
    %1380 = vmatpush.bf16.msra.mxu0 %v191
    %1381 = vmatmul.bf16.gmra.mxu0 %v1355
    %v1382 = vpop.f32.mrf.mxu0
    %v1383 = vadd.f32 0.0, %v1382
    %v1384 = vpop.f32.mrf.mxu0
    %1385 = vdwg.mxu0
    %1386 = vmatpush.bf16.msra.mxu0 %v220
    %1387 = vmatpush.bf16.msra.mxu0 %v216
    %1388 = vmatpush.bf16.msra.mxu0 %v212
    %1389 = vmatpush.bf16.msra.mxu0 %v208
    %1390 = vmatpush.bf16.msra.mxu0 %v204
    %1391 = vmatpush.bf16.msra.mxu0 %v200
    %1392 = vmatpush.bf16.msra.mxu0 %v196
    %1393 = vmatpush.bf16.msra.mxu0 %v192
    %1394 = vmatmul.bf16.gmra.mxu0 %v1355
    %v1395 = vpop.f32.mrf.mxu0
    %v1396 = vadd.f32 0.0, %v1395
    %v1397 = vpop.f32.mrf.mxu0
    %1398 = vdwg.mxu0
    %1399 = vmatpush.bf16.msra.mxu0 %v221
    %1400 = vmatpush.bf16.msra.mxu0 %v217
    %1401 = vmatpush.bf16.msra.mxu0 %v213
    %1402 = vmatpush.bf16.msra.mxu0 %v209
    %1403 = vmatpush.bf16.msra.mxu0 %v205
    %1404 = vmatpush.bf16.msra.mxu0 %v201
    %1405 = vmatpush.bf16.msra.mxu0 %v197
    %1406 = vmatpush.bf16.msra.mxu0 %v193
    %1407 = vmatmul.bf16.gmra.mxu0 %v1355
    %v1408 = vpop.f32.mrf.mxu0
    %v1409 = vadd.f32 0.0, %v1408
    %v1410 = vpop.f32.mrf.mxu0
    %1411 = vdwg.mxu0
    %1412 = vmatpush.bf16.msra.mxu0 %v222
    %1413 = vmatpush.bf16.msra.mxu0 %v218
    %1414 = vmatpush.bf16.msra.mxu0 %v214
    %1415 = vmatpush.bf16.msra.mxu0 %v210
    %1416 = vmatpush.bf16.msra.mxu0 %v206
    %1417 = vmatpush.bf16.msra.mxu0 %v202
    %1418 = vmatpush.bf16.msra.mxu0 %v198
    %1419 = vmatpush.bf16.msra.mxu0 %v194
    %1420 = vmatmul.bf16.gmra.mxu0 %v1355
    %v1421 = vpop.f32.mrf.mxu0
    %v1422 = vadd.f32 0.0, %v1421
    %v1423 = vpop.f32.mrf.mxu0
    %1424 = vdwg.mxu0
    %v1429 = vrot.slane %v1396, 6
    %v1430 = vrot.slane %v1409, 4
    %v1431 = vrot.slane %v1422, 2
    %v1432 = vsel %vm314, %v1383, %v1429
    %v1433 = vsel %vm316, %v1430, %v1431
    %v1434 = vsel %vm318, %v1432, %v1433
    %v1436 = vadd.f32 %v1372, %v1434
    %v1437 = vxor.u32 %v1436, 2147483648
    %v1438 = vmul.f32 %v1437, 1.442695
    %v1439 = vpow.pop %v1438
    %v1440 = vadd.f32 %v1439, 1.0
    %v1441 = vrcp.pop %v1440
    %v1442 = vmul.f32 %v1440, %v1441
    %v1443 = vsub.f32 1.0, %v1442
    %v1444 = vmul.f32 %v1441, %v1443
    %v1445 = vadd.f32 %v1441, %v1444
    %vm1446 = vweird.f32 %v1440
    %vm1447 = vweird.f32 %v1441
    %vm1448 = vmor %vm1446, %vm1447
    %v1449 = vsel %vm1448, %v1441, %v1445
    %v1450 = vand.u32 2147483647, %v1440
    %vm1451 = vcmp.eq.f32.partialorder %v1450, 8.507059e+37
    %v1452 = vand.u32 %v1440, 2147483648
    %v1453 = vor.u32 1.1754944e-38, %v1452
    %v1454 = vsel %vm1451, %v1453, %v1449
    %v1455 = vmul.f32 1.0, %v1454
    %v1457 = vrot.slane %v1436, 2
    %v1459 = vxor.u32 %v1457, 2147483648
    %v1460 = vmul.f32 %v1459, 1.442695
    %v1461 = vpow.pop %v1460
    %v1462 = vadd.f32 %v1461, 1.0
    %v1463 = vrcp.pop %v1462
    %v1464 = vmul.f32 %v1462, %v1463
    %v1465 = vsub.f32 1.0, %v1464
    %v1466 = vmul.f32 %v1463, %v1465
    %v1467 = vadd.f32 %v1463, %v1466
    %vm1468 = vweird.f32 %v1462
    %vm1469 = vweird.f32 %v1463
    %vm1470 = vmor %vm1468, %vm1469
    %v1471 = vsel %vm1470, %v1463, %v1467
    %v1472 = vand.u32 2147483647, %v1462
    %vm1473 = vcmp.eq.f32.partialorder %v1472, 8.507059e+37
    %v1474 = vand.u32 %v1462, 2147483648
    %v1475 = vor.u32 1.1754944e-38, %v1474
    %v1476 = vsel %vm1473, %v1475, %v1471
    %v1477 = vmul.f32 1.0, %v1476
    %v1478 = vrot.slane %v1436, 4
    %v1480 = vtanh.pop %v1478
    %v1481 = vrot.slane %v1436, 6
    %v1483 = vxor.u32 %v1481, 2147483648
    %v1484 = vmul.f32 %v1483, 1.442695
    %v1485 = vpow.pop %v1484
    %v1486 = vadd.f32 %v1485, 1.0
    %v1487 = vrcp.pop %v1486
    %v1488 = vmul.f32 %v1486, %v1487
    %v1489 = vsub.f32 1.0, %v1488
    %v1490 = vmul.f32 %v1487, %v1489
    %v1491 = vadd.f32 %v1487, %v1490
    %vm1492 = vweird.f32 %v1486
    %vm1493 = vweird.f32 %v1487
    %vm1494 = vmor %vm1492, %vm1493
    %v1495 = vsel %vm1494, %v1487, %v1491
    %v1496 = vand.u32 2147483647, %v1486
    %vm1497 = vcmp.eq.f32.partialorder %v1496, 8.507059e+37
    %v1498 = vand.u32 %v1486, 2147483648
    %v1499 = vor.u32 1.1754944e-38, %v1498
    %v1500 = vsel %vm1497, %v1499, %v1495
    %v1501 = vmul.f32 1.0, %v1500
    %v1502 = vmul.f32 %v1477, %v1352
    %v1503 = vmul.f32 %v1455, %v1480
    %v1504 = vadd.f32 %v1502, %v1503
    %v1505 = vtanh.pop %v1504
    %v1506 = vmul.f32 %v1501, %v1505
    %v1507 = vpack.c.bf16 %v1506, %v1506
    %1508 = vmatpush.bf16.msra.mxu0 %v435
    %1509 = vmatpush.bf16.msra.mxu0 %v434
    %1510 = vmatpush.bf16.msra.mxu0 %v433
    %1511 = vmatpush.bf16.msra.mxu0 %v432
    %1512 = vmatpush.bf16.msra.mxu0 %v431
    %1513 = vmatpush.bf16.msra.mxu0 %v430
    %1514 = vmatpush.bf16.msra.mxu0 %v429
    %1515 = vmatpush.bf16.msra.mxu0 %v428
    %1516 = vmatmul.bf16.gmra.mxu0 %v1507
    %v1517 = vpop.f32.mrf.mxu0
    %v1518 = vadd.f32 %v394, %v1517
    %v1519 = vpop.f32.mrf.mxu0
    %1520 = vdwg.mxu0
    %s1521 = scalar_lea.vmem %s5, 14
    %1522 = vst.msk [vmem:[%s1521] sm:$0x3] %vm457, %v1518
    %1523 = vst [vmem:[#allocation2] sm:$0x3] %v1506
    %1524 = vst [vmem:[#allocation3] sm:$0x3] %v1504
    // Predicated region
    $region30: #{rnn_two_crf_seq_forward.12} parent=1 // pred_check
      _
    $region31: #{rnn_two_crf_seq_forward.12} parent=1 // pred_check_branch
      %1526 = sbr.rel (0) target = $region33
    $region32: #{rnn_two_crf_seq_forward.12} parent=1 // pred_region
      _
    $region33: #{rnn_two_crf_seq_forward.12} parent=1 // pred_fallthru
      _
    // Predicated region
    $region34: #{rnn_two_crf_seq_forward.12} parent=1 // pred_check
      _
    $region35: #{rnn_two_crf_seq_forward.12} parent=1 // pred_check_branch
      %1528 = sbr.rel (0) target = $region37
    $region36: #{rnn_two_crf_seq_forward.12} parent=1 // pred_region
      _
    $region37: #{rnn_two_crf_seq_forward.12} parent=1 // pred_fallthru
      _
    %1529 = vsyncpa [#allocation5], 1

</llo_original>
